<compile_context>
chip_gen: v5e
topology: v5e:2x2
jax: 0.10.0
libtpu: 0.0.40
codegen_flags: <defaults>
</compile_context>

<pallas_src>
import jax
import jax.numpy as jnp
from jax.experimental import pallas as pl
from jax.experimental.pallas import tpu as pltpu

_BN_EPS = 1e-5


# ---------------------------------------------------------------------------
# Fused kernel: grid=(2,) over branches; combine epilogue on the last step.
# ---------------------------------------------------------------------------
def fused_kernel(x_ref,
                 w1_ref, st1_ref,
                 w2_ref, st2_ref,
                 w3_ref, st3_ref,
                 w4_ref, b4_ref,
                 wp1_ref, bp1_ref, wp2_ref,
                 out_ref, beta_ref,
                 x1_sc, x2_sc):
    branch = pl.program_id(0)

    def layer(h, w_ref, st_ref):
        hh = jnp.dot(h.astype(jnp.bfloat16), w_ref[0],
                     preferred_element_type=jnp.float32)
        st = st_ref[0]                                   # (2, N): [scale, shift']
        hh = hh * st[0:1, :] + st[1:2, :]                # BN(eval) with bias folded in
        return jnp.where(hh > 0, hh, 0.01 * hh)          # LeakyReLU(0.01)

    h = layer(x_ref[0], w1_ref, st1_ref)
    h = layer(h, w2_ref, st2_ref)
    h = layer(h, w3_ref, st3_ref)
    h = jnp.dot(h.astype(jnp.bfloat16), w4_ref[0],
                preferred_element_type=jnp.float32) + b4_ref[0]
    h = jax.nn.sigmoid(h)

    @pl.when(branch == 0)
    def _():
        x1_sc[...] = h

    @pl.when(branch == 1)
    def _():
        x2_sc[...] = h

    # ---- project + softmax-over-branches + weighted combine (last step only) ----
    @pl.when(branch == pl.num_programs(0) - 1)
    def _():
        x1 = x1_sc[...]
        x2 = x2_sc[...]
        n_rows = x1.shape[0]
        wp1 = wp1_ref[...]                               # (F, H) bf16
        bp1 = bp1_ref[...]                               # (1, H) f32
        wp2 = wp2_ref[...]                               # (1, H) f32
        h1 = jnp.tanh(jnp.dot(x1.astype(jnp.bfloat16), wp1,
                              preferred_element_type=jnp.float32) + bp1)
        h2 = jnp.tanh(jnp.dot(x2.astype(jnp.bfloat16), wp1,
                              preferred_element_type=jnp.float32) + bp1)
        # second project Linear: single output unit, no bias; then mean over batch
        wa = jnp.sum(h1 * wp2) / n_rows
        wb = jnp.sum(h2 * wp2) / n_rows
        # softmax over the two branch scores
        m = jnp.maximum(wa, wb)
        ea = jnp.exp(wa - m)
        eb = jnp.exp(wb - m)
        inv = 1.0 / (ea + eb)
        ea = ea * inv
        eb = eb * inv
        out_ref[...] = ea * x1 + eb * x2
        idx = jax.lax.broadcasted_iota(jnp.int32, (1, 2), 1)
        beta_ref[...] = jnp.where(idx == 0, ea, eb)


# ---------------------------------------------------------------------------
# Wrapper (param packing + pallas_call glue)
# ---------------------------------------------------------------------------
def _branch_spec(shape):
    n = len(shape)
    return pl.BlockSpec((1,) + tuple(shape[1:]), lambda i: (i,) + (0,) * (n - 1))


def _full_spec(shape):
    n = len(shape)
    return pl.BlockSpec(tuple(shape), lambda i: (0,) * n)


def _pack_branch(p):
    """Fold Linear bias into BN shift, cast weights to bf16, pack scale/shift."""
    ws, sts = [], []
    for i in (1, 2, 3):
        scale = p[f'g{i}'] / jnp.sqrt(p[f'v{i}'] + _BN_EPS)
        shift = p[f'bt{i}'] - p[f'm{i}'] * scale + p[f'b{i}'] * scale
        ws.append(p[f'w{i}'].astype(jnp.bfloat16))
        sts.append(jnp.stack([scale, shift], axis=0).astype(jnp.float32))  # (2, N)
    ws.append(p['w4'].astype(jnp.bfloat16))
    return ws, sts, p['b4'][None, :].astype(jnp.float32)


@jax.jit
def classifier_down_forward(x, params):
    """x: (B, 2, in_features) -> (out (B, out_features), exbeta (2, 1))."""
    B, _, IN = x.shape
    F = params['dnn1']['w4'].shape[1]
    H = params['project']['wp1'].shape[1]

    pk1 = _pack_branch(params['dnn1'])
    pk2 = _pack_branch(params['dnn2'])
    w_s = [jnp.stack([pk1[0][j], pk2[0][j]]) for j in range(4)]   # (2, in_j, out_j) bf16
    st_s = [jnp.stack([pk1[1][j], pk2[1][j]]) for j in range(3)]  # (2, 2, N_j) f32
    b4_s = jnp.stack([pk1[2], pk2[2]])                            # (2, 1, F) f32

    x_s = jnp.transpose(x, (1, 0, 2)).astype(jnp.float32)         # (2, B, IN)
    wp1 = params['project']['wp1'].astype(jnp.bfloat16)           # (F, H)
    bp1 = params['project']['bp1'][None, :].astype(jnp.float32)   # (1, H)
    wp2 = params['project']['wp2'][None, :].astype(jnp.float32)   # (1, H)

    args = [x_s,
            w_s[0], st_s[0],
            w_s[1], st_s[1],
            w_s[2], st_s[2],
            w_s[3], b4_s,
            wp1, bp1, wp2]
    in_specs = ([_branch_spec(a.shape) for a in args[:9]]
                + [_full_spec(a.shape) for a in args[9:]])

    dims = [IN, 1024, 512, 256, F]
    flops = 2 * 2 * B * sum(dims[i] * dims[i + 1] for i in range(4)) + 2 * 2 * B * F * H
    transcendentals = 2 * B * (F + H) + 4
    bytes_accessed = sum(int(a.size) * a.dtype.itemsize for a in args) + B * F * 4 + 2 * 4

    out, beta_row = pl.pallas_call(
        fused_kernel,
        out_shape=(jax.ShapeDtypeStruct((B, F), jnp.float32),
                   jax.ShapeDtypeStruct((1, 2), jnp.float32)),
        grid=(2,),
        in_specs=in_specs,
        out_specs=(_full_spec((B, F)), _full_spec((1, 2))),
        scratch_shapes=[pltpu.VMEM((B, F), jnp.float32),
                        pltpu.VMEM((B, F), jnp.float32)],
        compiler_params=pltpu.CompilerParams(dimension_semantics=("arbitrary",)),
        cost_estimate=pl.CostEstimate(flops=flops,
                                      transcendentals=transcendentals,
                                      bytes_accessed=bytes_accessed),
    )(*args)
    return out, beta_row.reshape(2, 1)


# ---------------------------------------------------------------------------
# Deterministic parameter init (shapes from Classifier_down.__init__)
# ---------------------------------------------------------------------------
def init_dnn_params(key, in_features, out_features):
    dims = [in_features, 1024, 512, 256, out_features]
    p = {}
    keys = jax.random.split(key, 4 * 2 + 3 * 4)
    k = iter(keys)
    for i in range(4):
        fan_in, fan_out = dims[i], dims[i + 1]
        p[f'w{i + 1}'] = jax.random.normal(next(k), (fan_in, fan_out), jnp.float32) * 0.05
        p[f'b{i + 1}'] = jax.random.normal(next(k), (fan_out,), jnp.float32) * 0.05
    for i in range(3):  # BatchNorm1d on the first three hidden layers
        n = dims[i + 1]
        p[f'g{i + 1}'] = 1.0 + 0.1 * jax.random.normal(next(k), (n,), jnp.float32)
        p[f'bt{i + 1}'] = 0.1 * jax.random.normal(next(k), (n,), jnp.float32)
        p[f'm{i + 1}'] = 0.1 * jax.random.normal(next(k), (n,), jnp.float32)
        p[f'v{i + 1}'] = jax.random.uniform(next(k), (n,), jnp.float32, 0.5, 1.5)
    return p


def init_project_params(key, out_features, hidden_size):
    k1, k2, k3 = jax.random.split(key, 3)
    return {
        'wp1': jax.random.normal(k1, (out_features, hidden_size), jnp.float32) * 0.05,
        'bp1': jax.random.normal(k2, (hidden_size,), jnp.float32) * 0.05,
        'wp2': jax.random.normal(k3, (hidden_size,), jnp.float32) * 0.05,
    }


# ---------------------------------------------------------------------------
# Pure-JAX references (for correctness sanity checks)
# ---------------------------------------------------------------------------
def _ref_dnn(x, p, cast_bf16):
    h = x
    for i in (1, 2, 3):
        scale = p[f'g{i}'] / jnp.sqrt(p[f'v{i}'] + _BN_EPS)
        if cast_bf16:
            hh = jnp.dot(h.astype(jnp.bfloat16), p[f'w{i}'].astype(jnp.bfloat16),
                         preferred_element_type=jnp.float32)
            shift = p[f'bt{i}'] - p[f'm{i}'] * scale + p[f'b{i}'] * scale
            h = hh * scale + shift
        else:
            hh = h @ p[f'w{i}'] + p[f'b{i}']
            h = (hh - p[f'm{i}']) * scale + p[f'bt{i}']
        h = jnp.where(h > 0, h, 0.01 * h)
    if cast_bf16:
        logits = jnp.dot(h.astype(jnp.bfloat16), p['w4'].astype(jnp.bfloat16),
                         preferred_element_type=jnp.float32) + p['b4']
    else:
        logits = h @ p['w4'] + p['b4']
    return jax.nn.sigmoid(logits)


def _ref_forward(x, params, cast_bf16=False):
    x1 = _ref_dnn(x[:, 0, :], params['dnn1'], cast_bf16)
    x2 = _ref_dnn(x[:, 1, :], params['dnn2'], cast_bf16)
    xs = jnp.stack((x1, x2), axis=1)                       # (B, 2, F)
    pp = params['project']
    wp1 = pp['wp1'].astype(jnp.bfloat16) if cast_bf16 else pp['wp1']
    a = xs.astype(jnp.bfloat16) if cast_bf16 else xs
    h = jnp.tanh(jnp.dot(a, wp1, preferred_element_type=jnp.float32) + pp['bp1'])
    w = (h @ pp['wp2'][:, None]).mean(0)                   # (2, 1)
    exbeta = jax.nn.softmax(w, axis=0)                     # (2, 1)
    out = (exbeta[None, :, :] * xs).sum(1)                 # (B, F)
    return out, exbeta


# ---------------------------------------------------------------------------
if __name__ == "__main__":
    B, IN_F, OUT_F, HIDDEN = 8, 32, 8, 64

    root = jax.random.PRNGKey(0)
    kx, k1, k2, k3 = jax.random.split(root, 4)
    params = {
        'dnn1': init_dnn_params(k1, IN_F, OUT_F),
        'dnn2': init_dnn_params(k2, IN_F, OUT_F),
        'project': init_project_params(k3, OUT_F, HIDDEN),
    }
    x = jax.random.normal(kx, (B, 2, IN_F), jnp.float32)

    out, exbeta = classifier_down_forward(x, params)
    out, exbeta = jax.block_until_ready((out, exbeta))
    assert out.shape == (B, OUT_F) and exbeta.shape == (2, 1)

    # (a) matched-precision reference (bf16 weights, f32 accumulate) -> tight check
    ref_out, ref_beta = _ref_forward(x, params, cast_bf16=True)
    assert jnp.allclose(out, ref_out, atol=1e-3, rtol=1e-3), \
        float(jnp.max(jnp.abs(out - ref_out)))
    assert jnp.allclose(exbeta, ref_beta, atol=1e-3, rtol=1e-3)

    # (b) original f32 module semantics -> loose check (bf16 weight quantization)
    f32_out, f32_beta = _ref_forward(x, params, cast_bf16=False)
    assert jnp.allclose(out, f32_out, atol=2e-2, rtol=2e-2), \
        float(jnp.max(jnp.abs(out - f32_out)))
    assert jnp.allclose(exbeta, f32_beta, atol=2e-2, rtol=2e-2)

    print("KERNEL_OK")
</pallas_src>

<mosaic_0001>
module attributes {stable_mosaic.version = 11 : i64} {
  func.func @fused_kernel(%arg0: i32, %arg1: memref<1x8x32xf32, #tpu.memory_space<vmem>>, %arg2: memref<1x32x1024xbf16, #tpu.memory_space<vmem>>, %arg3: memref<1x2x1024xf32, #tpu.memory_space<vmem>>, %arg4: memref<1x1024x512xbf16, #tpu.memory_space<vmem>>, %arg5: memref<1x2x512xf32, #tpu.memory_space<vmem>>, %arg6: memref<1x512x256xbf16, #tpu.memory_space<vmem>>, %arg7: memref<1x2x256xf32, #tpu.memory_space<vmem>>, %arg8: memref<1x256x8xbf16, #tpu.memory_space<vmem>>, %arg9: memref<1x1x8xf32, #tpu.memory_space<vmem>>, %arg10: memref<8x64xbf16, #tpu.memory_space<vmem>>, %arg11: memref<1x64xf32, #tpu.memory_space<vmem>>, %arg12: memref<1x64xf32, #tpu.memory_space<vmem>>, %arg13: memref<8x8xf32, #tpu.memory_space<vmem>>, %arg14: memref<1x2xf32, #tpu.memory_space<vmem>>, %arg15: memref<8x8xf32, #tpu.memory_space<vmem>>, %arg16: memref<8x8xf32, #tpu.memory_space<vmem>>) attributes {dimension_semantics = [#tpu.dimension_semantics<arbitrary>], iteration_bounds = array<i64: 2>, scalar_prefetch = 0 : i64, scratch_operands = 2 : i64, tpu.core_type = #tpu.core_type<tc>, window_params = [{transform_indices = @transform_0, window_bounds = array<i64: 1, 8, 32>}, {transform_indices = @transform_1, window_bounds = array<i64: 1, 32, 1024>}, {transform_indices = @transform_2, window_bounds = array<i64: 1, 2, 1024>}, {transform_indices = @transform_3, window_bounds = array<i64: 1, 1024, 512>}, {transform_indices = @transform_4, window_bounds = array<i64: 1, 2, 512>}, {transform_indices = @transform_5, window_bounds = array<i64: 1, 512, 256>}, {transform_indices = @transform_6, window_bounds = array<i64: 1, 2, 256>}, {transform_indices = @transform_7, window_bounds = array<i64: 1, 256, 8>}, {transform_indices = @transform_8, window_bounds = array<i64: 1, 1, 8>}, {pipeline_mode = #tpu.pipeline_mode<synchronous>, transform_indices = @transform_9, window_bounds = array<i64: 8, 64>}, {pipeline_mode = #tpu.pipeline_mode<synchronous>, transform_indices = @transform_10, window_bounds = array<i64: 1, 64>}, {pipeline_mode = #tpu.pipeline_mode<synchronous>, transform_indices = @transform_11, window_bounds = array<i64: 1, 64>}, {pipeline_mode = #tpu.pipeline_mode<synchronous>, transform_indices = @transform_12, window_bounds = array<i64: 8, 8>}, {pipeline_mode = #tpu.pipeline_mode<synchronous>, transform_indices = @transform_13, window_bounds = array<i64: 1, 2>}]} {
    %c0 = arith.constant 0 : index
    %c0_0 = arith.constant 0 : index
    %c0_1 = arith.constant 0 : index
    %0 = vector.load %arg1[%c0, %c0_0, %c0_1] : memref<1x8x32xf32, #tpu.memory_space<vmem>>, vector<1x8x32xf32>
    %1 = vector.shape_cast %0 : vector<1x8x32xf32> to vector<8x32xf32>
    %2 = arith.truncf %1 : vector<8x32xf32> to vector<8x32xbf16>
    %c0_2 = arith.constant 0 : index
    %c0_3 = arith.constant 0 : index
    %c0_4 = arith.constant 0 : index
    %3 = vector.load %arg2[%c0_2, %c0_3, %c0_4] : memref<1x32x1024xbf16, #tpu.memory_space<vmem>>, vector<1x32x1024xbf16>
    %4 = vector.shape_cast %3 : vector<1x32x1024xbf16> to vector<32x1024xbf16>
    %cst = arith.constant dense<0.000000e+00> : vector<8x1024xf32>
    %5 = tpu.matmul %2, %4, %cst {dimension_numbers = #tpu.dot_dimension_numbers<[1], [0], [0], [1], [0, 0, 1, 1], [], []>} : vector<8x32xbf16>, vector<32x1024xbf16>, vector<8x1024xf32> -> vector<8x1024xf32>
    %c0_5 = arith.constant 0 : index
    %c0_6 = arith.constant 0 : index
    %c0_7 = arith.constant 0 : index
    %6 = vector.load %arg3[%c0_5, %c0_6, %c0_7] : memref<1x2x1024xf32, #tpu.memory_space<vmem>>, vector<1x2x1024xf32>
    %7 = vector.shape_cast %6 : vector<1x2x1024xf32> to vector<2x1024xf32>
    %8 = vector.extract_strided_slice %7 {offsets = [0, 0], sizes = [1, 1024], strides = [1, 1]} : vector<2x1024xf32> to vector<1x1024xf32>
    %9 = vector.broadcast %8 : vector<1x1024xf32> to vector<8x1024xf32>
    %10 = arith.mulf %5, %9 : vector<8x1024xf32>
    %11 = vector.extract_strided_slice %7 {offsets = [1, 0], sizes = [1, 1024], strides = [1, 1]} : vector<2x1024xf32> to vector<1x1024xf32>
    %12 = vector.broadcast %11 : vector<1x1024xf32> to vector<8x1024xf32>
    %13 = arith.addf %10, %12 : vector<8x1024xf32>
    %cst_8 = arith.constant 0.000000e+00 : f32
    %14 = vector.broadcast %cst_8 : f32 to vector<8x1024xf32>
    %15 = arith.cmpf ogt, %13, %14 : vector<8x1024xf32>
    %cst_9 = arith.constant 0.00999999977 : f32
    %16 = vector.broadcast %cst_9 : f32 to vector<8x1024xf32>
    %17 = arith.mulf %16, %13 : vector<8x1024xf32>
    %18 = arith.select %15, %13, %17 : vector<8x1024xi1>, vector<8x1024xf32>
    %19 = arith.truncf %18 : vector<8x1024xf32> to vector<8x1024xbf16>
    %c0_10 = arith.constant 0 : index
    %c0_11 = arith.constant 0 : index
    %c0_12 = arith.constant 0 : index
    %20 = vector.load %arg4[%c0_10, %c0_11, %c0_12] : memref<1x1024x512xbf16, #tpu.memory_space<vmem>>, vector<1x1024x512xbf16>
    %21 = vector.shape_cast %20 : vector<1x1024x512xbf16> to vector<1024x512xbf16>
    %cst_13 = arith.constant dense<0.000000e+00> : vector<8x512xf32>
    %22 = tpu.matmul %19, %21, %cst_13 {dimension_numbers = #tpu.dot_dimension_numbers<[1], [0], [0], [1], [0, 0, 1, 1], [], []>} : vector<8x1024xbf16>, vector<1024x512xbf16>, vector<8x512xf32> -> vector<8x512xf32>
    %c0_14 = arith.constant 0 : index
    %c0_15 = arith.constant 0 : index
    %c0_16 = arith.constant 0 : index
    %23 = vector.load %arg5[%c0_14, %c0_15, %c0_16] : memref<1x2x512xf32, #tpu.memory_space<vmem>>, vector<1x2x512xf32>
    %24 = vector.shape_cast %23 : vector<1x2x512xf32> to vector<2x512xf32>
    %25 = vector.extract_strided_slice %24 {offsets = [0, 0], sizes = [1, 512], strides = [1, 1]} : vector<2x512xf32> to vector<1x512xf32>
    %26 = vector.broadcast %25 : vector<1x512xf32> to vector<8x512xf32>
    %27 = arith.mulf %22, %26 : vector<8x512xf32>
    %28 = vector.extract_strided_slice %24 {offsets = [1, 0], sizes = [1, 512], strides = [1, 1]} : vector<2x512xf32> to vector<1x512xf32>
    %29 = vector.broadcast %28 : vector<1x512xf32> to vector<8x512xf32>
    %30 = arith.addf %27, %29 : vector<8x512xf32>
    %cst_17 = arith.constant 0.000000e+00 : f32
    %31 = vector.broadcast %cst_17 : f32 to vector<8x512xf32>
    %32 = arith.cmpf ogt, %30, %31 : vector<8x512xf32>
    %cst_18 = arith.constant 0.00999999977 : f32
    %33 = vector.broadcast %cst_18 : f32 to vector<8x512xf32>
    %34 = arith.mulf %33, %30 : vector<8x512xf32>
    %35 = arith.select %32, %30, %34 : vector<8x512xi1>, vector<8x512xf32>
    %36 = arith.truncf %35 : vector<8x512xf32> to vector<8x512xbf16>
    %c0_19 = arith.constant 0 : index
    %c0_20 = arith.constant 0 : index
    %c0_21 = arith.constant 0 : index
    %37 = vector.load %arg6[%c0_19, %c0_20, %c0_21] : memref<1x512x256xbf16, #tpu.memory_space<vmem>>, vector<1x512x256xbf16>
    %38 = vector.shape_cast %37 : vector<1x512x256xbf16> to vector<512x256xbf16>
    %cst_22 = arith.constant dense<0.000000e+00> : vector<8x256xf32>
    %39 = tpu.matmul %36, %38, %cst_22 {dimension_numbers = #tpu.dot_dimension_numbers<[1], [0], [0], [1], [0, 0, 1, 1], [], []>} : vector<8x512xbf16>, vector<512x256xbf16>, vector<8x256xf32> -> vector<8x256xf32>
    %c0_23 = arith.constant 0 : index
    %c0_24 = arith.constant 0 : index
    %c0_25 = arith.constant 0 : index
    %40 = vector.load %arg7[%c0_23, %c0_24, %c0_25] : memref<1x2x256xf32, #tpu.memory_space<vmem>>, vector<1x2x256xf32>
    %41 = vector.shape_cast %40 : vector<1x2x256xf32> to vector<2x256xf32>
    %42 = vector.extract_strided_slice %41 {offsets = [0, 0], sizes = [1, 256], strides = [1, 1]} : vector<2x256xf32> to vector<1x256xf32>
    %43 = vector.broadcast %42 : vector<1x256xf32> to vector<8x256xf32>
    %44 = arith.mulf %39, %43 : vector<8x256xf32>
    %45 = vector.extract_strided_slice %41 {offsets = [1, 0], sizes = [1, 256], strides = [1, 1]} : vector<2x256xf32> to vector<1x256xf32>
    %46 = vector.broadcast %45 : vector<1x256xf32> to vector<8x256xf32>
    %47 = arith.addf %44, %46 : vector<8x256xf32>
    %cst_26 = arith.constant 0.000000e+00 : f32
    %48 = vector.broadcast %cst_26 : f32 to vector<8x256xf32>
    %49 = arith.cmpf ogt, %47, %48 : vector<8x256xf32>
    %cst_27 = arith.constant 0.00999999977 : f32
    %50 = vector.broadcast %cst_27 : f32 to vector<8x256xf32>
    %51 = arith.mulf %50, %47 : vector<8x256xf32>
    %52 = arith.select %49, %47, %51 : vector<8x256xi1>, vector<8x256xf32>
    %53 = arith.truncf %52 : vector<8x256xf32> to vector<8x256xbf16>
    %c0_28 = arith.constant 0 : index
    %c0_29 = arith.constant 0 : index
    %c0_30 = arith.constant 0 : index
    %54 = vector.load %arg8[%c0_28, %c0_29, %c0_30] : memref<1x256x8xbf16, #tpu.memory_space<vmem>>, vector<1x256x8xbf16>
    %55 = vector.shape_cast %54 : vector<1x256x8xbf16> to vector<256x8xbf16>
    %cst_31 = arith.constant dense<0.000000e+00> : vector<8x8xf32>
    %56 = tpu.matmul %53, %55, %cst_31 {dimension_numbers = #tpu.dot_dimension_numbers<[1], [0], [0], [1], [0, 0, 1, 1], [], []>} : vector<8x256xbf16>, vector<256x8xbf16>, vector<8x8xf32> -> vector<8x8xf32>
    %c0_32 = arith.constant 0 : index
    %c0_33 = arith.constant 0 : index
    %c0_34 = arith.constant 0 : index
    %57 = vector.load %arg9[%c0_32, %c0_33, %c0_34] : memref<1x1x8xf32, #tpu.memory_space<vmem>>, vector<1x1x8xf32>
    %58 = vector.shape_cast %57 : vector<1x1x8xf32> to vector<1x8xf32>
    %59 = vector.broadcast %58 : vector<1x8xf32> to vector<8x8xf32>
    %60 = arith.addf %56, %59 : vector<8x8xf32>
    %61 = arith.negf %60 : vector<8x8xf32>
    %62 = math.exp %61 : vector<8x8xf32>
    %cst_35 = arith.constant 1.000000e+00 : f32
    %63 = vector.broadcast %cst_35 : f32 to vector<8x8xf32>
    %64 = arith.addf %63, %62 : vector<8x8xf32>
    %65 = arith.divf %63, %64 : vector<8x8xf32>
    %c0_i32 = arith.constant 0 : i32
    %66 = arith.cmpi eq, %arg0, %c0_i32 : i32
    %67 = arith.extui %66 : i1 to i32
    %c0_i32_36 = arith.constant 0 : i32
    %68 = arith.cmpi ne, %67, %c0_i32_36 : i32
    scf.if %68 {
      %c0_40 = arith.constant 0 : index
      %c0_41 = arith.constant 0 : index
      %75 = vector.load %arg15[%c0_40, %c0_41] : memref<8x8xf32, #tpu.memory_space<vmem>>, vector<8x8xf32>
      tpu.vector_store %arg15[%c0_40, %c0_41], %65 {strides = array<i32>} : memref<8x8xf32, #tpu.memory_space<vmem>>, vector<8x8xf32>,
    } else {
    }
    %c1_i32 = arith.constant 1 : i32
    %69 = arith.cmpi eq, %arg0, %c1_i32 : i32
    %70 = arith.extui %69 : i1 to i32
    %c0_i32_37 = arith.constant 0 : i32
    %71 = arith.cmpi ne, %70, %c0_i32_37 : i32
    scf.if %71 {
      %c0_40 = arith.constant 0 : index
      %c0_41 = arith.constant 0 : index
      %75 = vector.load %arg16[%c0_40, %c0_41] : memref<8x8xf32, #tpu.memory_space<vmem>>, vector<8x8xf32>
      tpu.vector_store %arg16[%c0_40, %c0_41], %65 {strides = array<i32>} : memref<8x8xf32, #tpu.memory_space<vmem>>, vector<8x8xf32>,
    } else {
    }
    %c1_i32_38 = arith.constant 1 : i32
    %72 = arith.cmpi eq, %arg0, %c1_i32_38 : i32
    %73 = arith.extui %72 : i1 to i32
    %c0_i32_39 = arith.constant 0 : i32
    %74 = arith.cmpi ne, %73, %c0_i32_39 : i32
    scf.if %74 {
      %c0_40 = arith.constant 0 : index
      %c0_41 = arith.constant 0 : index
      %75 = vector.load %arg15[%c0_40, %c0_41] : memref<8x8xf32, #tpu.memory_space<vmem>>, vector<8x8xf32>
      %c0_42 = arith.constant 0 : index
      %c0_43 = arith.constant 0 : index
      %76 = vector.load %arg16[%c0_42, %c0_43] : memref<8x8xf32, #tpu.memory_space<vmem>>, vector<8x8xf32>
      %c0_44 = arith.constant 0 : index
      %c0_45 = arith.constant 0 : index
      %77 = vector.load %arg10[%c0_44, %c0_45] : memref<8x64xbf16, #tpu.memory_space<vmem>>, vector<8x64xbf16>
      %c0_46 = arith.constant 0 : index
      %c0_47 = arith.constant 0 : index
      %78 = vector.load %arg11[%c0_46, %c0_47] : memref<1x64xf32, #tpu.memory_space<vmem>>, vector<1x64xf32>
      %c0_48 = arith.constant 0 : index
      %c0_49 = arith.constant 0 : index
      %79 = vector.load %arg12[%c0_48, %c0_49] : memref<1x64xf32, #tpu.memory_space<vmem>>, vector<1x64xf32>
      %80 = arith.truncf %75 : vector<8x8xf32> to vector<8x8xbf16>
      %cst_50 = arith.constant dense<0.000000e+00> : vector<8x64xf32>
      %81 = tpu.matmul %80, %77, %cst_50 {dimension_numbers = #tpu.dot_dimension_numbers<[1], [0], [0], [1], [0, 0, 1, 1], [], []>} : vector<8x8xbf16>, vector<8x64xbf16>, vector<8x64xf32> -> vector<8x64xf32>
      %82 = vector.broadcast %78 : vector<1x64xf32> to vector<8x64xf32>
      %83 = arith.addf %81, %82 : vector<8x64xf32>
      %84 = math.tanh %83 : vector<8x64xf32>
      %85 = arith.truncf %76 : vector<8x8xf32> to vector<8x8xbf16>
      %cst_51 = arith.constant dense<0.000000e+00> : vector<8x64xf32>
      %86 = tpu.matmul %85, %77, %cst_51 {dimension_numbers = #tpu.dot_dimension_numbers<[1], [0], [0], [1], [0, 0, 1, 1], [], []>} : vector<8x8xbf16>, vector<8x64xbf16>, vector<8x64xf32> -> vector<8x64xf32>
      %87 = vector.broadcast %78 : vector<1x64xf32> to vector<8x64xf32>
      %88 = arith.addf %86, %87 : vector<8x64xf32>
      %89 = math.tanh %88 : vector<8x64xf32>
      %90 = vector.broadcast %79 : vector<1x64xf32> to vector<8x64xf32>
      %91 = arith.mulf %84, %90 : vector<8x64xf32>
      %92 = vector.shape_cast %91 : vector<8x64xf32> to vector<1x8x64xf32>
      %cst_52 = arith.constant dense<0.000000e+00> : vector<1xf32>
      %93 = vector.multi_reduction <add>, %92, %cst_52 [1, 2] : vector<1x8x64xf32> to vector<1xf32>
      %94 = vector.shape_cast %93 : vector<1xf32> to vector<1x1x1xf32>
      %95 = vector.extract %94[0, 0, 0] : f32 from vector<1x1x1xf32>
      %cst_53 = arith.constant 8.000000e+00 : f32
      %96 = arith.divf %95, %cst_53 : f32
      %97 = vector.broadcast %79 : vector<1x64xf32> to vector<8x64xf32>
      %98 = arith.mulf %89, %97 : vector<8x64xf32>
      %99 = vector.shape_cast %98 : vector<8x64xf32> to vector<1x8x64xf32>
      %cst_54 = arith.constant dense<0.000000e+00> : vector<1xf32>
      %100 = vector.multi_reduction <add>, %99, %cst_54 [1, 2] : vector<1x8x64xf32> to vector<1xf32>
      %101 = vector.shape_cast %100 : vector<1xf32> to vector<1x1x1xf32>
      %102 = vector.extract %101[0, 0, 0] : f32 from vector<1x1x1xf32>
      %cst_55 = arith.constant 8.000000e+00 : f32
      %103 = arith.divf %102, %cst_55 : f32
      %104 = arith.maximumf %96, %103 : f32
      %105 = arith.subf %96, %104 : f32
      %106 = math.exp %105 : f32
      %107 = arith.subf %103, %104 : f32
      %108 = math.exp %107 : f32
      %109 = arith.addf %106, %108 : f32
      %cst_56 = arith.constant 1.000000e+00 : f32
      %110 = arith.divf %cst_56, %109 : f32
      %111 = arith.mulf %106, %110 : f32
      %112 = arith.mulf %108, %110 : f32
      %113 = vector.broadcast %111 : f32 to vector<8x8xf32>
      %114 = arith.mulf %113, %75 : vector<8x8xf32>
      %115 = vector.broadcast %112 : f32 to vector<8x8xf32>
      %116 = arith.mulf %115, %76 : vector<8x8xf32>
      %117 = arith.addf %114, %116 : vector<8x8xf32>
      %c0_57 = arith.constant 0 : index
      %c0_58 = arith.constant 0 : index
      %118 = vector.load %arg13[%c0_57, %c0_58] : memref<8x8xf32, #tpu.memory_space<vmem>>, vector<8x8xf32>
      tpu.vector_store %arg13[%c0_57, %c0_58], %117 {strides = array<i32>} : memref<8x8xf32, #tpu.memory_space<vmem>>, vector<8x8xf32>,
      %119 = tpu.iota {dimensions = array<i32: 1>} : vector<1x2xi32>
      %c0_i32_59 = arith.constant 0 : i32
      %120 = vector.broadcast %c0_i32_59 : i32 to vector<1x2xi32>
      %121 = arith.cmpi eq, %119, %120 : vector<1x2xi32>
      %122 = vector.broadcast %111 : f32 to vector<1x2xf32>
      %123 = vector.broadcast %112 : f32 to vector<1x2xf32>
      %124 = arith.select %121, %122, %123 : vector<1x2xi1>, vector<1x2xf32>
      %c0_60 = arith.constant 0 : index
      %c0_61 = arith.constant 0 : index
      %125 = vector.load %arg14[%c0_60, %c0_61] : memref<1x2xf32, #tpu.memory_space<vmem>>, vector<1x2xf32>
      tpu.vector_store %arg14[%c0_60, %c0_61], %124 {strides = array<i32>} : memref<1x2xf32, #tpu.memory_space<vmem>>, vector<1x2xf32>,
    } else {
    }
    return
  }
  func.func @transform_0(%arg0: i32) -> (i32, i32, i32) {
    %c0_i32 = arith.constant 0 : i32
    %c0_i32_0 = arith.constant 0 : i32
    %c0_i32_1 = arith.constant 0 : i32
    return %arg0, %c0_i32, %c0_i32_0 : i32, i32, i32
  }
  func.func @transform_1(%arg0: i32) -> (i32, i32, i32) {
    %c0_i32 = arith.constant 0 : i32
    %c0_i32_0 = arith.constant 0 : i32
    %c0_i32_1 = arith.constant 0 : i32
    return %arg0, %c0_i32, %c0_i32_0 : i32, i32, i32
  }
  func.func @transform_2(%arg0: i32) -> (i32, i32, i32) {
    %c0_i32 = arith.constant 0 : i32
    %c0_i32_0 = arith.constant 0 : i32
    %c0_i32_1 = arith.constant 0 : i32
    return %arg0, %c0_i32, %c0_i32_0 : i32, i32, i32
  }
  func.func @transform_3(%arg0: i32) -> (i32, i32, i32) {
    %c0_i32 = arith.constant 0 : i32
    %c0_i32_0 = arith.constant 0 : i32
    %c0_i32_1 = arith.constant 0 : i32
    return %arg0, %c0_i32, %c0_i32_0 : i32, i32, i32
  }
  func.func @transform_4(%arg0: i32) -> (i32, i32, i32) {
    %c0_i32 = arith.constant 0 : i32
    %c0_i32_0 = arith.constant 0 : i32
    %c0_i32_1 = arith.constant 0 : i32
    return %arg0, %c0_i32, %c0_i32_0 : i32, i32, i32
  }
  func.func @transform_5(%arg0: i32) -> (i32, i32, i32) {
    %c0_i32 = arith.constant 0 : i32
    %c0_i32_0 = arith.constant 0 : i32
    %c0_i32_1 = arith.constant 0 : i32
    return %arg0, %c0_i32, %c0_i32_0 : i32, i32, i32
  }
  func.func @transform_6(%arg0: i32) -> (i32, i32, i32) {
    %c0_i32 = arith.constant 0 : i32
    %c0_i32_0 = arith.constant 0 : i32
    %c0_i32_1 = arith.constant 0 : i32
    return %arg0, %c0_i32, %c0_i32_0 : i32, i32, i32
  }
  func.func @transform_7(%arg0: i32) -> (i32, i32, i32) {
    %c0_i32 = arith.constant 0 : i32
    %c0_i32_0 = arith.constant 0 : i32
    %c0_i32_1 = arith.constant 0 : i32
    return %arg0, %c0_i32, %c0_i32_0 : i32, i32, i32
  }
  func.func @transform_8(%arg0: i32) -> (i32, i32, i32) {
    %c0_i32 = arith.constant 0 : i32
    %c0_i32_0 = arith.constant 0 : i32
    %c0_i32_1 = arith.constant 0 : i32
    return %arg0, %c0_i32, %c0_i32_0 : i32, i32, i32
  }
  func.func @transform_9(%arg0: i32) -> (i32, i32) {
    %c0_i32 = arith.constant 0 : i32
    %c0_i32_0 = arith.constant 0 : i32
    %c0_i32_1 = arith.constant 0 : i32
    return %c0_i32, %c0_i32_0 : i32, i32
  }
  func.func @transform_10(%arg0: i32) -> (i32, i32) {
    %c0_i32 = arith.constant 0 : i32
    %c0_i32_0 = arith.constant 0 : i32
    %c0_i32_1 = arith.constant 0 : i32
    return %c0_i32, %c0_i32_0 : i32, i32
  }
  func.func @transform_11(%arg0: i32) -> (i32, i32) {
    %c0_i32 = arith.constant 0 : i32
    %c0_i32_0 = arith.constant 0 : i32
    %c0_i32_1 = arith.constant 0 : i32
    return %c0_i32, %c0_i32_0 : i32, i32
  }
  func.func @transform_12(%arg0: i32) -> (i32, i32) {
    %c0_i32 = arith.constant 0 : i32
    %c0_i32_0 = arith.constant 0 : i32
    %c0_i32_1 = arith.constant 0 : i32
    return %c0_i32, %c0_i32_0 : i32, i32
  }
  func.func @transform_13(%arg0: i32) -> (i32, i32) {
    %c0_i32 = arith.constant 0 : i32
    %c0_i32_0 = arith.constant 0 : i32
    %c0_i32_1 = arith.constant 0 : i32
    return %c0_i32, %c0_i32_0 : i32, i32
  }
}

</mosaic_0001>

<llo_original>
// kernel: classifier_down_forward.1
$region0: #{classifier_down_forward.1}
  #allocation0 [shape = 'u32[]', space=smem, size = 0x4, offset = 0x4, fixed_abs, tag = 'smem constant byte address 0x4 - core index']
  #allocation1 [shape = 'u32[72,128]{1,0:T(1,128)}', space=vmem, size = 0x9000, scoped, tag = 'internal scratch']
  #allocation2 [shape = 'f32[8,8]{1,0:T(8,128)}', space=vmem, size = 0x1000, scoped, tag = 'scratch operand']
  #allocation3 [shape = 'f32[8,8]{1,0:T(8,128)}', space=vmem, size = 0x1000, scoped, tag = 'scratch operand']
  %s0 = inlined_call_operand.vmem [shape: f32[2,8,32], index: 0, kind: input, shape index: {}]
  %s1 = inlined_call_operand.vmem [shape: bf16[2,32,1024], index: 1, kind: input, shape index: {}]
  %s2 = inlined_call_operand.vmem [shape: f32[2,2,1024], index: 2, kind: input, shape index: {}]
  %s3 = inlined_call_operand.vmem [shape: bf16[2,1024,512], index: 3, kind: input, shape index: {}]
  %s4 = inlined_call_operand.vmem [shape: f32[2,2,512], index: 4, kind: input, shape index: {}]
  %s5 = inlined_call_operand.vmem [shape: bf16[2,512,256], index: 5, kind: input, shape index: {}]
  %s6 = inlined_call_operand.vmem [shape: f32[2,2,256], index: 6, kind: input, shape index: {}]
  %s7 = inlined_call_operand.vmem [shape: bf16[2,256,8], index: 7, kind: input, shape index: {}]
  %s8 = inlined_call_operand.vmem [shape: f32[2,1,8], index: 8, kind: input, shape index: {}]
  %s9 = inlined_call_operand.vmem [shape: bf16[8,64], index: 9, kind: input, shape index: {}]
  %s10 = inlined_call_operand.vmem [shape: f32[1,64], index: 10, kind: input, shape index: {}]
  %s11 = inlined_call_operand.vmem [shape: f32[1,64], index: 11, kind: input, shape index: {}]
  %s12 = inlined_call_operand.hbm [shape: f32[8,8], index: 12, kind: output, shape index: {0}]
  %s13 = inlined_call_operand.hbm [shape: f32[1,2], index: 13, kind: output, shape index: {1}]
  %14 = xla_tuple %s12, %s13
  %s15 = sld [smem:[#allocation0]]
  $region97: #{classifier_down_forward.1} parent=0
    _
  %s17 = ssub.s32 1, %s15
  %s18 = scalar_select 0, %s17, %s15
  $region1: #{classifier_down_forward.1} parent=0
    #allocation4 [shape = 'u8[4096]{0}', space=vmem, size = 0x1000, scoped, tag = 'output window, operand 0, single buffered']
    #allocation5 [shape = 's32[2]{0}', space=sflag, size = 0x8, scoped, tag = 'scoped memory for classifier_down_forward.1']
    #allocation6 [shape = 'u8[512]{0}', space=vmem, size = 0x400, scoped, tag = 'output window, operand 1, single buffered']
    #allocation7 [shape = 's32[1]{0}', space=sflag, size = 0x4, scoped, tag = 'scoped memory for classifier_down_forward.1']
    %19 = vsyncpa [#allocation5], 0
    %20 = vsyncpa [#allocation7], 0
    loop: start=0, step=1, limit=4
    $region2: #{classifier_down_forward.1} parent=1 // loop_pre_header
      _
    $region3: #{classifier_down_forward.1} parent=1 // loop_header
      %s22 = sphi 0, %s26
      %p23 = scmp.ge.s32.totalorder %s22, 4
      %s32 = sphi 0, %s34
      %s35 = sphi 0, %s32
      %s36 = sphi 0, %s35
      %s52 = sphi 0, %s36
      %s58 = sphi 0, %s60
      %s61 = sphi 0, %s58
      %s62 = sphi 0, %s61
      %s78 = sphi 0, %s62
      %s84 = sphi 0, %s86
      %s87 = sphi 0, %s84
      %s88 = sphi 0, %s87
      %s104 = sphi 0, %s88
      %s110 = sphi 0, %s112
      %s113 = sphi 0, %s110
      %s114 = sphi 0, %s113
      %s130 = sphi 0, %s114
      %s136 = sphi 0, %s138
      %s139 = sphi 0, %s136
      %s140 = sphi 0, %s139
      %s156 = sphi 0, %s140
      %s162 = sphi 0, %s164
      %s165 = sphi 0, %s162
      %s166 = sphi 0, %s165
      %s182 = sphi 0, %s166
      %s188 = sphi 0, %s190
      %s191 = sphi 0, %s188
      %s192 = sphi 0, %s191
      %s208 = sphi 0, %s192
      %s214 = sphi 0, %s216
      %s217 = sphi 0, %s214
      %s218 = sphi 0, %s217
      %s234 = sphi 0, %s218
      %s240 = sphi 0, %s242
      %s243 = sphi 0, %s240
      %s244 = sphi 0, %s243
      %s260 = sphi 0, %s244
      %s264 = sphi 0, %s264
      %s266 = sphi 0, %s264
      %s267 = sphi 0, %s266
      %s281 = sphi 0, %s267
      %s285 = sphi 0, %s285
      %s287 = sphi 0, %s285
      %s288 = sphi 0, %s287
      %s302 = sphi 0, %s288
      %s306 = sphi 0, %s306
      %s308 = sphi 0, %s306
      %s309 = sphi 0, %s308
      %s323 = sphi 0, %s309
      %s327 = sphi 0, %s327
      %s329 = sphi 0, %s327
      %s330 = sphi 0, %s329
      %s344 = sphi 0, %s330
      %s348 = sphi 0, %s348
      %s350 = sphi 0, %s348
      %s351 = sphi 0, %s350
      %s365 = sphi 0, %s351
    $region4: #{classifier_down_forward.1} parent=1 // loop_header_branch
      %25 = sbr.rel (%p23) target = $region8
    $region5: #{classifier_down_forward.1} parent=1 // loop_body
      %s27 = ssub.s32 %s22, 1
      %s28 = ssub.s32 %s22, 2
      %s29 = sadd.s32 %s22, 1
      %s30 = ssub.s32 %s22, %s29
      %p31 = scmp.eq.s32.totalorder %s30, 0
      %s33 = sadd.s32 %s32, 1
      %s34 = scalar_select %p31, %s32, %s33
      %p37 = pneg %p31
      %p38 = scmp.eq.s32.totalorder %s22, 1
      %p39 = por %p37, %p38
      %p40 = scmp.ne.s32.totalorder %s32, %s35
      %p41 = scmp.eq.s32.totalorder %s22, 0
      %p42 = por %p40, %p41
      %p43 = scmp.ne.s32.totalorder %s32, %s35
      %p44 = scmp.eq.s32.totalorder %s27, 1
      %p45 = por %p43, %p44
      %p46 = scmp.ne.s32.totalorder %s35, %s36
      %p47 = scmp.eq.s32.totalorder %s27, 0
      %p48 = por %p46, %p47
      %p49 = scmp.ne.s32.totalorder %s35, %s36
      %p50 = scmp.eq.s32.totalorder %s28, 1
      %p51 = por %p49, %p50
      %p53 = scmp.ne.s32.totalorder %s36, %s52
      %p54 = scmp.eq.s32.totalorder %s28, 0
      %p55 = por %p53, %p54
      %s56 = ssub.s32 %s22, %s29
      %p57 = scmp.eq.s32.totalorder %s56, 0
      %s59 = sadd.s32 %s58, 1
      %s60 = scalar_select %p57, %s58, %s59
      %p63 = pneg %p57
      %p64 = scmp.eq.s32.totalorder %s22, 1
      %p65 = por %p63, %p64
      %p66 = scmp.ne.s32.totalorder %s58, %s61
      %p67 = scmp.eq.s32.totalorder %s22, 0
      %p68 = por %p66, %p67
      %p69 = scmp.ne.s32.totalorder %s58, %s61
      %p70 = scmp.eq.s32.totalorder %s27, 1
      %p71 = por %p69, %p70
      %p72 = scmp.ne.s32.totalorder %s61, %s62
      %p73 = scmp.eq.s32.totalorder %s27, 0
      %p74 = por %p72, %p73
      %p75 = scmp.ne.s32.totalorder %s61, %s62
      %p76 = scmp.eq.s32.totalorder %s28, 1
      %p77 = por %p75, %p76
      %p79 = scmp.ne.s32.totalorder %s62, %s78
      %p80 = scmp.eq.s32.totalorder %s28, 0
      %p81 = por %p79, %p80
      %s82 = ssub.s32 %s22, %s29
      %p83 = scmp.eq.s32.totalorder %s82, 0
      %s85 = sadd.s32 %s84, 1
      %s86 = scalar_select %p83, %s84, %s85
      %p89 = pneg %p83
      %p90 = scmp.eq.s32.totalorder %s22, 1
      %p91 = por %p89, %p90
      %p92 = scmp.ne.s32.totalorder %s84, %s87
      %p93 = scmp.eq.s32.totalorder %s22, 0
      %p94 = por %p92, %p93
      %p95 = scmp.ne.s32.totalorder %s84, %s87
      %p96 = scmp.eq.s32.totalorder %s27, 1
      %p97 = por %p95, %p96
      %p98 = scmp.ne.s32.totalorder %s87, %s88
      %p99 = scmp.eq.s32.totalorder %s27, 0
      %p100 = por %p98, %p99
      %p101 = scmp.ne.s32.totalorder %s87, %s88
      %p102 = scmp.eq.s32.totalorder %s28, 1
      %p103 = por %p101, %p102
      %p105 = scmp.ne.s32.totalorder %s88, %s104
      %p106 = scmp.eq.s32.totalorder %s28, 0
      %p107 = por %p105, %p106
      %s108 = ssub.s32 %s22, %s29
      %p109 = scmp.eq.s32.totalorder %s108, 0
      %s111 = sadd.s32 %s110, 1
      %s112 = scalar_select %p109, %s110, %s111
      %p115 = pneg %p109
      %p116 = scmp.eq.s32.totalorder %s22, 1
      %p117 = por %p115, %p116
      %p118 = scmp.ne.s32.totalorder %s110, %s113
      %p119 = scmp.eq.s32.totalorder %s22, 0
      %p120 = por %p118, %p119
      %p121 = scmp.ne.s32.totalorder %s110, %s113
      %p122 = scmp.eq.s32.totalorder %s27, 1
      %p123 = por %p121, %p122
      %p124 = scmp.ne.s32.totalorder %s113, %s114
      %p125 = scmp.eq.s32.totalorder %s27, 0
      %p126 = por %p124, %p125
      %p127 = scmp.ne.s32.totalorder %s113, %s114
      %p128 = scmp.eq.s32.totalorder %s28, 1
      %p129 = por %p127, %p128
      %p131 = scmp.ne.s32.totalorder %s114, %s130
      %p132 = scmp.eq.s32.totalorder %s28, 0
      %p133 = por %p131, %p132
      %s134 = ssub.s32 %s22, %s29
      %p135 = scmp.eq.s32.totalorder %s134, 0
      %s137 = sadd.s32 %s136, 1
      %s138 = scalar_select %p135, %s136, %s137
      %p141 = pneg %p135
      %p142 = scmp.eq.s32.totalorder %s22, 1
      %p143 = por %p141, %p142
      %p144 = scmp.ne.s32.totalorder %s136, %s139
      %p145 = scmp.eq.s32.totalorder %s22, 0
      %p146 = por %p144, %p145
      %p147 = scmp.ne.s32.totalorder %s136, %s139
      %p148 = scmp.eq.s32.totalorder %s27, 1
      %p149 = por %p147, %p148
      %p150 = scmp.ne.s32.totalorder %s139, %s140
      %p151 = scmp.eq.s32.totalorder %s27, 0
      %p152 = por %p150, %p151
      %p153 = scmp.ne.s32.totalorder %s139, %s140
      %p154 = scmp.eq.s32.totalorder %s28, 1
      %p155 = por %p153, %p154
      %p157 = scmp.ne.s32.totalorder %s140, %s156
      %p158 = scmp.eq.s32.totalorder %s28, 0
      %p159 = por %p157, %p158
      %s160 = ssub.s32 %s22, %s29
      %p161 = scmp.eq.s32.totalorder %s160, 0
      %s163 = sadd.s32 %s162, 1
      %s164 = scalar_select %p161, %s162, %s163
      %p167 = pneg %p161
      %p168 = scmp.eq.s32.totalorder %s22, 1
      %p169 = por %p167, %p168
      %p170 = scmp.ne.s32.totalorder %s162, %s165
      %p171 = scmp.eq.s32.totalorder %s22, 0
      %p172 = por %p170, %p171
      %p173 = scmp.ne.s32.totalorder %s162, %s165
      %p174 = scmp.eq.s32.totalorder %s27, 1
      %p175 = por %p173, %p174
      %p176 = scmp.ne.s32.totalorder %s165, %s166
      %p177 = scmp.eq.s32.totalorder %s27, 0
      %p178 = por %p176, %p177
      %p179 = scmp.ne.s32.totalorder %s165, %s166
      %p180 = scmp.eq.s32.totalorder %s28, 1
      %p181 = por %p179, %p180
      %p183 = scmp.ne.s32.totalorder %s166, %s182
      %p184 = scmp.eq.s32.totalorder %s28, 0
      %p185 = por %p183, %p184
      %s186 = ssub.s32 %s22, %s29
      %p187 = scmp.eq.s32.totalorder %s186, 0
      %s189 = sadd.s32 %s188, 1
      %s190 = scalar_select %p187, %s188, %s189
      %p193 = pneg %p187
      %p194 = scmp.eq.s32.totalorder %s22, 1
      %p195 = por %p193, %p194
      %p196 = scmp.ne.s32.totalorder %s188, %s191
      %p197 = scmp.eq.s32.totalorder %s22, 0
      %p198 = por %p196, %p197
      %p199 = scmp.ne.s32.totalorder %s188, %s191
      %p200 = scmp.eq.s32.totalorder %s27, 1
      %p201 = por %p199, %p200
      %p202 = scmp.ne.s32.totalorder %s191, %s192
      %p203 = scmp.eq.s32.totalorder %s27, 0
      %p204 = por %p202, %p203
      %p205 = scmp.ne.s32.totalorder %s191, %s192
      %p206 = scmp.eq.s32.totalorder %s28, 1
      %p207 = por %p205, %p206
      %p209 = scmp.ne.s32.totalorder %s192, %s208
      %p210 = scmp.eq.s32.totalorder %s28, 0
      %p211 = por %p209, %p210
      %s212 = ssub.s32 %s22, %s29
      %p213 = scmp.eq.s32.totalorder %s212, 0
      %s215 = sadd.s32 %s214, 1
      %s216 = scalar_select %p213, %s214, %s215
      %p219 = pneg %p213
      %p220 = scmp.eq.s32.totalorder %s22, 1
      %p221 = por %p219, %p220
      %p222 = scmp.ne.s32.totalorder %s214, %s217
      %p223 = scmp.eq.s32.totalorder %s22, 0
      %p224 = por %p222, %p223
      %p225 = scmp.ne.s32.totalorder %s214, %s217
      %p226 = scmp.eq.s32.totalorder %s27, 1
      %p227 = por %p225, %p226
      %p228 = scmp.ne.s32.totalorder %s217, %s218
      %p229 = scmp.eq.s32.totalorder %s27, 0
      %p230 = por %p228, %p229
      %p231 = scmp.ne.s32.totalorder %s217, %s218
      %p232 = scmp.eq.s32.totalorder %s28, 1
      %p233 = por %p231, %p232
      %p235 = scmp.ne.s32.totalorder %s218, %s234
      %p236 = scmp.eq.s32.totalorder %s28, 0
      %p237 = por %p235, %p236
      %s238 = ssub.s32 %s22, %s29
      %p239 = scmp.eq.s32.totalorder %s238, 0
      %s241 = sadd.s32 %s240, 1
      %s242 = scalar_select %p239, %s240, %s241
      %p245 = pneg %p239
      %p246 = scmp.eq.s32.totalorder %s22, 1
      %p247 = por %p245, %p246
      %p248 = scmp.ne.s32.totalorder %s240, %s243
      %p249 = scmp.eq.s32.totalorder %s22, 0
      %p250 = por %p248, %p249
      %p251 = scmp.ne.s32.totalorder %s240, %s243
      %p252 = scmp.eq.s32.totalorder %s27, 1
      %p253 = por %p251, %p252
      %p254 = scmp.ne.s32.totalorder %s243, %s244
      %p255 = scmp.eq.s32.totalorder %s27, 0
      %p256 = por %p254, %p255
      %p257 = scmp.ne.s32.totalorder %s243, %s244
      %p258 = scmp.eq.s32.totalorder %s28, 1
      %p259 = por %p257, %p258
      %p261 = scmp.ne.s32.totalorder %s244, %s260
      %p262 = scmp.eq.s32.totalorder %s28, 0
      %p263 = por %p261, %p262
      %s265 = sadd.s32 %s264, 1
      %p268 = scmp.eq.s32.totalorder %s22, 1
      %p269 = scmp.ne.s32.totalorder %s264, %s266
      %p270 = scmp.eq.s32.totalorder %s22, 0
      %p271 = por %p269, %p270
      %p272 = scmp.ne.s32.totalorder %s264, %s266
      %p273 = scmp.eq.s32.totalorder %s27, 1
      %p274 = por %p272, %p273
      %p275 = scmp.ne.s32.totalorder %s266, %s267
      %p276 = scmp.eq.s32.totalorder %s27, 0
      %p277 = por %p275, %p276
      %p278 = scmp.ne.s32.totalorder %s266, %s267
      %p279 = scmp.eq.s32.totalorder %s28, 1
      %p280 = por %p278, %p279
      %p282 = scmp.ne.s32.totalorder %s267, %s281
      %p283 = scmp.eq.s32.totalorder %s28, 0
      %p284 = por %p282, %p283
      %s286 = sadd.s32 %s285, 1
      %p289 = scmp.eq.s32.totalorder %s22, 1
      %p290 = scmp.ne.s32.totalorder %s285, %s287
      %p291 = scmp.eq.s32.totalorder %s22, 0
      %p292 = por %p290, %p291
      %p293 = scmp.ne.s32.totalorder %s285, %s287
      %p294 = scmp.eq.s32.totalorder %s27, 1
      %p295 = por %p293, %p294
      %p296 = scmp.ne.s32.totalorder %s287, %s288
      %p297 = scmp.eq.s32.totalorder %s27, 0
      %p298 = por %p296, %p297
      %p299 = scmp.ne.s32.totalorder %s287, %s288
      %p300 = scmp.eq.s32.totalorder %s28, 1
      %p301 = por %p299, %p300
      %p303 = scmp.ne.s32.totalorder %s288, %s302
      %p304 = scmp.eq.s32.totalorder %s28, 0
      %p305 = por %p303, %p304
      %s307 = sadd.s32 %s306, 1
      %p310 = scmp.eq.s32.totalorder %s22, 1
      %p311 = scmp.ne.s32.totalorder %s306, %s308
      %p312 = scmp.eq.s32.totalorder %s22, 0
      %p313 = por %p311, %p312
      %p314 = scmp.ne.s32.totalorder %s306, %s308
      %p315 = scmp.eq.s32.totalorder %s27, 1
      %p316 = por %p314, %p315
      %p317 = scmp.ne.s32.totalorder %s308, %s309
      %p318 = scmp.eq.s32.totalorder %s27, 0
      %p319 = por %p317, %p318
      %p320 = scmp.ne.s32.totalorder %s308, %s309
      %p321 = scmp.eq.s32.totalorder %s28, 1
      %p322 = por %p320, %p321
      %p324 = scmp.ne.s32.totalorder %s309, %s323
      %p325 = scmp.eq.s32.totalorder %s28, 0
      %p326 = por %p324, %p325
      %s328 = sadd.s32 %s327, 1
      %p331 = scmp.eq.s32.totalorder %s22, 1
      %p332 = scmp.ne.s32.totalorder %s327, %s329
      %p333 = scmp.eq.s32.totalorder %s22, 0
      %p334 = por %p332, %p333
      %p335 = scmp.ne.s32.totalorder %s327, %s329
      %p336 = scmp.eq.s32.totalorder %s27, 1
      %p337 = por %p335, %p336
      %p338 = scmp.ne.s32.totalorder %s329, %s330
      %p339 = scmp.eq.s32.totalorder %s27, 0
      %p340 = por %p338, %p339
      %p341 = scmp.ne.s32.totalorder %s329, %s330
      %p342 = scmp.eq.s32.totalorder %s28, 1
      %p343 = por %p341, %p342
      %p345 = scmp.ne.s32.totalorder %s330, %s344
      %p346 = scmp.eq.s32.totalorder %s28, 0
      %p347 = por %p345, %p346
      %s349 = sadd.s32 %s348, 1
      %p352 = scmp.eq.s32.totalorder %s22, 1
      %p353 = scmp.ne.s32.totalorder %s348, %s350
      %p354 = scmp.eq.s32.totalorder %s22, 0
      %p355 = por %p353, %p354
      %p356 = scmp.ne.s32.totalorder %s348, %s350
      %p357 = scmp.eq.s32.totalorder %s27, 1
      %p358 = por %p356, %p357
      %p359 = scmp.ne.s32.totalorder %s350, %s351
      %p360 = scmp.eq.s32.totalorder %s27, 0
      %p361 = por %p359, %p360
      %p362 = scmp.ne.s32.totalorder %s350, %s351
      %p363 = scmp.eq.s32.totalorder %s28, 1
      %p364 = por %p362, %p363
      %p366 = scmp.ne.s32.totalorder %s351, %s365
      %p367 = scmp.eq.s32.totalorder %s28, 0
      %p368 = por %p366, %p367
      %p369 = scmp.le.s32.totalorder 1, %s22
      %p370 = scmp.lt.s32.totalorder %s22, 3
      %p371 = pnand %p369, %p370
      %p372 = pneg %p371
      // Predicated region
      $region9: #{classifier_down_forward.1} parent=5 // pred_check
        _
      $region10: #{classifier_down_forward.1} parent=5 // pred_check_branch
        %374 = sbr.rel (%p371) target = $region12
      $region11: #{classifier_down_forward.1} parent=5 // pred_region
        %s375 = ssub.s32 %s22, 1
        // Predicated region
        $region13: #{classifier_down_forward.1} parent=11 // pred_check
          %p376 = pneg %p277
        $region14: #{classifier_down_forward.1} parent=11 // pred_check_branch
          %378 = sbr.rel (%p376) target = $region16
        $region15: #{classifier_down_forward.1} parent=11 // pred_region
          _
        $region16: #{classifier_down_forward.1} parent=11 // pred_fallthru
          _
        // Predicated region
        $region17: #{classifier_down_forward.1} parent=11 // pred_check
          %p379 = pneg %p298
        $region18: #{classifier_down_forward.1} parent=11 // pred_check_branch
          %381 = sbr.rel (%p379) target = $region20
        $region19: #{classifier_down_forward.1} parent=11 // pred_region
          _
        $region20: #{classifier_down_forward.1} parent=11 // pred_fallthru
          _
        // Predicated region
        $region21: #{classifier_down_forward.1} parent=11 // pred_check
          %p382 = pneg %p319
        $region22: #{classifier_down_forward.1} parent=11 // pred_check_branch
          %384 = sbr.rel (%p382) target = $region24
        $region23: #{classifier_down_forward.1} parent=11 // pred_region
          _
        $region24: #{classifier_down_forward.1} parent=11 // pred_fallthru
          _
      $region12: #{classifier_down_forward.1} parent=5 // pred_fallthru
        _
      %p385 = scmp.lt.s32.totalorder %s22, 2
      // Predicated region
      $region25: #{classifier_down_forward.1} parent=5 // pred_check
        %p386 = pneg %p385
      $region26: #{classifier_down_forward.1} parent=5 // pred_check_branch
        %388 = sbr.rel (%p386) target = $region28
      $region27: #{classifier_down_forward.1} parent=5 // pred_region
        // Predicated region
        $region29: #{classifier_down_forward.1} parent=27 // pred_check
          %p389 = pneg %p42
        $region30: #{classifier_down_forward.1} parent=27 // pred_check_branch
          %391 = sbr.rel (%p389) target = $region32
        $region31: #{classifier_down_forward.1} parent=27 // pred_region
          %p392 = scmp.lt.s32.totalorder %s22, 1
          %s393 = scalar_select %p392, %s22, 1
          %s394 = smul.addr %s393, 8
          %s395 = scalar_lea.vmem %s0, %s394
        $region32: #{classifier_down_forward.1} parent=27 // pred_fallthru
          _
        // Predicated region
        $region33: #{classifier_down_forward.1} parent=27 // pred_check
          %p396 = pneg %p68
        $region34: #{classifier_down_forward.1} parent=27 // pred_check_branch
          %398 = sbr.rel (%p396) target = $region36
        $region35: #{classifier_down_forward.1} parent=27 // pred_region
          %p399 = scmp.lt.s32.totalorder %s22, 1
          %s400 = scalar_select %p399, %s22, 1
          %s401 = smul.addr %s400, 32
          %s402 = smul.addr %s401, 4
          %s403 = scalar_lea.vmem %s1, %s402
        $region36: #{classifier_down_forward.1} parent=27 // pred_fallthru
          _
        // Predicated region
        $region37: #{classifier_down_forward.1} parent=27 // pred_check
          %p404 = pneg %p94
        $region38: #{classifier_down_forward.1} parent=27 // pred_check_branch
          %406 = sbr.rel (%p404) target = $region40
        $region39: #{classifier_down_forward.1} parent=27 // pred_region
          %p407 = scmp.lt.s32.totalorder %s22, 1
          %s408 = scalar_select %p407, %s22, 1
          %s409 = smul.addr %s408, 8
          %s410 = smul.addr %s409, 2
          %s411 = scalar_lea.vmem %s2, %s410
        $region40: #{classifier_down_forward.1} parent=27 // pred_fallthru
          _
        // Predicated region
        $region41: #{classifier_down_forward.1} parent=27 // pred_check
          %p412 = pneg %p120
        $region42: #{classifier_down_forward.1} parent=27 // pred_check_branch
          %414 = sbr.rel (%p412) target = $region44
        $region43: #{classifier_down_forward.1} parent=27 // pred_region
          %p415 = scmp.lt.s32.totalorder %s22, 1
          %s416 = scalar_select %p415, %s22, 1
          %s417 = smul.addr %s416, 512
          %s418 = smul.addr %s417, 4
          %s419 = scalar_lea.vmem %s3, %s418
        $region44: #{classifier_down_forward.1} parent=27 // pred_fallthru
          _
        // Predicated region
        $region45: #{classifier_down_forward.1} parent=27 // pred_check
          %p420 = pneg %p146
        $region46: #{classifier_down_forward.1} parent=27 // pred_check_branch
          %422 = sbr.rel (%p420) target = $region48
        $region47: #{classifier_down_forward.1} parent=27 // pred_region
          %p423 = scmp.lt.s32.totalorder %s22, 1
          %s424 = scalar_select %p423, %s22, 1
          %s425 = smul.addr %s424, 4
          %s426 = smul.addr %s425, 2
          %s427 = scalar_lea.vmem %s4, %s426
        $region48: #{classifier_down_forward.1} parent=27 // pred_fallthru
          _
        // Predicated region
        $region49: #{classifier_down_forward.1} parent=27 // pred_check
          %p428 = pneg %p172
        $region50: #{classifier_down_forward.1} parent=27 // pred_check_branch
          %430 = sbr.rel (%p428) target = $region52
        $region51: #{classifier_down_forward.1} parent=27 // pred_region
          %p431 = scmp.lt.s32.totalorder %s22, 1
          %s432 = scalar_select %p431, %s22, 1
          %s433 = smul.addr %s432, 128
          %s434 = smul.addr %s433, 4
          %s435 = scalar_lea.vmem %s5, %s434
        $region52: #{classifier_down_forward.1} parent=27 // pred_fallthru
          _
        // Predicated region
        $region53: #{classifier_down_forward.1} parent=27 // pred_check
          %p436 = pneg %p198
        $region54: #{classifier_down_forward.1} parent=27 // pred_check_branch
          %438 = sbr.rel (%p436) target = $region56
        $region55: #{classifier_down_forward.1} parent=27 // pred_region
          %p439 = scmp.lt.s32.totalorder %s22, 1
          %s440 = scalar_select %p439, %s22, 1
          %s441 = smul.addr %s440, 2
          %s442 = smul.addr %s441, 2
          %s443 = scalar_lea.vmem %s6, %s442
        $region56: #{classifier_down_forward.1} parent=27 // pred_fallthru
          _
        // Predicated region
        $region57: #{classifier_down_forward.1} parent=27 // pred_check
          %p444 = pneg %p224
        $region58: #{classifier_down_forward.1} parent=27 // pred_check_branch
          %446 = sbr.rel (%p444) target = $region60
        $region59: #{classifier_down_forward.1} parent=27 // pred_region
          %p447 = scmp.lt.s32.totalorder %s22, 1
          %s448 = scalar_select %p447, %s22, 1
          %s449 = smul.addr %s448, 32
          %s450 = smul.addr %s449, 4
          %s451 = scalar_lea.vmem %s7, %s450
        $region60: #{classifier_down_forward.1} parent=27 // pred_fallthru
          _
        // Predicated region
        $region61: #{classifier_down_forward.1} parent=27 // pred_check
          %p452 = pneg %p250
        $region62: #{classifier_down_forward.1} parent=27 // pred_check_branch
          %454 = sbr.rel (%p452) target = $region64
        $region63: #{classifier_down_forward.1} parent=27 // pred_region
          %p455 = scmp.lt.s32.totalorder %s22, 1
          %s456 = scalar_select %p455, %s22, 1
          %s457 = scalar_lea.vmem %s8, %s456
        $region64: #{classifier_down_forward.1} parent=27 // pred_fallthru
          _
      $region28: #{classifier_down_forward.1} parent=5 // pred_fallthru
        _
      %p458 = scmp.le.s32.totalorder 1, %s22
      %p459 = scmp.lt.s32.totalorder %s22, 3
      %p460 = pnand %p458, %p459
      %p461 = pneg %p460
      // Predicated region
      $region65: #{classifier_down_forward.1} parent=5 // pred_check
        _
      $region66: #{classifier_down_forward.1} parent=5 // pred_check_branch
        %463 = sbr.rel (%p460) target = $region68
      $region67: #{classifier_down_forward.1} parent=5 // pred_region
        %s464 = ssub.s32 %s22, 1
        %p465 = scmp.lt.s32.totalorder %s27, 1
        %s466 = scalar_select %p465, %s27, 1
        %s467 = smul.addr %s466, 8
        %s468 = scalar_lea.vmem %s0, %s467
        %p469 = pneg %p48
        %p470 = pneg %p45
        %p471 = scmp.lt.s32.totalorder %s27, 1
        %s472 = scalar_select %p471, %s27, 1
        %s473 = smul.addr %s472, 32
        %s474 = smul.addr %s473, 4
        %s475 = scalar_lea.vmem %s1, %s474
        %p476 = pneg %p74
        %p477 = pneg %p71
        %p478 = scmp.lt.s32.totalorder %s27, 1
        %s479 = scalar_select %p478, %s27, 1
        %s480 = smul.addr %s479, 8
        %s481 = smul.addr %s480, 2
        %s482 = scalar_lea.vmem %s2, %s481
        %p483 = pneg %p100
        %p484 = pneg %p97
        %p485 = scmp.lt.s32.totalorder %s27, 1
        %s486 = scalar_select %p485, %s27, 1
        %s487 = smul.addr %s486, 512
        %s488 = smul.addr %s487, 4
        %s489 = scalar_lea.vmem %s3, %s488
        %p490 = pneg %p126
        %p491 = pneg %p123
        %p492 = scmp.lt.s32.totalorder %s27, 1
        %s493 = scalar_select %p492, %s27, 1
        %s494 = smul.addr %s493, 4
        %s495 = smul.addr %s494, 2
        %s496 = scalar_lea.vmem %s4, %s495
        %p497 = pneg %p152
        %p498 = pneg %p149
        %p499 = scmp.lt.s32.totalorder %s27, 1
        %s500 = scalar_select %p499, %s27, 1
        %s501 = smul.addr %s500, 128
        %s502 = smul.addr %s501, 4
        %s503 = scalar_lea.vmem %s5, %s502
        %p504 = pneg %p178
        %p505 = pneg %p175
        %p506 = scmp.lt.s32.totalorder %s27, 1
        %s507 = scalar_select %p506, %s27, 1
        %s508 = smul.addr %s507, 2
        %s509 = smul.addr %s508, 2
        %s510 = scalar_lea.vmem %s6, %s509
        %p511 = pneg %p204
        %p512 = pneg %p201
        %p513 = scmp.lt.s32.totalorder %s27, 1
        %s514 = scalar_select %p513, %s27, 1
        %s515 = smul.addr %s514, 32
        %s516 = smul.addr %s515, 4
        %s517 = scalar_lea.vmem %s7, %s516
        %p518 = pneg %p230
        %p519 = pneg %p227
        %p520 = scmp.lt.s32.totalorder %s27, 1
        %s521 = scalar_select %p520, %s27, 1
        %s522 = scalar_lea.vmem %s8, %s521
        %p523 = pneg %p256
        %p524 = pneg %p253
        %p525 = pneg %p277
        %p526 = pneg %p274
        %p527 = pneg %p298
        %p528 = pneg %p295
        %p529 = pneg %p319
        %p530 = pneg %p316
        %p531 = pneg %p340
        %p532 = pneg %p337
        %p533 = pneg %p361
        %p534 = pneg %p358
        %p535 = scmp.lt.s32.totalorder %s27, 1
        %s536 = scalar_select %p535, %s27, 1
        %s537 = smul.addr %s536, 8
        %s538 = scalar_lea.vmem %s0, %s537
        %p539 = scmp.lt.s32.totalorder %s27, 1
        %s540 = scalar_select %p539, %s27, 1
        %s541 = smul.addr %s540, 32
        %s542 = smul.addr %s541, 4
        %s543 = scalar_lea.vmem %s1, %s542
        %p544 = scmp.lt.s32.totalorder %s27, 1
        %s545 = scalar_select %p544, %s27, 1
        %s546 = smul.addr %s545, 8
        %s547 = smul.addr %s546, 2
        %s548 = scalar_lea.vmem %s2, %s547
        %p549 = scmp.lt.s32.totalorder %s27, 1
        %s550 = scalar_select %p549, %s27, 1
        %s551 = smul.addr %s550, 512
        %s552 = smul.addr %s551, 4
        %s553 = scalar_lea.vmem %s3, %s552
        %p554 = scmp.lt.s32.totalorder %s27, 1
        %s555 = scalar_select %p554, %s27, 1
        %s556 = smul.addr %s555, 4
        %s557 = smul.addr %s556, 2
        %s558 = scalar_lea.vmem %s4, %s557
        %p559 = scmp.lt.s32.totalorder %s27, 1
        %s560 = scalar_select %p559, %s27, 1
        %s561 = smul.addr %s560, 128
        %s562 = smul.addr %s561, 4
        %s563 = scalar_lea.vmem %s5, %s562
        %p564 = scmp.lt.s32.totalorder %s27, 1
        %s565 = scalar_select %p564, %s27, 1
        %s566 = smul.addr %s565, 2
        %s567 = smul.addr %s566, 2
        %s568 = scalar_lea.vmem %s6, %s567
        %p569 = scmp.lt.s32.totalorder %s27, 1
        %s570 = scalar_select %p569, %s27, 1
        %s571 = smul.addr %s570, 32
        %s572 = smul.addr %s571, 4
        %s573 = scalar_lea.vmem %s7, %s572
        %p574 = scmp.lt.s32.totalorder %s27, 1
        %s575 = scalar_select %p574, %s27, 1
        %s576 = scalar_lea.vmem %s8, %s575
        %v578 = vld [vmem:[%s538] sm:$0xff]
        %v579 = vpack.c.bf16 %v578, %v578
        %v580 = vld [vmem:[%s543] sm:$0xff]
        %v581 = vld [vmem:[%s543 + $0x8] sm:$0xff]
        %v582 = vld [vmem:[%s543 + $0x10] sm:$0xff]
        %v583 = vld [vmem:[%s543 + $0x18] sm:$0xff]
        %v584 = vld [vmem:[%s543 + $0x20] sm:$0xff]
        %v585 = vld [vmem:[%s543 + $0x28] sm:$0xff]
        %v586 = vld [vmem:[%s543 + $0x30] sm:$0xff]
        %v587 = vld [vmem:[%s543 + $0x38] sm:$0xff]
        %v588 = vld [vmem:[%s543 + $0x40] sm:$0xff]
        %v589 = vld [vmem:[%s543 + $0x48] sm:$0xff]
        %v590 = vld [vmem:[%s543 + $0x50] sm:$0xff]
        %v591 = vld [vmem:[%s543 + $0x58] sm:$0xff]
        %v592 = vld [vmem:[%s543 + $0x60] sm:$0xff]
        %v593 = vld [vmem:[%s543 + $0x68] sm:$0xff]
        %v594 = vld [vmem:[%s543 + $0x70] sm:$0xff]
        %v595 = vld [vmem:[%s543 + $0x78] sm:$0xff]
        %v612 = vunpack.c.l.b16 %v580
        %v613 = vunpack.c.h.b16 %v580
        %v614 = vunpack.c.l.b16 %v581
        %v615 = vunpack.c.h.b16 %v581
        %v616 = vunpack.c.l.b16 %v582
        %v617 = vunpack.c.h.b16 %v582
        %v618 = vunpack.c.l.b16 %v583
        %v619 = vunpack.c.h.b16 %v583
        %v620 = vunpack.c.l.b16 %v584
        %v621 = vunpack.c.h.b16 %v584
        %v622 = vunpack.c.l.b16 %v585
        %v623 = vunpack.c.h.b16 %v585
        %v624 = vunpack.c.l.b16 %v586
        %v625 = vunpack.c.h.b16 %v586
        %v626 = vunpack.c.l.b16 %v587
        %v627 = vunpack.c.h.b16 %v587
        %v628 = vunpack.c.l.b16 %v588
        %v629 = vunpack.c.h.b16 %v588
        %v630 = vunpack.c.l.b16 %v589
        %v631 = vunpack.c.h.b16 %v589
        %v632 = vunpack.c.l.b16 %v590
        %v633 = vunpack.c.h.b16 %v590
        %v634 = vunpack.c.l.b16 %v591
        %v635 = vunpack.c.h.b16 %v591
        %v636 = vunpack.c.l.b16 %v592
        %v637 = vunpack.c.h.b16 %v592
        %v638 = vunpack.c.l.b16 %v593
        %v639 = vunpack.c.h.b16 %v593
        %v640 = vunpack.c.l.b16 %v594
        %v641 = vunpack.c.h.b16 %v594
        %v642 = vunpack.c.l.b16 %v595
        %v643 = vunpack.c.h.b16 %v595
        %v644 = vpack.c.b16 %v620, %v612
        %v645 = vpack.c.b16 %v621, %v613
        %v646 = vpack.c.b16 %v622, %v614
        %v647 = vpack.c.b16 %v623, %v615
        %v648 = vpack.c.b16 %v624, %v616
        %v649 = vpack.c.b16 %v625, %v617
        %v650 = vpack.c.b16 %v626, %v618
        %v651 = vpack.c.b16 %v627, %v619
        %v652 = vpack.c.b16 %v636, %v628
        %v653 = vpack.c.b16 %v637, %v629
        %v654 = vpack.c.b16 %v638, %v630
        %v655 = vpack.c.b16 %v639, %v631
        %v656 = vpack.c.b16 %v640, %v632
        %v657 = vpack.c.b16 %v641, %v633
        %v658 = vpack.c.b16 %v642, %v634
        %v659 = vpack.c.b16 %v643, %v635
        %vm676 = vcmask 261120
        %v678 = vsel %vm676, %v579, 0
        %680 = vmatpush.bf16.msra.mxu0 0
        %681 = vmatpush.bf16.msra.mxu0 0
        %682 = vmatpush.bf16.msra.mxu0 0
        %683 = vmatpush.bf16.msra.mxu0 0
        %684 = vmatpush.bf16.msra.mxu0 0
        %685 = vmatpush.bf16.msra.mxu0 0
        %686 = vmatpush.bf16.msra.mxu0 %v652
        %687 = vmatpush.bf16.msra.mxu0 %v644
        %688 = vmatmul.bf16.gmra.mxu0 %v678
        %v689 = vpop.f32.mrf.mxu0
        %v690 = vadd.f32 0.0, %v689
        %v691 = vpop.f32.mrf.mxu0
        %692 = vdwg.mxu0
        %693 = vmatpush.bf16.msra.mxu0 0
        %694 = vmatpush.bf16.msra.mxu0 0
        %695 = vmatpush.bf16.msra.mxu0 0
        %696 = vmatpush.bf16.msra.mxu0 0
        %697 = vmatpush.bf16.msra.mxu0 0
        %698 = vmatpush.bf16.msra.mxu0 0
        %699 = vmatpush.bf16.msra.mxu0 %v653
        %700 = vmatpush.bf16.msra.mxu0 %v645
        %701 = vmatmul.bf16.gmra.mxu0 %v678
        %v702 = vpop.f32.mrf.mxu0
        %v703 = vadd.f32 0.0, %v702
        %v704 = vpop.f32.mrf.mxu0
        %705 = vdwg.mxu0
        %706 = vmatpush.bf16.msra.mxu0 0
        %707 = vmatpush.bf16.msra.mxu0 0
        %708 = vmatpush.bf16.msra.mxu0 0
        %709 = vmatpush.bf16.msra.mxu0 0
        %710 = vmatpush.bf16.msra.mxu0 0
        %711 = vmatpush.bf16.msra.mxu0 0
        %712 = vmatpush.bf16.msra.mxu0 %v654
        %713 = vmatpush.bf16.msra.mxu0 %v646
        %714 = vmatmul.bf16.gmra.mxu0 %v678
        %v715 = vpop.f32.mrf.mxu0
        %v716 = vadd.f32 0.0, %v715
        %v717 = vpop.f32.mrf.mxu0
        %718 = vdwg.mxu0
        %719 = vmatpush.bf16.msra.mxu0 0
        %720 = vmatpush.bf16.msra.mxu0 0
        %721 = vmatpush.bf16.msra.mxu0 0
        %722 = vmatpush.bf16.msra.mxu0 0
        %723 = vmatpush.bf16.msra.mxu0 0
        %724 = vmatpush.bf16.msra.mxu0 0
        %725 = vmatpush.bf16.msra.mxu0 %v655
        %726 = vmatpush.bf16.msra.mxu0 %v647
        %727 = vmatmul.bf16.gmra.mxu0 %v678
        %v728 = vpop.f32.mrf.mxu0
        %v729 = vadd.f32 0.0, %v728
        %v730 = vpop.f32.mrf.mxu0
        %731 = vdwg.mxu0
        %732 = vmatpush.bf16.msra.mxu0 0
        %733 = vmatpush.bf16.msra.mxu0 0
        %734 = vmatpush.bf16.msra.mxu0 0
        %735 = vmatpush.bf16.msra.mxu0 0
        %736 = vmatpush.bf16.msra.mxu0 0
        %737 = vmatpush.bf16.msra.mxu0 0
        %738 = vmatpush.bf16.msra.mxu0 %v656
        %739 = vmatpush.bf16.msra.mxu0 %v648
        %740 = vmatmul.bf16.gmra.mxu0 %v678
        %v741 = vpop.f32.mrf.mxu0
        %v742 = vadd.f32 0.0, %v741
        %v743 = vpop.f32.mrf.mxu0
        %744 = vdwg.mxu0
        %745 = vmatpush.bf16.msra.mxu0 0
        %746 = vmatpush.bf16.msra.mxu0 0
        %747 = vmatpush.bf16.msra.mxu0 0
        %748 = vmatpush.bf16.msra.mxu0 0
        %749 = vmatpush.bf16.msra.mxu0 0
        %750 = vmatpush.bf16.msra.mxu0 0
        %751 = vmatpush.bf16.msra.mxu0 %v657
        %752 = vmatpush.bf16.msra.mxu0 %v649
        %753 = vmatmul.bf16.gmra.mxu0 %v678
        %v754 = vpop.f32.mrf.mxu0
        %v755 = vadd.f32 0.0, %v754
        %v756 = vpop.f32.mrf.mxu0
        %757 = vdwg.mxu0
        %758 = vmatpush.bf16.msra.mxu0 0
        %759 = vmatpush.bf16.msra.mxu0 0
        %760 = vmatpush.bf16.msra.mxu0 0
        %761 = vmatpush.bf16.msra.mxu0 0
        %762 = vmatpush.bf16.msra.mxu0 0
        %763 = vmatpush.bf16.msra.mxu0 0
        %764 = vmatpush.bf16.msra.mxu0 %v658
        %765 = vmatpush.bf16.msra.mxu0 %v650
        %766 = vmatmul.bf16.gmra.mxu0 %v678
        %v767 = vpop.f32.mrf.mxu0
        %v768 = vadd.f32 0.0, %v767
        %v769 = vpop.f32.mrf.mxu0
        %770 = vdwg.mxu0
        %771 = vmatpush.bf16.msra.mxu0 0
        %772 = vmatpush.bf16.msra.mxu0 0
        %773 = vmatpush.bf16.msra.mxu0 0
        %774 = vmatpush.bf16.msra.mxu0 0
        %775 = vmatpush.bf16.msra.mxu0 0
        %776 = vmatpush.bf16.msra.mxu0 0
        %777 = vmatpush.bf16.msra.mxu0 %v659
        %778 = vmatpush.bf16.msra.mxu0 %v651
        %779 = vmatmul.bf16.gmra.mxu0 %v678
        %v780 = vpop.f32.mrf.mxu0
        %v781 = vadd.f32 0.0, %v780
        %v782 = vpop.f32.mrf.mxu0
        %783 = vdwg.mxu0
        %v784 = vld [vmem:[%s548] sm:$0xff]
        %v785 = vld [vmem:[%s548 + $0x8] sm:$0xff]
        %v788 = vperm.slane %v784, 0
        %v789 = vperm.slane %v784, 2
        %v790 = vperm.slane %v784, 4
        %v791 = vperm.slane %v784, 6
        %v792 = vperm.slane %v785, 0
        %v793 = vperm.slane %v785, 2
        %v794 = vperm.slane %v785, 4
        %v795 = vperm.slane %v785, 6
        %v804 = vperm.slane %v788, 0
        %v805 = vperm.slane %v789, 0
        %v806 = vperm.slane %v790, 0
        %v807 = vperm.slane %v791, 0
        %v808 = vperm.slane %v792, 0
        %v809 = vperm.slane %v793, 0
        %v810 = vperm.slane %v794, 0
        %v811 = vperm.slane %v795, 0
        %v812 = vmul.f32 %v690, %v804
        %v813 = vmul.f32 %v703, %v805
        %v814 = vmul.f32 %v716, %v806
        %v815 = vmul.f32 %v729, %v807
        %v816 = vmul.f32 %v742, %v808
        %v817 = vmul.f32 %v755, %v809
        %v818 = vmul.f32 %v768, %v810
        %v819 = vmul.f32 %v781, %v811
        %v820 = vperm.slane %v784, 1
        %v821 = vperm.slane %v784, 3
        %v822 = vperm.slane %v784, 5
        %v823 = vperm.slane %v784, 7
        %v824 = vperm.slane %v785, 1
        %v825 = vperm.slane %v785, 3
        %v826 = vperm.slane %v785, 5
        %v827 = vperm.slane %v785, 7
        %v836 = vperm.slane %v820, 1
        %v837 = vperm.slane %v821, 1
        %v838 = vperm.slane %v822, 1
        %v839 = vperm.slane %v823, 1
        %v840 = vperm.slane %v824, 1
        %v841 = vperm.slane %v825, 1
        %v842 = vperm.slane %v826, 1
        %v843 = vperm.slane %v827, 1
        %v844 = vadd.f32 %v812, %v836
        %v845 = vadd.f32 %v813, %v837
        %v846 = vadd.f32 %v814, %v838
        %v847 = vadd.f32 %v815, %v839
        %v848 = vadd.f32 %v816, %v840
        %v849 = vadd.f32 %v817, %v841
        %v850 = vadd.f32 %v818, %v842
        %v851 = vadd.f32 %v819, %v843
        %vm852 = vcmp.gt.f32.partialorder %v844, 0.0
        %vm853 = vcmp.gt.f32.partialorder %v845, 0.0
        %vm854 = vcmp.gt.f32.partialorder %v846, 0.0
        %vm855 = vcmp.gt.f32.partialorder %v847, 0.0
        %vm856 = vcmp.gt.f32.partialorder %v848, 0.0
        %vm857 = vcmp.gt.f32.partialorder %v849, 0.0
        %vm858 = vcmp.gt.f32.partialorder %v850, 0.0
        %vm859 = vcmp.gt.f32.partialorder %v851, 0.0
        %v860 = vmul.f32 %v844, 0.01
        %v861 = vmul.f32 %v845, 0.01
        %v862 = vmul.f32 %v846, 0.01
        %v863 = vmul.f32 %v847, 0.01
        %v864 = vmul.f32 %v848, 0.01
        %v865 = vmul.f32 %v849, 0.01
        %v866 = vmul.f32 %v850, 0.01
        %v867 = vmul.f32 %v851, 0.01
        %v868 = vsel %vm852, %v844, %v860
        %v869 = vsel %vm853, %v845, %v861
        %v870 = vsel %vm854, %v846, %v862
        %v871 = vsel %vm855, %v847, %v863
        %v872 = vsel %vm856, %v848, %v864
        %v873 = vsel %vm857, %v849, %v865
        %v874 = vsel %vm858, %v850, %v866
        %v875 = vsel %vm859, %v851, %v867
        %v876 = vpack.c.bf16 %v868, %v868
        %v877 = vpack.c.bf16 %v869, %v869
        %v878 = vpack.c.bf16 %v870, %v870
        %v879 = vpack.c.bf16 %v871, %v871
        %v880 = vpack.c.bf16 %v872, %v872
        %v881 = vpack.c.bf16 %v873, %v873
        %v882 = vpack.c.bf16 %v874, %v874
        %v883 = vpack.c.bf16 %v875, %v875
        %v884 = vld [vmem:[%s553] sm:$0xff]
        %v885 = vld [vmem:[%s553 + $0x8] sm:$0xff]
        %v886 = vld [vmem:[%s553 + $0x10] sm:$0xff]
        %v887 = vld [vmem:[%s553 + $0x18] sm:$0xff]
        %v888 = vld [vmem:[%s553 + $0x20] sm:$0xff]
        %v889 = vld [vmem:[%s553 + $0x28] sm:$0xff]
        %v890 = vld [vmem:[%s553 + $0x30] sm:$0xff]
        %v891 = vld [vmem:[%s553 + $0x38] sm:$0xff]
        %v892 = vld [vmem:[%s553 + $0x40] sm:$0xff]
        %v893 = vld [vmem:[%s553 + $0x48] sm:$0xff]
        %v894 = vld [vmem:[%s553 + $0x50] sm:$0xff]
        %v895 = vld [vmem:[%s553 + $0x58] sm:$0xff]
        %v896 = vld [vmem:[%s553 + $0x60] sm:$0xff]
        %v897 = vld [vmem:[%s553 + $0x68] sm:$0xff]
        %v898 = vld [vmem:[%s553 + $0x70] sm:$0xff]
        %v899 = vld [vmem:[%s553 + $0x78] sm:$0xff]
        %v900 = vld [vmem:[%s553 + $0x80] sm:$0xff]
        %v901 = vld [vmem:[%s553 + $0x88] sm:$0xff]
        %v902 = vld [vmem:[%s553 + $0x90] sm:$0xff]
        %v903 = vld [vmem:[%s553 + $0x98] sm:$0xff]
        %v904 = vld [vmem:[%s553 + $0xa0] sm:$0xff]
        %v905 = vld [vmem:[%s553 + $0xa8] sm:$0xff]
        %v906 = vld [vmem:[%s553 + $0xb0] sm:$0xff]
        %v907 = vld [vmem:[%s553 + $0xb8] sm:$0xff]
        %v908 = vld [vmem:[%s553 + $0xc0] sm:$0xff]
        %v909 = vld [vmem:[%s553 + $0xc8] sm:$0xff]
        %v910 = vld [vmem:[%s553 + $0xd0] sm:$0xff]
        %v911 = vld [vmem:[%s553 + $0xd8] sm:$0xff]
        %v912 = vld [vmem:[%s553 + $0xe0] sm:$0xff]
        %v913 = vld [vmem:[%s553 + $0xe8] sm:$0xff]
        %v914 = vld [vmem:[%s553 + $0xf0] sm:$0xff]
        %v915 = vld [vmem:[%s553 + $0xf8] sm:$0xff]
        %v916 = vld [vmem:[%s553 + $0x100] sm:$0xff]
        %v917 = vld [vmem:[%s553 + $0x108] sm:$0xff]
        %v918 = vld [vmem:[%s553 + $0x110] sm:$0xff]
        %v919 = vld [vmem:[%s553 + $0x118] sm:$0xff]
        %v920 = vld [vmem:[%s553 + $0x120] sm:$0xff]
        %v921 = vld [vmem:[%s553 + $0x128] sm:$0xff]
        %v922 = vld [vmem:[%s553 + $0x130] sm:$0xff]
        %v923 = vld [vmem:[%s553 + $0x138] sm:$0xff]
        %v924 = vld [vmem:[%s553 + $0x140] sm:$0xff]
        %v925 = vld [vmem:[%s553 + $0x148] sm:$0xff]
        %v926 = vld [vmem:[%s553 + $0x150] sm:$0xff]
        %v927 = vld [vmem:[%s553 + $0x158] sm:$0xff]
        %v928 = vld [vmem:[%s553 + $0x160] sm:$0xff]
        %v929 = vld [vmem:[%s553 + $0x168] sm:$0xff]
        %v930 = vld [vmem:[%s553 + $0x170] sm:$0xff]
        %v931 = vld [vmem:[%s553 + $0x178] sm:$0xff]
        %v932 = vld [vmem:[%s553 + $0x180] sm:$0xff]
        %v933 = vld [vmem:[%s553 + $0x188] sm:$0xff]
        %v934 = vld [vmem:[%s553 + $0x190] sm:$0xff]
        %v935 = vld [vmem:[%s553 + $0x198] sm:$0xff]
        %v936 = vld [vmem:[%s553 + $0x1a0] sm:$0xff]
        %v937 = vld [vmem:[%s553 + $0x1a8] sm:$0xff]
        %v938 = vld [vmem:[%s553 + $0x1b0] sm:$0xff]
        %v939 = vld [vmem:[%s553 + $0x1b8] sm:$0xff]
        %v940 = vld [vmem:[%s553 + $0x1c0] sm:$0xff]
        %v941 = vld [vmem:[%s553 + $0x1c8] sm:$0xff]
        %v942 = vld [vmem:[%s553 + $0x1d0] sm:$0xff]
        %v943 = vld [vmem:[%s553 + $0x1d8] sm:$0xff]
        %v944 = vld [vmem:[%s553 + $0x1e0] sm:$0xff]
        %v945 = vld [vmem:[%s553 + $0x1e8] sm:$0xff]
        %v946 = vld [vmem:[%s553 + $0x1f0] sm:$0xff]
        %v947 = vld [vmem:[%s553 + $0x1f8] sm:$0xff]
        %v948 = vld [vmem:[%s553 + $0x200] sm:$0xff]
        %v949 = vld [vmem:[%s553 + $0x208] sm:$0xff]
        %v950 = vld [vmem:[%s553 + $0x210] sm:$0xff]
        %v951 = vld [vmem:[%s553 + $0x218] sm:$0xff]
        %v952 = vld [vmem:[%s553 + $0x220] sm:$0xff]
        %v953 = vld [vmem:[%s553 + $0x228] sm:$0xff]
        %v954 = vld [vmem:[%s553 + $0x230] sm:$0xff]
        %v955 = vld [vmem:[%s553 + $0x238] sm:$0xff]
        %v956 = vld [vmem:[%s553 + $0x240] sm:$0xff]
        %v957 = vld [vmem:[%s553 + $0x248] sm:$0xff]
        %v958 = vld [vmem:[%s553 + $0x250] sm:$0xff]
        %v959 = vld [vmem:[%s553 + $0x258] sm:$0xff]
        %v960 = vld [vmem:[%s553 + $0x260] sm:$0xff]
        %v961 = vld [vmem:[%s553 + $0x268] sm:$0xff]
        %v962 = vld [vmem:[%s553 + $0x270] sm:$0xff]
        %v963 = vld [vmem:[%s553 + $0x278] sm:$0xff]
        %v964 = vld [vmem:[%s553 + $0x280] sm:$0xff]
        %v965 = vld [vmem:[%s553 + $0x288] sm:$0xff]
        %v966 = vld [vmem:[%s553 + $0x290] sm:$0xff]
        %v967 = vld [vmem:[%s553 + $0x298] sm:$0xff]
        %v968 = vld [vmem:[%s553 + $0x2a0] sm:$0xff]
        %v969 = vld [vmem:[%s553 + $0x2a8] sm:$0xff]
        %v970 = vld [vmem:[%s553 + $0x2b0] sm:$0xff]
        %v971 = vld [vmem:[%s553 + $0x2b8] sm:$0xff]
        %v972 = vld [vmem:[%s553 + $0x2c0] sm:$0xff]
        %v973 = vld [vmem:[%s553 + $0x2c8] sm:$0xff]
        %v974 = vld [vmem:[%s553 + $0x2d0] sm:$0xff]
        %v975 = vld [vmem:[%s553 + $0x2d8] sm:$0xff]
        %v976 = vld [vmem:[%s553 + $0x2e0] sm:$0xff]
        %v977 = vld [vmem:[%s553 + $0x2e8] sm:$0xff]
        %v978 = vld [vmem:[%s553 + $0x2f0] sm:$0xff]
        %v979 = vld [vmem:[%s553 + $0x2f8] sm:$0xff]
        %v980 = vld [vmem:[%s553 + $0x300] sm:$0xff]
        %v981 = vld [vmem:[%s553 + $0x308] sm:$0xff]
        %v982 = vld [vmem:[%s553 + $0x310] sm:$0xff]
        %v983 = vld [vmem:[%s553 + $0x318] sm:$0xff]
        %v984 = vld [vmem:[%s553 + $0x320] sm:$0xff]
        %v985 = vld [vmem:[%s553 + $0x328] sm:$0xff]
        %v986 = vld [vmem:[%s553 + $0x330] sm:$0xff]
        %v987 = vld [vmem:[%s553 + $0x338] sm:$0xff]
        %v988 = vld [vmem:[%s553 + $0x340] sm:$0xff]
        %v989 = vld [vmem:[%s553 + $0x348] sm:$0xff]
        %v990 = vld [vmem:[%s553 + $0x350] sm:$0xff]
        %v991 = vld [vmem:[%s553 + $0x358] sm:$0xff]
        %v992 = vld [vmem:[%s553 + $0x360] sm:$0xff]
        %v993 = vld [vmem:[%s553 + $0x368] sm:$0xff]
        %v994 = vld [vmem:[%s553 + $0x370] sm:$0xff]
        %v995 = vld [vmem:[%s553 + $0x378] sm:$0xff]
        %v996 = vld [vmem:[%s553 + $0x380] sm:$0xff]
        %v997 = vld [vmem:[%s553 + $0x388] sm:$0xff]
        %v998 = vld [vmem:[%s553 + $0x390] sm:$0xff]
        %v999 = vld [vmem:[%s553 + $0x398] sm:$0xff]
        %v1000 = vld [vmem:[%s553 + $0x3a0] sm:$0xff]
        %v1001 = vld [vmem:[%s553 + $0x3a8] sm:$0xff]
        %v1002 = vld [vmem:[%s553 + $0x3b0] sm:$0xff]
        %v1003 = vld [vmem:[%s553 + $0x3b8] sm:$0xff]
        %v1004 = vld [vmem:[%s553 + $0x3c0] sm:$0xff]
        %v1005 = vld [vmem:[%s553 + $0x3c8] sm:$0xff]
        %v1006 = vld [vmem:[%s553 + $0x3d0] sm:$0xff]
        %v1007 = vld [vmem:[%s553 + $0x3d8] sm:$0xff]
        %v1008 = vld [vmem:[%s553 + $0x3e0] sm:$0xff]
        %v1009 = vld [vmem:[%s553 + $0x3e8] sm:$0xff]
        %v1010 = vld [vmem:[%s553 + $0x3f0] sm:$0xff]
        %v1011 = vld [vmem:[%s553 + $0x3f8] sm:$0xff]
        %v1012 = vld [vmem:[%s553 + $0x400] sm:$0xff]
        %v1013 = vld [vmem:[%s553 + $0x408] sm:$0xff]
        %v1014 = vld [vmem:[%s553 + $0x410] sm:$0xff]
        %v1015 = vld [vmem:[%s553 + $0x418] sm:$0xff]
        %v1016 = vld [vmem:[%s553 + $0x420] sm:$0xff]
        %v1017 = vld [vmem:[%s553 + $0x428] sm:$0xff]
        %v1018 = vld [vmem:[%s553 + $0x430] sm:$0xff]
        %v1019 = vld [vmem:[%s553 + $0x438] sm:$0xff]
        %v1020 = vld [vmem:[%s553 + $0x440] sm:$0xff]
        %v1021 = vld [vmem:[%s553 + $0x448] sm:$0xff]
        %v1022 = vld [vmem:[%s553 + $0x450] sm:$0xff]
        %v1023 = vld [vmem:[%s553 + $0x458] sm:$0xff]
        %v1024 = vld [vmem:[%s553 + $0x460] sm:$0xff]
        %v1025 = vld [vmem:[%s553 + $0x468] sm:$0xff]
        %v1026 = vld [vmem:[%s553 + $0x470] sm:$0xff]
        %v1027 = vld [vmem:[%s553 + $0x478] sm:$0xff]
        %v1028 = vld [vmem:[%s553 + $0x480] sm:$0xff]
        %v1029 = vld [vmem:[%s553 + $0x488] sm:$0xff]
        %v1030 = vld [vmem:[%s553 + $0x490] sm:$0xff]
        %v1031 = vld [vmem:[%s553 + $0x498] sm:$0xff]
        %v1032 = vld [vmem:[%s553 + $0x4a0] sm:$0xff]
        %v1033 = vld [vmem:[%s553 + $0x4a8] sm:$0xff]
        %v1034 = vld [vmem:[%s553 + $0x4b0] sm:$0xff]
        %v1035 = vld [vmem:[%s553 + $0x4b8] sm:$0xff]
        %v1036 = vld [vmem:[%s553 + $0x4c0] sm:$0xff]
        %v1037 = vld [vmem:[%s553 + $0x4c8] sm:$0xff]
        %v1038 = vld [vmem:[%s553 + $0x4d0] sm:$0xff]
        %v1039 = vld [vmem:[%s553 + $0x4d8] sm:$0xff]
        %v1040 = vld [vmem:[%s553 + $0x4e0] sm:$0xff]
        %v1041 = vld [vmem:[%s553 + $0x4e8] sm:$0xff]
        %v1042 = vld [vmem:[%s553 + $0x4f0] sm:$0xff]
        %v1043 = vld [vmem:[%s553 + $0x4f8] sm:$0xff]
        %v1044 = vld [vmem:[%s553 + $0x500] sm:$0xff]
        %v1045 = vld [vmem:[%s553 + $0x508] sm:$0xff]
        %v1046 = vld [vmem:[%s553 + $0x510] sm:$0xff]
        %v1047 = vld [vmem:[%s553 + $0x518] sm:$0xff]
        %v1048 = vld [vmem:[%s553 + $0x520] sm:$0xff]
        %v1049 = vld [vmem:[%s553 + $0x528] sm:$0xff]
        %v1050 = vld [vmem:[%s553 + $0x530] sm:$0xff]
        %v1051 = vld [vmem:[%s553 + $0x538] sm:$0xff]
        %v1052 = vld [vmem:[%s553 + $0x540] sm:$0xff]
        %v1053 = vld [vmem:[%s553 + $0x548] sm:$0xff]
        %v1054 = vld [vmem:[%s553 + $0x550] sm:$0xff]
        %v1055 = vld [vmem:[%s553 + $0x558] sm:$0xff]
        %v1056 = vld [vmem:[%s553 + $0x560] sm:$0xff]
        %v1057 = vld [vmem:[%s553 + $0x568] sm:$0xff]
        %v1058 = vld [vmem:[%s553 + $0x570] sm:$0xff]
        %v1059 = vld [vmem:[%s553 + $0x578] sm:$0xff]
        %v1060 = vld [vmem:[%s553 + $0x580] sm:$0xff]
        %v1061 = vld [vmem:[%s553 + $0x588] sm:$0xff]
        %v1062 = vld [vmem:[%s553 + $0x590] sm:$0xff]
        %v1063 = vld [vmem:[%s553 + $0x598] sm:$0xff]
        %v1064 = vld [vmem:[%s553 + $0x5a0] sm:$0xff]
        %v1065 = vld [vmem:[%s553 + $0x5a8] sm:$0xff]
        %v1066 = vld [vmem:[%s553 + $0x5b0] sm:$0xff]
        %v1067 = vld [vmem:[%s553 + $0x5b8] sm:$0xff]
        %v1068 = vld [vmem:[%s553 + $0x5c0] sm:$0xff]
        %v1069 = vld [vmem:[%s553 + $0x5c8] sm:$0xff]
        %v1070 = vld [vmem:[%s553 + $0x5d0] sm:$0xff]
        %v1071 = vld [vmem:[%s553 + $0x5d8] sm:$0xff]
        %v1072 = vld [vmem:[%s553 + $0x5e0] sm:$0xff]
        %v1073 = vld [vmem:[%s553 + $0x5e8] sm:$0xff]
        %v1074 = vld [vmem:[%s553 + $0x5f0] sm:$0xff]
        %v1075 = vld [vmem:[%s553 + $0x5f8] sm:$0xff]
        %v1076 = vld [vmem:[%s553 + $0x600] sm:$0xff]
        %v1077 = vld [vmem:[%s553 + $0x608] sm:$0xff]
        %v1078 = vld [vmem:[%s553 + $0x610] sm:$0xff]
        %v1079 = vld [vmem:[%s553 + $0x618] sm:$0xff]
        %v1080 = vld [vmem:[%s553 + $0x620] sm:$0xff]
        %v1081 = vld [vmem:[%s553 + $0x628] sm:$0xff]
        %v1082 = vld [vmem:[%s553 + $0x630] sm:$0xff]
        %v1083 = vld [vmem:[%s553 + $0x638] sm:$0xff]
        %v1084 = vld [vmem:[%s553 + $0x640] sm:$0xff]
        %v1085 = vld [vmem:[%s553 + $0x648] sm:$0xff]
        %v1086 = vld [vmem:[%s553 + $0x650] sm:$0xff]
        %v1087 = vld [vmem:[%s553 + $0x658] sm:$0xff]
        %v1088 = vld [vmem:[%s553 + $0x660] sm:$0xff]
        %v1089 = vld [vmem:[%s553 + $0x668] sm:$0xff]
        %v1090 = vld [vmem:[%s553 + $0x670] sm:$0xff]
        %v1091 = vld [vmem:[%s553 + $0x678] sm:$0xff]
        %v1092 = vld [vmem:[%s553 + $0x680] sm:$0xff]
        %v1093 = vld [vmem:[%s553 + $0x688] sm:$0xff]
        %v1094 = vld [vmem:[%s553 + $0x690] sm:$0xff]
        %v1095 = vld [vmem:[%s553 + $0x698] sm:$0xff]
        %v1096 = vld [vmem:[%s553 + $0x6a0] sm:$0xff]
        %v1097 = vld [vmem:[%s553 + $0x6a8] sm:$0xff]
        %v1098 = vld [vmem:[%s553 + $0x6b0] sm:$0xff]
        %v1099 = vld [vmem:[%s553 + $0x6b8] sm:$0xff]
        %v1100 = vld [vmem:[%s553 + $0x6c0] sm:$0xff]
        %v1101 = vld [vmem:[%s553 + $0x6c8] sm:$0xff]
        %v1102 = vld [vmem:[%s553 + $0x6d0] sm:$0xff]
        %v1103 = vld [vmem:[%s553 + $0x6d8] sm:$0xff]
        %v1104 = vld [vmem:[%s553 + $0x6e0] sm:$0xff]
        %v1105 = vld [vmem:[%s553 + $0x6e8] sm:$0xff]
        %v1106 = vld [vmem:[%s553 + $0x6f0] sm:$0xff]
        %v1107 = vld [vmem:[%s553 + $0x6f8] sm:$0xff]
        %v1108 = vld [vmem:[%s553 + $0x700] sm:$0xff]
        %v1109 = vld [vmem:[%s553 + $0x708] sm:$0xff]
        %v1110 = vld [vmem:[%s553 + $0x710] sm:$0xff]
        %v1111 = vld [vmem:[%s553 + $0x718] sm:$0xff]
        %v1112 = vld [vmem:[%s553 + $0x720] sm:$0xff]
        %v1113 = vld [vmem:[%s553 + $0x728] sm:$0xff]
        %v1114 = vld [vmem:[%s553 + $0x730] sm:$0xff]
        %v1115 = vld [vmem:[%s553 + $0x738] sm:$0xff]
        %v1116 = vld [vmem:[%s553 + $0x740] sm:$0xff]
        %v1117 = vld [vmem:[%s553 + $0x748] sm:$0xff]
        %v1118 = vld [vmem:[%s553 + $0x750] sm:$0xff]
        %v1119 = vld [vmem:[%s553 + $0x758] sm:$0xff]
        %v1120 = vld [vmem:[%s553 + $0x760] sm:$0xff]
        %v1121 = vld [vmem:[%s553 + $0x768] sm:$0xff]
        %v1122 = vld [vmem:[%s553 + $0x770] sm:$0xff]
        %v1123 = vld [vmem:[%s553 + $0x778] sm:$0xff]
        %v1124 = vld [vmem:[%s553 + $0x780] sm:$0xff]
        %v1125 = vld [vmem:[%s553 + $0x788] sm:$0xff]
        %v1126 = vld [vmem:[%s553 + $0x790] sm:$0xff]
        %v1127 = vld [vmem:[%s553 + $0x798] sm:$0xff]
        %v1128 = vld [vmem:[%s553 + $0x7a0] sm:$0xff]
        %v1129 = vld [vmem:[%s553 + $0x7a8] sm:$0xff]
        %v1130 = vld [vmem:[%s553 + $0x7b0] sm:$0xff]
        %v1131 = vld [vmem:[%s553 + $0x7b8] sm:$0xff]
        %v1132 = vld [vmem:[%s553 + $0x7c0] sm:$0xff]
        %v1133 = vld [vmem:[%s553 + $0x7c8] sm:$0xff]
        %v1134 = vld [vmem:[%s553 + $0x7d0] sm:$0xff]
        %v1135 = vld [vmem:[%s553 + $0x7d8] sm:$0xff]
        %v1136 = vld [vmem:[%s553 + $0x7e0] sm:$0xff]
        %v1137 = vld [vmem:[%s553 + $0x7e8] sm:$0xff]
        %v1138 = vld [vmem:[%s553 + $0x7f0] sm:$0xff]
        %v1139 = vld [vmem:[%s553 + $0x7f8] sm:$0xff]
        %v1396 = vunpack.c.l.b16 %v884
        %v1397 = vunpack.c.h.b16 %v884
        %v1398 = vunpack.c.l.b16 %v885
        %v1399 = vunpack.c.h.b16 %v885
        %v1400 = vunpack.c.l.b16 %v886
        %v1401 = vunpack.c.h.b16 %v886
        %v1402 = vunpack.c.l.b16 %v887
        %v1403 = vunpack.c.h.b16 %v887
        %v1404 = vunpack.c.l.b16 %v888
        %v1405 = vunpack.c.h.b16 %v888
        %v1406 = vunpack.c.l.b16 %v889
        %v1407 = vunpack.c.h.b16 %v889
        %v1408 = vunpack.c.l.b16 %v890
        %v1409 = vunpack.c.h.b16 %v890
        %v1410 = vunpack.c.l.b16 %v891
        %v1411 = vunpack.c.h.b16 %v891
        %v1412 = vunpack.c.l.b16 %v892
        %v1413 = vunpack.c.h.b16 %v892
        %v1414 = vunpack.c.l.b16 %v893
        %v1415 = vunpack.c.h.b16 %v893
        %v1416 = vunpack.c.l.b16 %v894
        %v1417 = vunpack.c.h.b16 %v894
        %v1418 = vunpack.c.l.b16 %v895
        %v1419 = vunpack.c.h.b16 %v895
        %v1420 = vunpack.c.l.b16 %v896
        %v1421 = vunpack.c.h.b16 %v896
        %v1422 = vunpack.c.l.b16 %v897
        %v1423 = vunpack.c.h.b16 %v897
        %v1424 = vunpack.c.l.b16 %v898
        %v1425 = vunpack.c.h.b16 %v898
        %v1426 = vunpack.c.l.b16 %v899
        %v1427 = vunpack.c.h.b16 %v899
        %v1428 = vunpack.c.l.b16 %v900
        %v1429 = vunpack.c.h.b16 %v900
        %v1430 = vunpack.c.l.b16 %v901
        %v1431 = vunpack.c.h.b16 %v901
        %v1432 = vunpack.c.l.b16 %v902
        %v1433 = vunpack.c.h.b16 %v902
        %v1434 = vunpack.c.l.b16 %v903
        %v1435 = vunpack.c.h.b16 %v903
        %v1436 = vunpack.c.l.b16 %v904
        %v1437 = vunpack.c.h.b16 %v904
        %v1438 = vunpack.c.l.b16 %v905
        %v1439 = vunpack.c.h.b16 %v905
        %v1440 = vunpack.c.l.b16 %v906
        %v1441 = vunpack.c.h.b16 %v906
        %v1442 = vunpack.c.l.b16 %v907
        %v1443 = vunpack.c.h.b16 %v907
        %v1444 = vunpack.c.l.b16 %v908
        %v1445 = vunpack.c.h.b16 %v908
        %v1446 = vunpack.c.l.b16 %v909
        %v1447 = vunpack.c.h.b16 %v909
        %v1448 = vunpack.c.l.b16 %v910
        %v1449 = vunpack.c.h.b16 %v910
        %v1450 = vunpack.c.l.b16 %v911
        %v1451 = vunpack.c.h.b16 %v911
        %v1452 = vunpack.c.l.b16 %v912
        %v1453 = vunpack.c.h.b16 %v912
        %v1454 = vunpack.c.l.b16 %v913
        %v1455 = vunpack.c.h.b16 %v913
        %v1456 = vunpack.c.l.b16 %v914
        %v1457 = vunpack.c.h.b16 %v914
        %v1458 = vunpack.c.l.b16 %v915
        %v1459 = vunpack.c.h.b16 %v915
        %v1460 = vunpack.c.l.b16 %v916
        %v1461 = vunpack.c.h.b16 %v916
        %v1462 = vunpack.c.l.b16 %v917
        %v1463 = vunpack.c.h.b16 %v917
        %v1464 = vunpack.c.l.b16 %v918
        %v1465 = vunpack.c.h.b16 %v918
        %v1466 = vunpack.c.l.b16 %v919
        %v1467 = vunpack.c.h.b16 %v919
        %v1468 = vunpack.c.l.b16 %v920
        %v1469 = vunpack.c.h.b16 %v920
        %v1470 = vunpack.c.l.b16 %v921
        %v1471 = vunpack.c.h.b16 %v921
        %v1472 = vunpack.c.l.b16 %v922
        %v1473 = vunpack.c.h.b16 %v922
        %v1474 = vunpack.c.l.b16 %v923
        %v1475 = vunpack.c.h.b16 %v923
        %v1476 = vunpack.c.l.b16 %v924
        %v1477 = vunpack.c.h.b16 %v924
        %v1478 = vunpack.c.l.b16 %v925
        %v1479 = vunpack.c.h.b16 %v925
        %v1480 = vunpack.c.l.b16 %v926
        %v1481 = vunpack.c.h.b16 %v926
        %v1482 = vunpack.c.l.b16 %v927
        %v1483 = vunpack.c.h.b16 %v927
        %v1484 = vunpack.c.l.b16 %v928
        %v1485 = vunpack.c.h.b16 %v928
        %v1486 = vunpack.c.l.b16 %v929
        %v1487 = vunpack.c.h.b16 %v929
        %v1488 = vunpack.c.l.b16 %v930
        %v1489 = vunpack.c.h.b16 %v930
        %v1490 = vunpack.c.l.b16 %v931
        %v1491 = vunpack.c.h.b16 %v931
        %v1492 = vunpack.c.l.b16 %v932
        %v1493 = vunpack.c.h.b16 %v932
        %v1494 = vunpack.c.l.b16 %v933
        %v1495 = vunpack.c.h.b16 %v933
        %v1496 = vunpack.c.l.b16 %v934
        %v1497 = vunpack.c.h.b16 %v934
        %v1498 = vunpack.c.l.b16 %v935
        %v1499 = vunpack.c.h.b16 %v935
        %v1500 = vunpack.c.l.b16 %v936
        %v1501 = vunpack.c.h.b16 %v936
        %v1502 = vunpack.c.l.b16 %v937
        %v1503 = vunpack.c.h.b16 %v937
        %v1504 = vunpack.c.l.b16 %v938
        %v1505 = vunpack.c.h.b16 %v938
        %v1506 = vunpack.c.l.b16 %v939
        %v1507 = vunpack.c.h.b16 %v939
        %v1508 = vunpack.c.l.b16 %v940
        %v1509 = vunpack.c.h.b16 %v940
        %v1510 = vunpack.c.l.b16 %v941
        %v1511 = vunpack.c.h.b16 %v941
        %v1512 = vunpack.c.l.b16 %v942
        %v1513 = vunpack.c.h.b16 %v942
        %v1514 = vunpack.c.l.b16 %v943
        %v1515 = vunpack.c.h.b16 %v943
        %v1516 = vunpack.c.l.b16 %v944
        %v1517 = vunpack.c.h.b16 %v944
        %v1518 = vunpack.c.l.b16 %v945
        %v1519 = vunpack.c.h.b16 %v945
        %v1520 = vunpack.c.l.b16 %v946
        %v1521 = vunpack.c.h.b16 %v946
        %v1522 = vunpack.c.l.b16 %v947
        %v1523 = vunpack.c.h.b16 %v947
        %v1524 = vunpack.c.l.b16 %v948
        %v1525 = vunpack.c.h.b16 %v948
        %v1526 = vunpack.c.l.b16 %v949
        %v1527 = vunpack.c.h.b16 %v949
        %v1528 = vunpack.c.l.b16 %v950
        %v1529 = vunpack.c.h.b16 %v950
        %v1530 = vunpack.c.l.b16 %v951
        %v1531 = vunpack.c.h.b16 %v951
        %v1532 = vunpack.c.l.b16 %v952
        %v1533 = vunpack.c.h.b16 %v952
        %v1534 = vunpack.c.l.b16 %v953
        %v1535 = vunpack.c.h.b16 %v953
        %v1536 = vunpack.c.l.b16 %v954
        %v1537 = vunpack.c.h.b16 %v954
        %v1538 = vunpack.c.l.b16 %v955
        %v1539 = vunpack.c.h.b16 %v955
        %v1540 = vunpack.c.l.b16 %v956
        %v1541 = vunpack.c.h.b16 %v956
        %v1542 = vunpack.c.l.b16 %v957
        %v1543 = vunpack.c.h.b16 %v957
        %v1544 = vunpack.c.l.b16 %v958
        %v1545 = vunpack.c.h.b16 %v958
        %v1546 = vunpack.c.l.b16 %v959
        %v1547 = vunpack.c.h.b16 %v959
        %v1548 = vunpack.c.l.b16 %v960
        %v1549 = vunpack.c.h.b16 %v960
        %v1550 = vunpack.c.l.b16 %v961
        %v1551 = vunpack.c.h.b16 %v961
        %v1552 = vunpack.c.l.b16 %v962
        %v1553 = vunpack.c.h.b16 %v962
        %v1554 = vunpack.c.l.b16 %v963
        %v1555 = vunpack.c.h.b16 %v963
        %v1556 = vunpack.c.l.b16 %v964
        %v1557 = vunpack.c.h.b16 %v964
        %v1558 = vunpack.c.l.b16 %v965
        %v1559 = vunpack.c.h.b16 %v965
        %v1560 = vunpack.c.l.b16 %v966
        %v1561 = vunpack.c.h.b16 %v966
        %v1562 = vunpack.c.l.b16 %v967
        %v1563 = vunpack.c.h.b16 %v967
        %v1564 = vunpack.c.l.b16 %v968
        %v1565 = vunpack.c.h.b16 %v968
        %v1566 = vunpack.c.l.b16 %v969
        %v1567 = vunpack.c.h.b16 %v969
        %v1568 = vunpack.c.l.b16 %v970
        %v1569 = vunpack.c.h.b16 %v970
        %v1570 = vunpack.c.l.b16 %v971
        %v1571 = vunpack.c.h.b16 %v971
        %v1572 = vunpack.c.l.b16 %v972
        %v1573 = vunpack.c.h.b16 %v972
        %v1574 = vunpack.c.l.b16 %v973
        %v1575 = vunpack.c.h.b16 %v973
        %v1576 = vunpack.c.l.b16 %v974
        %v1577 = vunpack.c.h.b16 %v974
        %v1578 = vunpack.c.l.b16 %v975
        %v1579 = vunpack.c.h.b16 %v975
        %v1580 = vunpack.c.l.b16 %v976
        %v1581 = vunpack.c.h.b16 %v976
        %v1582 = vunpack.c.l.b16 %v977
        %v1583 = vunpack.c.h.b16 %v977
        %v1584 = vunpack.c.l.b16 %v978
        %v1585 = vunpack.c.h.b16 %v978
        %v1586 = vunpack.c.l.b16 %v979
        %v1587 = vunpack.c.h.b16 %v979
        %v1588 = vunpack.c.l.b16 %v980
        %v1589 = vunpack.c.h.b16 %v980
        %v1590 = vunpack.c.l.b16 %v981
        %v1591 = vunpack.c.h.b16 %v981
        %v1592 = vunpack.c.l.b16 %v982
        %v1593 = vunpack.c.h.b16 %v982
        %v1594 = vunpack.c.l.b16 %v983
        %v1595 = vunpack.c.h.b16 %v983
        %v1596 = vunpack.c.l.b16 %v984
        %v1597 = vunpack.c.h.b16 %v984
        %v1598 = vunpack.c.l.b16 %v985
        %v1599 = vunpack.c.h.b16 %v985
        %v1600 = vunpack.c.l.b16 %v986
        %v1601 = vunpack.c.h.b16 %v986
        %v1602 = vunpack.c.l.b16 %v987
        %v1603 = vunpack.c.h.b16 %v987
        %v1604 = vunpack.c.l.b16 %v988
        %v1605 = vunpack.c.h.b16 %v988
        %v1606 = vunpack.c.l.b16 %v989
        %v1607 = vunpack.c.h.b16 %v989
        %v1608 = vunpack.c.l.b16 %v990
        %v1609 = vunpack.c.h.b16 %v990
        %v1610 = vunpack.c.l.b16 %v991
        %v1611 = vunpack.c.h.b16 %v991
        %v1612 = vunpack.c.l.b16 %v992
        %v1613 = vunpack.c.h.b16 %v992
        %v1614 = vunpack.c.l.b16 %v993
        %v1615 = vunpack.c.h.b16 %v993
        %v1616 = vunpack.c.l.b16 %v994
        %v1617 = vunpack.c.h.b16 %v994
        %v1618 = vunpack.c.l.b16 %v995
        %v1619 = vunpack.c.h.b16 %v995
        %v1620 = vunpack.c.l.b16 %v996
        %v1621 = vunpack.c.h.b16 %v996
        %v1622 = vunpack.c.l.b16 %v997
        %v1623 = vunpack.c.h.b16 %v997
        %v1624 = vunpack.c.l.b16 %v998
        %v1625 = vunpack.c.h.b16 %v998
        %v1626 = vunpack.c.l.b16 %v999
        %v1627 = vunpack.c.h.b16 %v999
        %v1628 = vunpack.c.l.b16 %v1000
        %v1629 = vunpack.c.h.b16 %v1000
        %v1630 = vunpack.c.l.b16 %v1001
        %v1631 = vunpack.c.h.b16 %v1001
        %v1632 = vunpack.c.l.b16 %v1002
        %v1633 = vunpack.c.h.b16 %v1002
        %v1634 = vunpack.c.l.b16 %v1003
        %v1635 = vunpack.c.h.b16 %v1003
        %v1636 = vunpack.c.l.b16 %v1004
        %v1637 = vunpack.c.h.b16 %v1004
        %v1638 = vunpack.c.l.b16 %v1005
        %v1639 = vunpack.c.h.b16 %v1005
        %v1640 = vunpack.c.l.b16 %v1006
        %v1641 = vunpack.c.h.b16 %v1006
        %v1642 = vunpack.c.l.b16 %v1007
        %v1643 = vunpack.c.h.b16 %v1007
        %v1644 = vunpack.c.l.b16 %v1008
        %v1645 = vunpack.c.h.b16 %v1008
        %v1646 = vunpack.c.l.b16 %v1009
        %v1647 = vunpack.c.h.b16 %v1009
        %v1648 = vunpack.c.l.b16 %v1010
        %v1649 = vunpack.c.h.b16 %v1010
        %v1650 = vunpack.c.l.b16 %v1011
        %v1651 = vunpack.c.h.b16 %v1011
        %v1652 = vunpack.c.l.b16 %v1012
        %v1653 = vunpack.c.h.b16 %v1012
        %v1654 = vunpack.c.l.b16 %v1013
        %v1655 = vunpack.c.h.b16 %v1013
        %v1656 = vunpack.c.l.b16 %v1014
        %v1657 = vunpack.c.h.b16 %v1014
        %v1658 = vunpack.c.l.b16 %v1015
        %v1659 = vunpack.c.h.b16 %v1015
        %v1660 = vunpack.c.l.b16 %v1016
        %v1661 = vunpack.c.h.b16 %v1016
        %v1662 = vunpack.c.l.b16 %v1017
        %v1663 = vunpack.c.h.b16 %v1017
        %v1664 = vunpack.c.l.b16 %v1018
        %v1665 = vunpack.c.h.b16 %v1018
        %v1666 = vunpack.c.l.b16 %v1019
        %v1667 = vunpack.c.h.b16 %v1019
        %v1668 = vunpack.c.l.b16 %v1020
        %v1669 = vunpack.c.h.b16 %v1020
        %v1670 = vunpack.c.l.b16 %v1021
        %v1671 = vunpack.c.h.b16 %v1021
        %v1672 = vunpack.c.l.b16 %v1022
        %v1673 = vunpack.c.h.b16 %v1022
        %v1674 = vunpack.c.l.b16 %v1023
        %v1675 = vunpack.c.h.b16 %v1023
        %v1676 = vunpack.c.l.b16 %v1024
        %v1677 = vunpack.c.h.b16 %v1024
        %v1678 = vunpack.c.l.b16 %v1025
        %v1679 = vunpack.c.h.b16 %v1025
        %v1680 = vunpack.c.l.b16 %v1026
        %v1681 = vunpack.c.h.b16 %v1026
        %v1682 = vunpack.c.l.b16 %v1027
        %v1683 = vunpack.c.h.b16 %v1027
        %v1684 = vunpack.c.l.b16 %v1028
        %v1685 = vunpack.c.h.b16 %v1028
        %v1686 = vunpack.c.l.b16 %v1029
        %v1687 = vunpack.c.h.b16 %v1029
        %v1688 = vunpack.c.l.b16 %v1030
        %v1689 = vunpack.c.h.b16 %v1030
        %v1690 = vunpack.c.l.b16 %v1031
        %v1691 = vunpack.c.h.b16 %v1031
        %v1692 = vunpack.c.l.b16 %v1032
        %v1693 = vunpack.c.h.b16 %v1032
        %v1694 = vunpack.c.l.b16 %v1033
        %v1695 = vunpack.c.h.b16 %v1033
        %v1696 = vunpack.c.l.b16 %v1034
        %v1697 = vunpack.c.h.b16 %v1034
        %v1698 = vunpack.c.l.b16 %v1035
        %v1699 = vunpack.c.h.b16 %v1035
        %v1700 = vunpack.c.l.b16 %v1036
        %v1701 = vunpack.c.h.b16 %v1036
        %v1702 = vunpack.c.l.b16 %v1037
        %v1703 = vunpack.c.h.b16 %v1037
        %v1704 = vunpack.c.l.b16 %v1038
        %v1705 = vunpack.c.h.b16 %v1038
        %v1706 = vunpack.c.l.b16 %v1039
        %v1707 = vunpack.c.h.b16 %v1039
        %v1708 = vunpack.c.l.b16 %v1040
        %v1709 = vunpack.c.h.b16 %v1040
        %v1710 = vunpack.c.l.b16 %v1041
        %v1711 = vunpack.c.h.b16 %v1041
        %v1712 = vunpack.c.l.b16 %v1042
        %v1713 = vunpack.c.h.b16 %v1042
        %v1714 = vunpack.c.l.b16 %v1043
        %v1715 = vunpack.c.h.b16 %v1043
        %v1716 = vunpack.c.l.b16 %v1044
        %v1717 = vunpack.c.h.b16 %v1044
        %v1718 = vunpack.c.l.b16 %v1045
        %v1719 = vunpack.c.h.b16 %v1045
        %v1720 = vunpack.c.l.b16 %v1046
        %v1721 = vunpack.c.h.b16 %v1046
        %v1722 = vunpack.c.l.b16 %v1047
        %v1723 = vunpack.c.h.b16 %v1047
        %v1724 = vunpack.c.l.b16 %v1048
        %v1725 = vunpack.c.h.b16 %v1048
        %v1726 = vunpack.c.l.b16 %v1049
        %v1727 = vunpack.c.h.b16 %v1049
        %v1728 = vunpack.c.l.b16 %v1050
        %v1729 = vunpack.c.h.b16 %v1050
        %v1730 = vunpack.c.l.b16 %v1051
        %v1731 = vunpack.c.h.b16 %v1051
        %v1732 = vunpack.c.l.b16 %v1052
        %v1733 = vunpack.c.h.b16 %v1052
        %v1734 = vunpack.c.l.b16 %v1053
        %v1735 = vunpack.c.h.b16 %v1053
        %v1736 = vunpack.c.l.b16 %v1054
        %v1737 = vunpack.c.h.b16 %v1054
        %v1738 = vunpack.c.l.b16 %v1055
        %v1739 = vunpack.c.h.b16 %v1055
        %v1740 = vunpack.c.l.b16 %v1056
        %v1741 = vunpack.c.h.b16 %v1056
        %v1742 = vunpack.c.l.b16 %v1057
        %v1743 = vunpack.c.h.b16 %v1057
        %v1744 = vunpack.c.l.b16 %v1058
        %v1745 = vunpack.c.h.b16 %v1058
        %v1746 = vunpack.c.l.b16 %v1059
        %v1747 = vunpack.c.h.b16 %v1059
        %v1748 = vunpack.c.l.b16 %v1060
        %v1749 = vunpack.c.h.b16 %v1060
        %v1750 = vunpack.c.l.b16 %v1061
        %v1751 = vunpack.c.h.b16 %v1061
        %v1752 = vunpack.c.l.b16 %v1062
        %v1753 = vunpack.c.h.b16 %v1062
        %v1754 = vunpack.c.l.b16 %v1063
        %v1755 = vunpack.c.h.b16 %v1063
        %v1756 = vunpack.c.l.b16 %v1064
        %v1757 = vunpack.c.h.b16 %v1064
        %v1758 = vunpack.c.l.b16 %v1065
        %v1759 = vunpack.c.h.b16 %v1065
        %v1760 = vunpack.c.l.b16 %v1066
        %v1761 = vunpack.c.h.b16 %v1066
        %v1762 = vunpack.c.l.b16 %v1067
        %v1763 = vunpack.c.h.b16 %v1067
        %v1764 = vunpack.c.l.b16 %v1068
        %v1765 = vunpack.c.h.b16 %v1068
        %v1766 = vunpack.c.l.b16 %v1069
        %v1767 = vunpack.c.h.b16 %v1069
        %v1768 = vunpack.c.l.b16 %v1070
        %v1769 = vunpack.c.h.b16 %v1070
        %v1770 = vunpack.c.l.b16 %v1071
        %v1771 = vunpack.c.h.b16 %v1071
        %v1772 = vunpack.c.l.b16 %v1072
        %v1773 = vunpack.c.h.b16 %v1072
        %v1774 = vunpack.c.l.b16 %v1073
        %v1775 = vunpack.c.h.b16 %v1073
        %v1776 = vunpack.c.l.b16 %v1074
        %v1777 = vunpack.c.h.b16 %v1074
        %v1778 = vunpack.c.l.b16 %v1075
        %v1779 = vunpack.c.h.b16 %v1075
        %v1780 = vunpack.c.l.b16 %v1076
        %v1781 = vunpack.c.h.b16 %v1076
        %v1782 = vunpack.c.l.b16 %v1077
        %v1783 = vunpack.c.h.b16 %v1077
        %v1784 = vunpack.c.l.b16 %v1078
        %v1785 = vunpack.c.h.b16 %v1078
        %v1786 = vunpack.c.l.b16 %v1079
        %v1787 = vunpack.c.h.b16 %v1079
        %v1788 = vunpack.c.l.b16 %v1080
        %v1789 = vunpack.c.h.b16 %v1080
        %v1790 = vunpack.c.l.b16 %v1081
        %v1791 = vunpack.c.h.b16 %v1081
        %v1792 = vunpack.c.l.b16 %v1082
        %v1793 = vunpack.c.h.b16 %v1082
        %v1794 = vunpack.c.l.b16 %v1083
        %v1795 = vunpack.c.h.b16 %v1083
        %v1796 = vunpack.c.l.b16 %v1084
        %v1797 = vunpack.c.h.b16 %v1084
        %v1798 = vunpack.c.l.b16 %v1085
        %v1799 = vunpack.c.h.b16 %v1085
        %v1800 = vunpack.c.l.b16 %v1086
        %v1801 = vunpack.c.h.b16 %v1086
        %v1802 = vunpack.c.l.b16 %v1087
        %v1803 = vunpack.c.h.b16 %v1087
        %v1804 = vunpack.c.l.b16 %v1088
        %v1805 = vunpack.c.h.b16 %v1088
        %v1806 = vunpack.c.l.b16 %v1089
        %v1807 = vunpack.c.h.b16 %v1089
        %v1808 = vunpack.c.l.b16 %v1090
        %v1809 = vunpack.c.h.b16 %v1090
        %v1810 = vunpack.c.l.b16 %v1091
        %v1811 = vunpack.c.h.b16 %v1091
        %v1812 = vunpack.c.l.b16 %v1092
        %v1813 = vunpack.c.h.b16 %v1092
        %v1814 = vunpack.c.l.b16 %v1093
        %v1815 = vunpack.c.h.b16 %v1093
        %v1816 = vunpack.c.l.b16 %v1094
        %v1817 = vunpack.c.h.b16 %v1094
        %v1818 = vunpack.c.l.b16 %v1095
        %v1819 = vunpack.c.h.b16 %v1095
        %v1820 = vunpack.c.l.b16 %v1096
        %v1821 = vunpack.c.h.b16 %v1096
        %v1822 = vunpack.c.l.b16 %v1097
        %v1823 = vunpack.c.h.b16 %v1097
        %v1824 = vunpack.c.l.b16 %v1098
        %v1825 = vunpack.c.h.b16 %v1098
        %v1826 = vunpack.c.l.b16 %v1099
        %v1827 = vunpack.c.h.b16 %v1099
        %v1828 = vunpack.c.l.b16 %v1100
        %v1829 = vunpack.c.h.b16 %v1100
        %v1830 = vunpack.c.l.b16 %v1101
        %v1831 = vunpack.c.h.b16 %v1101
        %v1832 = vunpack.c.l.b16 %v1102
        %v1833 = vunpack.c.h.b16 %v1102
        %v1834 = vunpack.c.l.b16 %v1103
        %v1835 = vunpack.c.h.b16 %v1103
        %v1836 = vunpack.c.l.b16 %v1104
        %v1837 = vunpack.c.h.b16 %v1104
        %v1838 = vunpack.c.l.b16 %v1105
        %v1839 = vunpack.c.h.b16 %v1105
        %v1840 = vunpack.c.l.b16 %v1106
        %v1841 = vunpack.c.h.b16 %v1106
        %v1842 = vunpack.c.l.b16 %v1107
        %v1843 = vunpack.c.h.b16 %v1107
        %v1844 = vunpack.c.l.b16 %v1108
        %v1845 = vunpack.c.h.b16 %v1108
        %v1846 = vunpack.c.l.b16 %v1109
        %v1847 = vunpack.c.h.b16 %v1109
        %v1848 = vunpack.c.l.b16 %v1110
        %v1849 = vunpack.c.h.b16 %v1110
        %v1850 = vunpack.c.l.b16 %v1111
        %v1851 = vunpack.c.h.b16 %v1111
        %v1852 = vunpack.c.l.b16 %v1112
        %v1853 = vunpack.c.h.b16 %v1112
        %v1854 = vunpack.c.l.b16 %v1113
        %v1855 = vunpack.c.h.b16 %v1113
        %v1856 = vunpack.c.l.b16 %v1114
        %v1857 = vunpack.c.h.b16 %v1114
        %v1858 = vunpack.c.l.b16 %v1115
        %v1859 = vunpack.c.h.b16 %v1115
        %v1860 = vunpack.c.l.b16 %v1116
        %v1861 = vunpack.c.h.b16 %v1116
        %v1862 = vunpack.c.l.b16 %v1117
        %v1863 = vunpack.c.h.b16 %v1117
        %v1864 = vunpack.c.l.b16 %v1118
        %v1865 = vunpack.c.h.b16 %v1118
        %v1866 = vunpack.c.l.b16 %v1119
        %v1867 = vunpack.c.h.b16 %v1119
        %v1868 = vunpack.c.l.b16 %v1120
        %v1869 = vunpack.c.h.b16 %v1120
        %v1870 = vunpack.c.l.b16 %v1121
        %v1871 = vunpack.c.h.b16 %v1121
        %v1872 = vunpack.c.l.b16 %v1122
        %v1873 = vunpack.c.h.b16 %v1122
        %v1874 = vunpack.c.l.b16 %v1123
        %v1875 = vunpack.c.h.b16 %v1123
        %v1876 = vunpack.c.l.b16 %v1124
        %v1877 = vunpack.c.h.b16 %v1124
        %v1878 = vunpack.c.l.b16 %v1125
        %v1879 = vunpack.c.h.b16 %v1125
        %v1880 = vunpack.c.l.b16 %v1126
        %v1881 = vunpack.c.h.b16 %v1126
        %v1882 = vunpack.c.l.b16 %v1127
        %v1883 = vunpack.c.h.b16 %v1127
        %v1884 = vunpack.c.l.b16 %v1128
        %v1885 = vunpack.c.h.b16 %v1128
        %v1886 = vunpack.c.l.b16 %v1129
        %v1887 = vunpack.c.h.b16 %v1129
        %v1888 = vunpack.c.l.b16 %v1130
        %v1889 = vunpack.c.h.b16 %v1130
        %v1890 = vunpack.c.l.b16 %v1131
        %v1891 = vunpack.c.h.b16 %v1131
        %v1892 = vunpack.c.l.b16 %v1132
        %v1893 = vunpack.c.h.b16 %v1132
        %v1894 = vunpack.c.l.b16 %v1133
        %v1895 = vunpack.c.h.b16 %v1133
        %v1896 = vunpack.c.l.b16 %v1134
        %v1897 = vunpack.c.h.b16 %v1134
        %v1898 = vunpack.c.l.b16 %v1135
        %v1899 = vunpack.c.h.b16 %v1135
        %v1900 = vunpack.c.l.b16 %v1136
        %v1901 = vunpack.c.h.b16 %v1136
        %v1902 = vunpack.c.l.b16 %v1137
        %v1903 = vunpack.c.h.b16 %v1137
        %v1904 = vunpack.c.l.b16 %v1138
        %v1905 = vunpack.c.h.b16 %v1138
        %v1906 = vunpack.c.l.b16 %v1139
        %v1907 = vunpack.c.h.b16 %v1139
        %v1908 = vpack.c.b16 %v1400, %v1396
        %v1909 = vpack.c.b16 %v1401, %v1397
        %v1910 = vpack.c.b16 %v1402, %v1398
        %v1911 = vpack.c.b16 %v1403, %v1399
        %v1912 = vpack.c.b16 %v1408, %v1404
        %v1913 = vpack.c.b16 %v1409, %v1405
        %v1914 = vpack.c.b16 %v1410, %v1406
        %v1915 = vpack.c.b16 %v1411, %v1407
        %v1916 = vpack.c.b16 %v1416, %v1412
        %v1917 = vpack.c.b16 %v1417, %v1413
        %v1918 = vpack.c.b16 %v1418, %v1414
        %v1919 = vpack.c.b16 %v1419, %v1415
        %v1920 = vpack.c.b16 %v1424, %v1420
        %v1921 = vpack.c.b16 %v1425, %v1421
        %v1922 = vpack.c.b16 %v1426, %v1422
        %v1923 = vpack.c.b16 %v1427, %v1423
        %v1924 = vpack.c.b16 %v1432, %v1428
        %v1925 = vpack.c.b16 %v1433, %v1429
        %v1926 = vpack.c.b16 %v1434, %v1430
        %v1927 = vpack.c.b16 %v1435, %v1431
        %v1928 = vpack.c.b16 %v1440, %v1436
        %v1929 = vpack.c.b16 %v1441, %v1437
        %v1930 = vpack.c.b16 %v1442, %v1438
        %v1931 = vpack.c.b16 %v1443, %v1439
        %v1932 = vpack.c.b16 %v1448, %v1444
        %v1933 = vpack.c.b16 %v1449, %v1445
        %v1934 = vpack.c.b16 %v1450, %v1446
        %v1935 = vpack.c.b16 %v1451, %v1447
        %v1936 = vpack.c.b16 %v1456, %v1452
        %v1937 = vpack.c.b16 %v1457, %v1453
        %v1938 = vpack.c.b16 %v1458, %v1454
        %v1939 = vpack.c.b16 %v1459, %v1455
        %v1940 = vpack.c.b16 %v1464, %v1460
        %v1941 = vpack.c.b16 %v1465, %v1461
        %v1942 = vpack.c.b16 %v1466, %v1462
        %v1943 = vpack.c.b16 %v1467, %v1463
        %v1944 = vpack.c.b16 %v1472, %v1468
        %v1945 = vpack.c.b16 %v1473, %v1469
        %v1946 = vpack.c.b16 %v1474, %v1470
        %v1947 = vpack.c.b16 %v1475, %v1471
        %v1948 = vpack.c.b16 %v1480, %v1476
        %v1949 = vpack.c.b16 %v1481, %v1477
        %v1950 = vpack.c.b16 %v1482, %v1478
        %v1951 = vpack.c.b16 %v1483, %v1479
        %v1952 = vpack.c.b16 %v1488, %v1484
        %v1953 = vpack.c.b16 %v1489, %v1485
        %v1954 = vpack.c.b16 %v1490, %v1486
        %v1955 = vpack.c.b16 %v1491, %v1487
        %v1956 = vpack.c.b16 %v1496, %v1492
        %v1957 = vpack.c.b16 %v1497, %v1493
        %v1958 = vpack.c.b16 %v1498, %v1494
        %v1959 = vpack.c.b16 %v1499, %v1495
        %v1960 = vpack.c.b16 %v1504, %v1500
        %v1961 = vpack.c.b16 %v1505, %v1501
        %v1962 = vpack.c.b16 %v1506, %v1502
        %v1963 = vpack.c.b16 %v1507, %v1503
        %v1964 = vpack.c.b16 %v1512, %v1508
        %v1965 = vpack.c.b16 %v1513, %v1509
        %v1966 = vpack.c.b16 %v1514, %v1510
        %v1967 = vpack.c.b16 %v1515, %v1511
        %v1968 = vpack.c.b16 %v1520, %v1516
        %v1969 = vpack.c.b16 %v1521, %v1517
        %v1970 = vpack.c.b16 %v1522, %v1518
        %v1971 = vpack.c.b16 %v1523, %v1519
        %v1972 = vpack.c.b16 %v1528, %v1524
        %v1973 = vpack.c.b16 %v1529, %v1525
        %v1974 = vpack.c.b16 %v1530, %v1526
        %v1975 = vpack.c.b16 %v1531, %v1527
        %v1976 = vpack.c.b16 %v1536, %v1532
        %v1977 = vpack.c.b16 %v1537, %v1533
        %v1978 = vpack.c.b16 %v1538, %v1534
        %v1979 = vpack.c.b16 %v1539, %v1535
        %v1980 = vpack.c.b16 %v1544, %v1540
        %v1981 = vpack.c.b16 %v1545, %v1541
        %v1982 = vpack.c.b16 %v1546, %v1542
        %v1983 = vpack.c.b16 %v1547, %v1543
        %v1984 = vpack.c.b16 %v1552, %v1548
        %v1985 = vpack.c.b16 %v1553, %v1549
        %v1986 = vpack.c.b16 %v1554, %v1550
        %v1987 = vpack.c.b16 %v1555, %v1551
        %v1988 = vpack.c.b16 %v1560, %v1556
        %v1989 = vpack.c.b16 %v1561, %v1557
        %v1990 = vpack.c.b16 %v1562, %v1558
        %v1991 = vpack.c.b16 %v1563, %v1559
        %v1992 = vpack.c.b16 %v1568, %v1564
        %v1993 = vpack.c.b16 %v1569, %v1565
        %v1994 = vpack.c.b16 %v1570, %v1566
        %v1995 = vpack.c.b16 %v1571, %v1567
        %v1996 = vpack.c.b16 %v1576, %v1572
        %v1997 = vpack.c.b16 %v1577, %v1573
        %v1998 = vpack.c.b16 %v1578, %v1574
        %v1999 = vpack.c.b16 %v1579, %v1575
        %v2000 = vpack.c.b16 %v1584, %v1580
        %v2001 = vpack.c.b16 %v1585, %v1581
        %v2002 = vpack.c.b16 %v1586, %v1582
        %v2003 = vpack.c.b16 %v1587, %v1583
        %v2004 = vpack.c.b16 %v1592, %v1588
        %v2005 = vpack.c.b16 %v1593, %v1589
        %v2006 = vpack.c.b16 %v1594, %v1590
        %v2007 = vpack.c.b16 %v1595, %v1591
        %v2008 = vpack.c.b16 %v1600, %v1596
        %v2009 = vpack.c.b16 %v1601, %v1597
        %v2010 = vpack.c.b16 %v1602, %v1598
        %v2011 = vpack.c.b16 %v1603, %v1599
        %v2012 = vpack.c.b16 %v1608, %v1604
        %v2013 = vpack.c.b16 %v1609, %v1605
        %v2014 = vpack.c.b16 %v1610, %v1606
        %v2015 = vpack.c.b16 %v1611, %v1607
        %v2016 = vpack.c.b16 %v1616, %v1612
        %v2017 = vpack.c.b16 %v1617, %v1613
        %v2018 = vpack.c.b16 %v1618, %v1614
        %v2019 = vpack.c.b16 %v1619, %v1615
        %v2020 = vpack.c.b16 %v1624, %v1620
        %v2021 = vpack.c.b16 %v1625, %v1621
        %v2022 = vpack.c.b16 %v1626, %v1622
        %v2023 = vpack.c.b16 %v1627, %v1623
        %v2024 = vpack.c.b16 %v1632, %v1628
        %v2025 = vpack.c.b16 %v1633, %v1629
        %v2026 = vpack.c.b16 %v1634, %v1630
        %v2027 = vpack.c.b16 %v1635, %v1631
        %v2028 = vpack.c.b16 %v1640, %v1636
        %v2029 = vpack.c.b16 %v1641, %v1637
        %v2030 = vpack.c.b16 %v1642, %v1638
        %v2031 = vpack.c.b16 %v1643, %v1639
        %v2032 = vpack.c.b16 %v1648, %v1644
        %v2033 = vpack.c.b16 %v1649, %v1645
        %v2034 = vpack.c.b16 %v1650, %v1646
        %v2035 = vpack.c.b16 %v1651, %v1647
        %v2036 = vpack.c.b16 %v1656, %v1652
        %v2037 = vpack.c.b16 %v1657, %v1653
        %v2038 = vpack.c.b16 %v1658, %v1654
        %v2039 = vpack.c.b16 %v1659, %v1655
        %v2040 = vpack.c.b16 %v1664, %v1660
        %v2041 = vpack.c.b16 %v1665, %v1661
        %v2042 = vpack.c.b16 %v1666, %v1662
        %v2043 = vpack.c.b16 %v1667, %v1663
        %v2044 = vpack.c.b16 %v1672, %v1668
        %v2045 = vpack.c.b16 %v1673, %v1669
        %v2046 = vpack.c.b16 %v1674, %v1670
        %v2047 = vpack.c.b16 %v1675, %v1671
        %v2048 = vpack.c.b16 %v1680, %v1676
        %v2049 = vpack.c.b16 %v1681, %v1677
        %v2050 = vpack.c.b16 %v1682, %v1678
        %v2051 = vpack.c.b16 %v1683, %v1679
        %v2052 = vpack.c.b16 %v1688, %v1684
        %v2053 = vpack.c.b16 %v1689, %v1685
        %v2054 = vpack.c.b16 %v1690, %v1686
        %v2055 = vpack.c.b16 %v1691, %v1687
        %v2056 = vpack.c.b16 %v1696, %v1692
        %v2057 = vpack.c.b16 %v1697, %v1693
        %v2058 = vpack.c.b16 %v1698, %v1694
        %v2059 = vpack.c.b16 %v1699, %v1695
        %v2060 = vpack.c.b16 %v1704, %v1700
        %v2061 = vpack.c.b16 %v1705, %v1701
        %v2062 = vpack.c.b16 %v1706, %v1702
        %v2063 = vpack.c.b16 %v1707, %v1703
        %v2064 = vpack.c.b16 %v1712, %v1708
        %v2065 = vpack.c.b16 %v1713, %v1709
        %v2066 = vpack.c.b16 %v1714, %v1710
        %v2067 = vpack.c.b16 %v1715, %v1711
        %v2068 = vpack.c.b16 %v1720, %v1716
        %v2069 = vpack.c.b16 %v1721, %v1717
        %v2070 = vpack.c.b16 %v1722, %v1718
        %v2071 = vpack.c.b16 %v1723, %v1719
        %v2072 = vpack.c.b16 %v1728, %v1724
        %v2073 = vpack.c.b16 %v1729, %v1725
        %v2074 = vpack.c.b16 %v1730, %v1726
        %v2075 = vpack.c.b16 %v1731, %v1727
        %v2076 = vpack.c.b16 %v1736, %v1732
        %v2077 = vpack.c.b16 %v1737, %v1733
        %v2078 = vpack.c.b16 %v1738, %v1734
        %v2079 = vpack.c.b16 %v1739, %v1735
        %v2080 = vpack.c.b16 %v1744, %v1740
        %v2081 = vpack.c.b16 %v1745, %v1741
        %v2082 = vpack.c.b16 %v1746, %v1742
        %v2083 = vpack.c.b16 %v1747, %v1743
        %v2084 = vpack.c.b16 %v1752, %v1748
        %v2085 = vpack.c.b16 %v1753, %v1749
        %v2086 = vpack.c.b16 %v1754, %v1750
        %v2087 = vpack.c.b16 %v1755, %v1751
        %v2088 = vpack.c.b16 %v1760, %v1756
        %v2089 = vpack.c.b16 %v1761, %v1757
        %v2090 = vpack.c.b16 %v1762, %v1758
        %v2091 = vpack.c.b16 %v1763, %v1759
        %v2092 = vpack.c.b16 %v1768, %v1764
        %v2093 = vpack.c.b16 %v1769, %v1765
        %v2094 = vpack.c.b16 %v1770, %v1766
        %v2095 = vpack.c.b16 %v1771, %v1767
        %v2096 = vpack.c.b16 %v1776, %v1772
        %v2097 = vpack.c.b16 %v1777, %v1773
        %v2098 = vpack.c.b16 %v1778, %v1774
        %v2099 = vpack.c.b16 %v1779, %v1775
        %v2100 = vpack.c.b16 %v1784, %v1780
        %v2101 = vpack.c.b16 %v1785, %v1781
        %v2102 = vpack.c.b16 %v1786, %v1782
        %v2103 = vpack.c.b16 %v1787, %v1783
        %v2104 = vpack.c.b16 %v1792, %v1788
        %v2105 = vpack.c.b16 %v1793, %v1789
        %v2106 = vpack.c.b16 %v1794, %v1790
        %v2107 = vpack.c.b16 %v1795, %v1791
        %v2108 = vpack.c.b16 %v1800, %v1796
        %v2109 = vpack.c.b16 %v1801, %v1797
        %v2110 = vpack.c.b16 %v1802, %v1798
        %v2111 = vpack.c.b16 %v1803, %v1799
        %v2112 = vpack.c.b16 %v1808, %v1804
        %v2113 = vpack.c.b16 %v1809, %v1805
        %v2114 = vpack.c.b16 %v1810, %v1806
        %v2115 = vpack.c.b16 %v1811, %v1807
        %v2116 = vpack.c.b16 %v1816, %v1812
        %v2117 = vpack.c.b16 %v1817, %v1813
        %v2118 = vpack.c.b16 %v1818, %v1814
        %v2119 = vpack.c.b16 %v1819, %v1815
        %v2120 = vpack.c.b16 %v1824, %v1820
        %v2121 = vpack.c.b16 %v1825, %v1821
        %v2122 = vpack.c.b16 %v1826, %v1822
        %v2123 = vpack.c.b16 %v1827, %v1823
        %v2124 = vpack.c.b16 %v1832, %v1828
        %v2125 = vpack.c.b16 %v1833, %v1829
        %v2126 = vpack.c.b16 %v1834, %v1830
        %v2127 = vpack.c.b16 %v1835, %v1831
        %v2128 = vpack.c.b16 %v1840, %v1836
        %v2129 = vpack.c.b16 %v1841, %v1837
        %v2130 = vpack.c.b16 %v1842, %v1838
        %v2131 = vpack.c.b16 %v1843, %v1839
        %v2132 = vpack.c.b16 %v1848, %v1844
        %v2133 = vpack.c.b16 %v1849, %v1845
        %v2134 = vpack.c.b16 %v1850, %v1846
        %v2135 = vpack.c.b16 %v1851, %v1847
        %v2136 = vpack.c.b16 %v1856, %v1852
        %v2137 = vpack.c.b16 %v1857, %v1853
        %v2138 = vpack.c.b16 %v1858, %v1854
        %v2139 = vpack.c.b16 %v1859, %v1855
        %v2140 = vpack.c.b16 %v1864, %v1860
        %v2141 = vpack.c.b16 %v1865, %v1861
        %v2142 = vpack.c.b16 %v1866, %v1862
        %v2143 = vpack.c.b16 %v1867, %v1863
        %v2144 = vpack.c.b16 %v1872, %v1868
        %v2145 = vpack.c.b16 %v1873, %v1869
        %v2146 = vpack.c.b16 %v1874, %v1870
        %v2147 = vpack.c.b16 %v1875, %v1871
        %v2148 = vpack.c.b16 %v1880, %v1876
        %v2149 = vpack.c.b16 %v1881, %v1877
        %v2150 = vpack.c.b16 %v1882, %v1878
        %v2151 = vpack.c.b16 %v1883, %v1879
        %v2152 = vpack.c.b16 %v1888, %v1884
        %v2153 = vpack.c.b16 %v1889, %v1885
        %v2154 = vpack.c.b16 %v1890, %v1886
        %v2155 = vpack.c.b16 %v1891, %v1887
        %v2156 = vpack.c.b16 %v1896, %v1892
        %v2157 = vpack.c.b16 %v1897, %v1893
        %v2158 = vpack.c.b16 %v1898, %v1894
        %v2159 = vpack.c.b16 %v1899, %v1895
        %v2160 = vpack.c.b16 %v1904, %v1900
        %v2161 = vpack.c.b16 %v1905, %v1901
        %v2162 = vpack.c.b16 %v1906, %v1902
        %v2163 = vpack.c.b16 %v1907, %v1903
        %2420 = vmatpush.bf16.msra.mxu0 %v1936
        %2421 = vmatpush.bf16.msra.mxu0 %v1932
        %2422 = vmatpush.bf16.msra.mxu0 %v1928
        %2423 = vmatpush.bf16.msra.mxu0 %v1924
        %2424 = vmatpush.bf16.msra.mxu0 %v1920
        %2425 = vmatpush.bf16.msra.mxu0 %v1916
        %2426 = vmatpush.bf16.msra.mxu0 %v1912
        %2427 = vmatpush.bf16.msra.mxu0 %v1908
        %2428 = vmatmul.bf16.gmra.mxu0 %v876
        %v2429 = vpop.f32.mrf.mxu0
        %v2430 = vadd.f32 0.0, %v2429
        %v2431 = vpop.f32.mrf.mxu0
        %2432 = vdwg.mxu0
        %2433 = vmatpush.bf16.msra.mxu0 %v1968
        %2434 = vmatpush.bf16.msra.mxu0 %v1964
        %2435 = vmatpush.bf16.msra.mxu0 %v1960
        %2436 = vmatpush.bf16.msra.mxu0 %v1956
        %2437 = vmatpush.bf16.msra.mxu0 %v1952
        %2438 = vmatpush.bf16.msra.mxu0 %v1948
        %2439 = vmatpush.bf16.msra.mxu0 %v1944
        %2440 = vmatpush.bf16.msra.mxu0 %v1940
        %2441 = vmatmul.bf16.gmra.mxu0 %v877
        %v2442 = vpop.f32.mrf.mxu0
        %v2443 = vadd.f32 %v2430, %v2442
        %v2444 = vpop.f32.mrf.mxu0
        %2445 = vdwg.mxu0
        %2446 = vmatpush.bf16.msra.mxu0 %v2000
        %2447 = vmatpush.bf16.msra.mxu0 %v1996
        %2448 = vmatpush.bf16.msra.mxu0 %v1992
        %2449 = vmatpush.bf16.msra.mxu0 %v1988
        %2450 = vmatpush.bf16.msra.mxu0 %v1984
        %2451 = vmatpush.bf16.msra.mxu0 %v1980
        %2452 = vmatpush.bf16.msra.mxu0 %v1976
        %2453 = vmatpush.bf16.msra.mxu0 %v1972
        %2454 = vmatmul.bf16.gmra.mxu0 %v878
        %v2455 = vpop.f32.mrf.mxu0
        %v2456 = vadd.f32 %v2443, %v2455
        %v2457 = vpop.f32.mrf.mxu0
        %2458 = vdwg.mxu0
        %2459 = vmatpush.bf16.msra.mxu0 %v2032
        %2460 = vmatpush.bf16.msra.mxu0 %v2028
        %2461 = vmatpush.bf16.msra.mxu0 %v2024
        %2462 = vmatpush.bf16.msra.mxu0 %v2020
        %2463 = vmatpush.bf16.msra.mxu0 %v2016
        %2464 = vmatpush.bf16.msra.mxu0 %v2012
        %2465 = vmatpush.bf16.msra.mxu0 %v2008
        %2466 = vmatpush.bf16.msra.mxu0 %v2004
        %2467 = vmatmul.bf16.gmra.mxu0 %v879
        %v2468 = vpop.f32.mrf.mxu0
        %v2469 = vadd.f32 %v2456, %v2468
        %v2470 = vpop.f32.mrf.mxu0
        %2471 = vdwg.mxu0
        %2472 = vmatpush.bf16.msra.mxu0 %v2064
        %2473 = vmatpush.bf16.msra.mxu0 %v2060
        %2474 = vmatpush.bf16.msra.mxu0 %v2056
        %2475 = vmatpush.bf16.msra.mxu0 %v2052
        %2476 = vmatpush.bf16.msra.mxu0 %v2048
        %2477 = vmatpush.bf16.msra.mxu0 %v2044
        %2478 = vmatpush.bf16.msra.mxu0 %v2040
        %2479 = vmatpush.bf16.msra.mxu0 %v2036
        %2480 = vmatmul.bf16.gmra.mxu0 %v880
        %v2481 = vpop.f32.mrf.mxu0
        %v2482 = vadd.f32 %v2469, %v2481
        %v2483 = vpop.f32.mrf.mxu0
        %2484 = vdwg.mxu0
        %2485 = vmatpush.bf16.msra.mxu0 %v2096
        %2486 = vmatpush.bf16.msra.mxu0 %v2092
        %2487 = vmatpush.bf16.msra.mxu0 %v2088
        %2488 = vmatpush.bf16.msra.mxu0 %v2084
        %2489 = vmatpush.bf16.msra.mxu0 %v2080
        %2490 = vmatpush.bf16.msra.mxu0 %v2076
        %2491 = vmatpush.bf16.msra.mxu0 %v2072
        %2492 = vmatpush.bf16.msra.mxu0 %v2068
        %2493 = vmatmul.bf16.gmra.mxu0 %v881
        %v2494 = vpop.f32.mrf.mxu0
        %v2495 = vadd.f32 %v2482, %v2494
        %v2496 = vpop.f32.mrf.mxu0
        %2497 = vdwg.mxu0
        %2498 = vmatpush.bf16.msra.mxu0 %v2128
        %2499 = vmatpush.bf16.msra.mxu0 %v2124
        %2500 = vmatpush.bf16.msra.mxu0 %v2120
        %2501 = vmatpush.bf16.msra.mxu0 %v2116
        %2502 = vmatpush.bf16.msra.mxu0 %v2112
        %2503 = vmatpush.bf16.msra.mxu0 %v2108
        %2504 = vmatpush.bf16.msra.mxu0 %v2104
        %2505 = vmatpush.bf16.msra.mxu0 %v2100
        %2506 = vmatmul.bf16.gmra.mxu0 %v882
        %v2507 = vpop.f32.mrf.mxu0
        %v2508 = vadd.f32 %v2495, %v2507
        %v2509 = vpop.f32.mrf.mxu0
        %2510 = vdwg.mxu0
        %2511 = vmatpush.bf16.msra.mxu0 %v2160
        %2512 = vmatpush.bf16.msra.mxu0 %v2156
        %2513 = vmatpush.bf16.msra.mxu0 %v2152
        %2514 = vmatpush.bf16.msra.mxu0 %v2148
        %2515 = vmatpush.bf16.msra.mxu0 %v2144
        %2516 = vmatpush.bf16.msra.mxu0 %v2140
        %2517 = vmatpush.bf16.msra.mxu0 %v2136
        %2518 = vmatpush.bf16.msra.mxu0 %v2132
        %2519 = vmatmul.bf16.gmra.mxu0 %v883
        %v2520 = vpop.f32.mrf.mxu0
        %v2521 = vadd.f32 %v2508, %v2520
        %v2522 = vpop.f32.mrf.mxu0
        %2523 = vdwg.mxu0
        %2524 = vmatpush.bf16.msra.mxu0 %v1937
        %2525 = vmatpush.bf16.msra.mxu0 %v1933
        %2526 = vmatpush.bf16.msra.mxu0 %v1929
        %2527 = vmatpush.bf16.msra.mxu0 %v1925
        %2528 = vmatpush.bf16.msra.mxu0 %v1921
        %2529 = vmatpush.bf16.msra.mxu0 %v1917
        %2530 = vmatpush.bf16.msra.mxu0 %v1913
        %2531 = vmatpush.bf16.msra.mxu0 %v1909
        %2532 = vmatmul.bf16.gmra.mxu0 %v876
        %v2533 = vpop.f32.mrf.mxu0
        %v2534 = vadd.f32 0.0, %v2533
        %v2535 = vpop.f32.mrf.mxu0
        %2536 = vdwg.mxu0
        %2537 = vmatpush.bf16.msra.mxu0 %v1969
        %2538 = vmatpush.bf16.msra.mxu0 %v1965
        %2539 = vmatpush.bf16.msra.mxu0 %v1961
        %2540 = vmatpush.bf16.msra.mxu0 %v1957
        %2541 = vmatpush.bf16.msra.mxu0 %v1953
        %2542 = vmatpush.bf16.msra.mxu0 %v1949
        %2543 = vmatpush.bf16.msra.mxu0 %v1945
        %2544 = vmatpush.bf16.msra.mxu0 %v1941
        %2545 = vmatmul.bf16.gmra.mxu0 %v877
        %v2546 = vpop.f32.mrf.mxu0
        %v2547 = vadd.f32 %v2534, %v2546
        %v2548 = vpop.f32.mrf.mxu0
        %2549 = vdwg.mxu0
        %2550 = vmatpush.bf16.msra.mxu0 %v2001
        %2551 = vmatpush.bf16.msra.mxu0 %v1997
        %2552 = vmatpush.bf16.msra.mxu0 %v1993
        %2553 = vmatpush.bf16.msra.mxu0 %v1989
        %2554 = vmatpush.bf16.msra.mxu0 %v1985
        %2555 = vmatpush.bf16.msra.mxu0 %v1981
        %2556 = vmatpush.bf16.msra.mxu0 %v1977
        %2557 = vmatpush.bf16.msra.mxu0 %v1973
        %2558 = vmatmul.bf16.gmra.mxu0 %v878
        %v2559 = vpop.f32.mrf.mxu0
        %v2560 = vadd.f32 %v2547, %v2559
        %v2561 = vpop.f32.mrf.mxu0
        %2562 = vdwg.mxu0
        %2563 = vmatpush.bf16.msra.mxu0 %v2033
        %2564 = vmatpush.bf16.msra.mxu0 %v2029
        %2565 = vmatpush.bf16.msra.mxu0 %v2025
        %2566 = vmatpush.bf16.msra.mxu0 %v2021
        %2567 = vmatpush.bf16.msra.mxu0 %v2017
        %2568 = vmatpush.bf16.msra.mxu0 %v2013
        %2569 = vmatpush.bf16.msra.mxu0 %v2009
        %2570 = vmatpush.bf16.msra.mxu0 %v2005
        %2571 = vmatmul.bf16.gmra.mxu0 %v879
        %v2572 = vpop.f32.mrf.mxu0
        %v2573 = vadd.f32 %v2560, %v2572
        %v2574 = vpop.f32.mrf.mxu0
        %2575 = vdwg.mxu0
        %2576 = vmatpush.bf16.msra.mxu0 %v2065
        %2577 = vmatpush.bf16.msra.mxu0 %v2061
        %2578 = vmatpush.bf16.msra.mxu0 %v2057
        %2579 = vmatpush.bf16.msra.mxu0 %v2053
        %2580 = vmatpush.bf16.msra.mxu0 %v2049
        %2581 = vmatpush.bf16.msra.mxu0 %v2045
        %2582 = vmatpush.bf16.msra.mxu0 %v2041
        %2583 = vmatpush.bf16.msra.mxu0 %v2037
        %2584 = vmatmul.bf16.gmra.mxu0 %v880
        %v2585 = vpop.f32.mrf.mxu0
        %v2586 = vadd.f32 %v2573, %v2585
        %v2587 = vpop.f32.mrf.mxu0
        %2588 = vdwg.mxu0
        %2589 = vmatpush.bf16.msra.mxu0 %v2097
        %2590 = vmatpush.bf16.msra.mxu0 %v2093
        %2591 = vmatpush.bf16.msra.mxu0 %v2089
        %2592 = vmatpush.bf16.msra.mxu0 %v2085
        %2593 = vmatpush.bf16.msra.mxu0 %v2081
        %2594 = vmatpush.bf16.msra.mxu0 %v2077
        %2595 = vmatpush.bf16.msra.mxu0 %v2073
        %2596 = vmatpush.bf16.msra.mxu0 %v2069
        %2597 = vmatmul.bf16.gmra.mxu0 %v881
        %v2598 = vpop.f32.mrf.mxu0
        %v2599 = vadd.f32 %v2586, %v2598
        %v2600 = vpop.f32.mrf.mxu0
        %2601 = vdwg.mxu0
        %2602 = vmatpush.bf16.msra.mxu0 %v2129
        %2603 = vmatpush.bf16.msra.mxu0 %v2125
        %2604 = vmatpush.bf16.msra.mxu0 %v2121
        %2605 = vmatpush.bf16.msra.mxu0 %v2117
        %2606 = vmatpush.bf16.msra.mxu0 %v2113
        %2607 = vmatpush.bf16.msra.mxu0 %v2109
        %2608 = vmatpush.bf16.msra.mxu0 %v2105
        %2609 = vmatpush.bf16.msra.mxu0 %v2101
        %2610 = vmatmul.bf16.gmra.mxu0 %v882
        %v2611 = vpop.f32.mrf.mxu0
        %v2612 = vadd.f32 %v2599, %v2611
        %v2613 = vpop.f32.mrf.mxu0
        %2614 = vdwg.mxu0
        %2615 = vmatpush.bf16.msra.mxu0 %v2161
        %2616 = vmatpush.bf16.msra.mxu0 %v2157
        %2617 = vmatpush.bf16.msra.mxu0 %v2153
        %2618 = vmatpush.bf16.msra.mxu0 %v2149
        %2619 = vmatpush.bf16.msra.mxu0 %v2145
        %2620 = vmatpush.bf16.msra.mxu0 %v2141
        %2621 = vmatpush.bf16.msra.mxu0 %v2137
        %2622 = vmatpush.bf16.msra.mxu0 %v2133
        %2623 = vmatmul.bf16.gmra.mxu0 %v883
        %v2624 = vpop.f32.mrf.mxu0
        %v2625 = vadd.f32 %v2612, %v2624
        %v2626 = vpop.f32.mrf.mxu0
        %2627 = vdwg.mxu0
        %2628 = vmatpush.bf16.msra.mxu0 %v1938
        %2629 = vmatpush.bf16.msra.mxu0 %v1934
        %2630 = vmatpush.bf16.msra.mxu0 %v1930
        %2631 = vmatpush.bf16.msra.mxu0 %v1926
        %2632 = vmatpush.bf16.msra.mxu0 %v1922
        %2633 = vmatpush.bf16.msra.mxu0 %v1918
        %2634 = vmatpush.bf16.msra.mxu0 %v1914
        %2635 = vmatpush.bf16.msra.mxu0 %v1910
        %2636 = vmatmul.bf16.gmra.mxu0 %v876
        %v2637 = vpop.f32.mrf.mxu0
        %v2638 = vadd.f32 0.0, %v2637
        %v2639 = vpop.f32.mrf.mxu0
        %2640 = vdwg.mxu0
        %2641 = vmatpush.bf16.msra.mxu0 %v1970
        %2642 = vmatpush.bf16.msra.mxu0 %v1966
        %2643 = vmatpush.bf16.msra.mxu0 %v1962
        %2644 = vmatpush.bf16.msra.mxu0 %v1958
        %2645 = vmatpush.bf16.msra.mxu0 %v1954
        %2646 = vmatpush.bf16.msra.mxu0 %v1950
        %2647 = vmatpush.bf16.msra.mxu0 %v1946
        %2648 = vmatpush.bf16.msra.mxu0 %v1942
        %2649 = vmatmul.bf16.gmra.mxu0 %v877
        %v2650 = vpop.f32.mrf.mxu0
        %v2651 = vadd.f32 %v2638, %v2650
        %v2652 = vpop.f32.mrf.mxu0
        %2653 = vdwg.mxu0
        %2654 = vmatpush.bf16.msra.mxu0 %v2002
        %2655 = vmatpush.bf16.msra.mxu0 %v1998
        %2656 = vmatpush.bf16.msra.mxu0 %v1994
        %2657 = vmatpush.bf16.msra.mxu0 %v1990
        %2658 = vmatpush.bf16.msra.mxu0 %v1986
        %2659 = vmatpush.bf16.msra.mxu0 %v1982
        %2660 = vmatpush.bf16.msra.mxu0 %v1978
        %2661 = vmatpush.bf16.msra.mxu0 %v1974
        %2662 = vmatmul.bf16.gmra.mxu0 %v878
        %v2663 = vpop.f32.mrf.mxu0
        %v2664 = vadd.f32 %v2651, %v2663
        %v2665 = vpop.f32.mrf.mxu0
        %2666 = vdwg.mxu0
        %2667 = vmatpush.bf16.msra.mxu0 %v2034
        %2668 = vmatpush.bf16.msra.mxu0 %v2030
        %2669 = vmatpush.bf16.msra.mxu0 %v2026
        %2670 = vmatpush.bf16.msra.mxu0 %v2022
        %2671 = vmatpush.bf16.msra.mxu0 %v2018
        %2672 = vmatpush.bf16.msra.mxu0 %v2014
        %2673 = vmatpush.bf16.msra.mxu0 %v2010
        %2674 = vmatpush.bf16.msra.mxu0 %v2006
        %2675 = vmatmul.bf16.gmra.mxu0 %v879
        %v2676 = vpop.f32.mrf.mxu0
        %v2677 = vadd.f32 %v2664, %v2676
        %v2678 = vpop.f32.mrf.mxu0
        %2679 = vdwg.mxu0
        %2680 = vmatpush.bf16.msra.mxu0 %v2066
        %2681 = vmatpush.bf16.msra.mxu0 %v2062
        %2682 = vmatpush.bf16.msra.mxu0 %v2058
        %2683 = vmatpush.bf16.msra.mxu0 %v2054
        %2684 = vmatpush.bf16.msra.mxu0 %v2050
        %2685 = vmatpush.bf16.msra.mxu0 %v2046
        %2686 = vmatpush.bf16.msra.mxu0 %v2042
        %2687 = vmatpush.bf16.msra.mxu0 %v2038
        %2688 = vmatmul.bf16.gmra.mxu0 %v880
        %v2689 = vpop.f32.mrf.mxu0
        %v2690 = vadd.f32 %v2677, %v2689
        %v2691 = vpop.f32.mrf.mxu0
        %2692 = vdwg.mxu0
        %2693 = vmatpush.bf16.msra.mxu0 %v2098
        %2694 = vmatpush.bf16.msra.mxu0 %v2094
        %2695 = vmatpush.bf16.msra.mxu0 %v2090
        %2696 = vmatpush.bf16.msra.mxu0 %v2086
        %2697 = vmatpush.bf16.msra.mxu0 %v2082
        %2698 = vmatpush.bf16.msra.mxu0 %v2078
        %2699 = vmatpush.bf16.msra.mxu0 %v2074
        %2700 = vmatpush.bf16.msra.mxu0 %v2070
        %2701 = vmatmul.bf16.gmra.mxu0 %v881
        %v2702 = vpop.f32.mrf.mxu0
        %v2703 = vadd.f32 %v2690, %v2702
        %v2704 = vpop.f32.mrf.mxu0
        %2705 = vdwg.mxu0
        %2706 = vmatpush.bf16.msra.mxu0 %v2130
        %2707 = vmatpush.bf16.msra.mxu0 %v2126
        %2708 = vmatpush.bf16.msra.mxu0 %v2122
        %2709 = vmatpush.bf16.msra.mxu0 %v2118
        %2710 = vmatpush.bf16.msra.mxu0 %v2114
        %2711 = vmatpush.bf16.msra.mxu0 %v2110
        %2712 = vmatpush.bf16.msra.mxu0 %v2106
        %2713 = vmatpush.bf16.msra.mxu0 %v2102
        %2714 = vmatmul.bf16.gmra.mxu0 %v882
        %v2715 = vpop.f32.mrf.mxu0
        %v2716 = vadd.f32 %v2703, %v2715
        %v2717 = vpop.f32.mrf.mxu0
        %2718 = vdwg.mxu0
        %2719 = vmatpush.bf16.msra.mxu0 %v2162
        %2720 = vmatpush.bf16.msra.mxu0 %v2158
        %2721 = vmatpush.bf16.msra.mxu0 %v2154
        %2722 = vmatpush.bf16.msra.mxu0 %v2150
        %2723 = vmatpush.bf16.msra.mxu0 %v2146
        %2724 = vmatpush.bf16.msra.mxu0 %v2142
        %2725 = vmatpush.bf16.msra.mxu0 %v2138
        %2726 = vmatpush.bf16.msra.mxu0 %v2134
        %2727 = vmatmul.bf16.gmra.mxu0 %v883
        %v2728 = vpop.f32.mrf.mxu0
        %v2729 = vadd.f32 %v2716, %v2728
        %v2730 = vpop.f32.mrf.mxu0
        %2731 = vdwg.mxu0
        %2732 = vmatpush.bf16.msra.mxu0 %v1939
        %2733 = vmatpush.bf16.msra.mxu0 %v1935
        %2734 = vmatpush.bf16.msra.mxu0 %v1931
        %2735 = vmatpush.bf16.msra.mxu0 %v1927
        %2736 = vmatpush.bf16.msra.mxu0 %v1923
        %2737 = vmatpush.bf16.msra.mxu0 %v1919
        %2738 = vmatpush.bf16.msra.mxu0 %v1915
        %2739 = vmatpush.bf16.msra.mxu0 %v1911
        %2740 = vmatmul.bf16.gmra.mxu0 %v876
        %v2741 = vpop.f32.mrf.mxu0
        %v2742 = vadd.f32 0.0, %v2741
        %v2743 = vpop.f32.mrf.mxu0
        %2744 = vdwg.mxu0
        %2745 = vmatpush.bf16.msra.mxu0 %v1971
        %2746 = vmatpush.bf16.msra.mxu0 %v1967
        %2747 = vmatpush.bf16.msra.mxu0 %v1963
        %2748 = vmatpush.bf16.msra.mxu0 %v1959
        %2749 = vmatpush.bf16.msra.mxu0 %v1955
        %2750 = vmatpush.bf16.msra.mxu0 %v1951
        %2751 = vmatpush.bf16.msra.mxu0 %v1947
        %2752 = vmatpush.bf16.msra.mxu0 %v1943
        %2753 = vmatmul.bf16.gmra.mxu0 %v877
        %v2754 = vpop.f32.mrf.mxu0
        %v2755 = vadd.f32 %v2742, %v2754
        %v2756 = vpop.f32.mrf.mxu0
        %2757 = vdwg.mxu0
        %2758 = vmatpush.bf16.msra.mxu0 %v2003
        %2759 = vmatpush.bf16.msra.mxu0 %v1999
        %2760 = vmatpush.bf16.msra.mxu0 %v1995
        %2761 = vmatpush.bf16.msra.mxu0 %v1991
        %2762 = vmatpush.bf16.msra.mxu0 %v1987
        %2763 = vmatpush.bf16.msra.mxu0 %v1983
        %2764 = vmatpush.bf16.msra.mxu0 %v1979
        %2765 = vmatpush.bf16.msra.mxu0 %v1975
        %2766 = vmatmul.bf16.gmra.mxu0 %v878
        %v2767 = vpop.f32.mrf.mxu0
        %v2768 = vadd.f32 %v2755, %v2767
        %v2769 = vpop.f32.mrf.mxu0
        %2770 = vdwg.mxu0
        %2771 = vmatpush.bf16.msra.mxu0 %v2035
        %2772 = vmatpush.bf16.msra.mxu0 %v2031
        %2773 = vmatpush.bf16.msra.mxu0 %v2027
        %2774 = vmatpush.bf16.msra.mxu0 %v2023
        %2775 = vmatpush.bf16.msra.mxu0 %v2019
        %2776 = vmatpush.bf16.msra.mxu0 %v2015
        %2777 = vmatpush.bf16.msra.mxu0 %v2011
        %2778 = vmatpush.bf16.msra.mxu0 %v2007
        %2779 = vmatmul.bf16.gmra.mxu0 %v879
        %v2780 = vpop.f32.mrf.mxu0
        %v2781 = vadd.f32 %v2768, %v2780
        %v2782 = vpop.f32.mrf.mxu0
        %2783 = vdwg.mxu0
        %2784 = vmatpush.bf16.msra.mxu0 %v2067
        %2785 = vmatpush.bf16.msra.mxu0 %v2063
        %2786 = vmatpush.bf16.msra.mxu0 %v2059
        %2787 = vmatpush.bf16.msra.mxu0 %v2055
        %2788 = vmatpush.bf16.msra.mxu0 %v2051
        %2789 = vmatpush.bf16.msra.mxu0 %v2047
        %2790 = vmatpush.bf16.msra.mxu0 %v2043
        %2791 = vmatpush.bf16.msra.mxu0 %v2039
        %2792 = vmatmul.bf16.gmra.mxu0 %v880
        %v2793 = vpop.f32.mrf.mxu0
        %v2794 = vadd.f32 %v2781, %v2793
        %v2795 = vpop.f32.mrf.mxu0
        %2796 = vdwg.mxu0
        %2797 = vmatpush.bf16.msra.mxu0 %v2099
        %2798 = vmatpush.bf16.msra.mxu0 %v2095
        %2799 = vmatpush.bf16.msra.mxu0 %v2091
        %2800 = vmatpush.bf16.msra.mxu0 %v2087
        %2801 = vmatpush.bf16.msra.mxu0 %v2083
        %2802 = vmatpush.bf16.msra.mxu0 %v2079
        %2803 = vmatpush.bf16.msra.mxu0 %v2075
        %2804 = vmatpush.bf16.msra.mxu0 %v2071
        %2805 = vmatmul.bf16.gmra.mxu0 %v881
        %v2806 = vpop.f32.mrf.mxu0
        %v2807 = vadd.f32 %v2794, %v2806
        %v2808 = vpop.f32.mrf.mxu0
        %2809 = vdwg.mxu0
        %2810 = vmatpush.bf16.msra.mxu0 %v2131
        %2811 = vmatpush.bf16.msra.mxu0 %v2127
        %2812 = vmatpush.bf16.msra.mxu0 %v2123
        %2813 = vmatpush.bf16.msra.mxu0 %v2119
        %2814 = vmatpush.bf16.msra.mxu0 %v2115
        %2815 = vmatpush.bf16.msra.mxu0 %v2111
        %2816 = vmatpush.bf16.msra.mxu0 %v2107
        %2817 = vmatpush.bf16.msra.mxu0 %v2103
        %2818 = vmatmul.bf16.gmra.mxu0 %v882
        %v2819 = vpop.f32.mrf.mxu0
        %v2820 = vadd.f32 %v2807, %v2819
        %v2821 = vpop.f32.mrf.mxu0
        %2822 = vdwg.mxu0
        %2823 = vmatpush.bf16.msra.mxu0 %v2163
        %2824 = vmatpush.bf16.msra.mxu0 %v2159
        %2825 = vmatpush.bf16.msra.mxu0 %v2155
        %2826 = vmatpush.bf16.msra.mxu0 %v2151
        %2827 = vmatpush.bf16.msra.mxu0 %v2147
        %2828 = vmatpush.bf16.msra.mxu0 %v2143
        %2829 = vmatpush.bf16.msra.mxu0 %v2139
        %2830 = vmatpush.bf16.msra.mxu0 %v2135
        %2831 = vmatmul.bf16.gmra.mxu0 %v883
        %v2832 = vpop.f32.mrf.mxu0
        %v2833 = vadd.f32 %v2820, %v2832
        %v2834 = vpop.f32.mrf.mxu0
        %2835 = vdwg.mxu0
        %v2836 = vld [vmem:[%s558] sm:$0xff]
        %v2838 = vperm.slane %v2836, 0
        %v2839 = vperm.slane %v2836, 2
        %v2840 = vperm.slane %v2836, 4
        %v2841 = vperm.slane %v2836, 6
        %v2846 = vperm.slane %v2838, 0
        %v2847 = vperm.slane %v2839, 0
        %v2848 = vperm.slane %v2840, 0
        %v2849 = vperm.slane %v2841, 0
        %v2850 = vmul.f32 %v2521, %v2846
        %v2851 = vmul.f32 %v2625, %v2847
        %v2852 = vmul.f32 %v2729, %v2848
        %v2853 = vmul.f32 %v2833, %v2849
        %v2854 = vperm.slane %v2836, 1
        %v2855 = vperm.slane %v2836, 3
        %v2856 = vperm.slane %v2836, 5
        %v2857 = vperm.slane %v2836, 7
        %v2862 = vperm.slane %v2854, 1
        %v2863 = vperm.slane %v2855, 1
        %v2864 = vperm.slane %v2856, 1
        %v2865 = vperm.slane %v2857, 1
        %v2866 = vadd.f32 %v2850, %v2862
        %v2867 = vadd.f32 %v2851, %v2863
        %v2868 = vadd.f32 %v2852, %v2864
        %v2869 = vadd.f32 %v2853, %v2865
        %vm2870 = vcmp.gt.f32.partialorder %v2866, 0.0
        %vm2871 = vcmp.gt.f32.partialorder %v2867, 0.0
        %vm2872 = vcmp.gt.f32.partialorder %v2868, 0.0
        %vm2873 = vcmp.gt.f32.partialorder %v2869, 0.0
        %v2874 = vmul.f32 %v2866, 0.01
        %v2875 = vmul.f32 %v2867, 0.01
        %v2876 = vmul.f32 %v2868, 0.01
        %v2877 = vmul.f32 %v2869, 0.01
        %v2878 = vsel %vm2870, %v2866, %v2874
        %v2879 = vsel %vm2871, %v2867, %v2875
        %v2880 = vsel %vm2872, %v2868, %v2876
        %v2881 = vsel %vm2873, %v2869, %v2877
        %v2882 = vpack.c.bf16 %v2878, %v2878
        %v2883 = vpack.c.bf16 %v2879, %v2879
        %v2884 = vpack.c.bf16 %v2880, %v2880
        %v2885 = vpack.c.bf16 %v2881, %v2881
        %v2886 = vld [vmem:[%s563] sm:$0xff]
        %v2887 = vld [vmem:[%s563 + $0x8] sm:$0xff]
        %v2888 = vld [vmem:[%s563 + $0x10] sm:$0xff]
        %v2889 = vld [vmem:[%s563 + $0x18] sm:$0xff]
        %v2890 = vld [vmem:[%s563 + $0x20] sm:$0xff]
        %v2891 = vld [vmem:[%s563 + $0x28] sm:$0xff]
        %v2892 = vld [vmem:[%s563 + $0x30] sm:$0xff]
        %v2893 = vld [vmem:[%s563 + $0x38] sm:$0xff]
        %v2894 = vld [vmem:[%s563 + $0x40] sm:$0xff]
        %v2895 = vld [vmem:[%s563 + $0x48] sm:$0xff]
        %v2896 = vld [vmem:[%s563 + $0x50] sm:$0xff]
        %v2897 = vld [vmem:[%s563 + $0x58] sm:$0xff]
        %v2898 = vld [vmem:[%s563 + $0x60] sm:$0xff]
        %v2899 = vld [vmem:[%s563 + $0x68] sm:$0xff]
        %v2900 = vld [vmem:[%s563 + $0x70] sm:$0xff]
        %v2901 = vld [vmem:[%s563 + $0x78] sm:$0xff]
        %v2902 = vld [vmem:[%s563 + $0x80] sm:$0xff]
        %v2903 = vld [vmem:[%s563 + $0x88] sm:$0xff]
        %v2904 = vld [vmem:[%s563 + $0x90] sm:$0xff]
        %v2905 = vld [vmem:[%s563 + $0x98] sm:$0xff]
        %v2906 = vld [vmem:[%s563 + $0xa0] sm:$0xff]
        %v2907 = vld [vmem:[%s563 + $0xa8] sm:$0xff]
        %v2908 = vld [vmem:[%s563 + $0xb0] sm:$0xff]
        %v2909 = vld [vmem:[%s563 + $0xb8] sm:$0xff]
        %v2910 = vld [vmem:[%s563 + $0xc0] sm:$0xff]
        %v2911 = vld [vmem:[%s563 + $0xc8] sm:$0xff]
        %v2912 = vld [vmem:[%s563 + $0xd0] sm:$0xff]
        %v2913 = vld [vmem:[%s563 + $0xd8] sm:$0xff]
        %v2914 = vld [vmem:[%s563 + $0xe0] sm:$0xff]
        %v2915 = vld [vmem:[%s563 + $0xe8] sm:$0xff]
        %v2916 = vld [vmem:[%s563 + $0xf0] sm:$0xff]
        %v2917 = vld [vmem:[%s563 + $0xf8] sm:$0xff]
        %v2918 = vld [vmem:[%s563 + $0x100] sm:$0xff]
        %v2919 = vld [vmem:[%s563 + $0x108] sm:$0xff]
        %v2920 = vld [vmem:[%s563 + $0x110] sm:$0xff]
        %v2921 = vld [vmem:[%s563 + $0x118] sm:$0xff]
        %v2922 = vld [vmem:[%s563 + $0x120] sm:$0xff]
        %v2923 = vld [vmem:[%s563 + $0x128] sm:$0xff]
        %v2924 = vld [vmem:[%s563 + $0x130] sm:$0xff]
        %v2925 = vld [vmem:[%s563 + $0x138] sm:$0xff]
        %v2926 = vld [vmem:[%s563 + $0x140] sm:$0xff]
        %v2927 = vld [vmem:[%s563 + $0x148] sm:$0xff]
        %v2928 = vld [vmem:[%s563 + $0x150] sm:$0xff]
        %v2929 = vld [vmem:[%s563 + $0x158] sm:$0xff]
        %v2930 = vld [vmem:[%s563 + $0x160] sm:$0xff]
        %v2931 = vld [vmem:[%s563 + $0x168] sm:$0xff]
        %v2932 = vld [vmem:[%s563 + $0x170] sm:$0xff]
        %v2933 = vld [vmem:[%s563 + $0x178] sm:$0xff]
        %v2934 = vld [vmem:[%s563 + $0x180] sm:$0xff]
        %v2935 = vld [vmem:[%s563 + $0x188] sm:$0xff]
        %v2936 = vld [vmem:[%s563 + $0x190] sm:$0xff]
        %v2937 = vld [vmem:[%s563 + $0x198] sm:$0xff]
        %v2938 = vld [vmem:[%s563 + $0x1a0] sm:$0xff]
        %v2939 = vld [vmem:[%s563 + $0x1a8] sm:$0xff]
        %v2940 = vld [vmem:[%s563 + $0x1b0] sm:$0xff]
        %v2941 = vld [vmem:[%s563 + $0x1b8] sm:$0xff]
        %v2942 = vld [vmem:[%s563 + $0x1c0] sm:$0xff]
        %v2943 = vld [vmem:[%s563 + $0x1c8] sm:$0xff]
        %v2944 = vld [vmem:[%s563 + $0x1d0] sm:$0xff]
        %v2945 = vld [vmem:[%s563 + $0x1d8] sm:$0xff]
        %v2946 = vld [vmem:[%s563 + $0x1e0] sm:$0xff]
        %v2947 = vld [vmem:[%s563 + $0x1e8] sm:$0xff]
        %v2948 = vld [vmem:[%s563 + $0x1f0] sm:$0xff]
        %v2949 = vld [vmem:[%s563 + $0x1f8] sm:$0xff]
        %v3014 = vunpack.c.l.b16 %v2886
        %v3015 = vunpack.c.h.b16 %v2886
        %v3016 = vunpack.c.l.b16 %v2887
        %v3017 = vunpack.c.h.b16 %v2887
        %v3018 = vunpack.c.l.b16 %v2888
        %v3019 = vunpack.c.h.b16 %v2888
        %v3020 = vunpack.c.l.b16 %v2889
        %v3021 = vunpack.c.h.b16 %v2889
        %v3022 = vunpack.c.l.b16 %v2890
        %v3023 = vunpack.c.h.b16 %v2890
        %v3024 = vunpack.c.l.b16 %v2891
        %v3025 = vunpack.c.h.b16 %v2891
        %v3026 = vunpack.c.l.b16 %v2892
        %v3027 = vunpack.c.h.b16 %v2892
        %v3028 = vunpack.c.l.b16 %v2893
        %v3029 = vunpack.c.h.b16 %v2893
        %v3030 = vunpack.c.l.b16 %v2894
        %v3031 = vunpack.c.h.b16 %v2894
        %v3032 = vunpack.c.l.b16 %v2895
        %v3033 = vunpack.c.h.b16 %v2895
        %v3034 = vunpack.c.l.b16 %v2896
        %v3035 = vunpack.c.h.b16 %v2896
        %v3036 = vunpack.c.l.b16 %v2897
        %v3037 = vunpack.c.h.b16 %v2897
        %v3038 = vunpack.c.l.b16 %v2898
        %v3039 = vunpack.c.h.b16 %v2898
        %v3040 = vunpack.c.l.b16 %v2899
        %v3041 = vunpack.c.h.b16 %v2899
        %v3042 = vunpack.c.l.b16 %v2900
        %v3043 = vunpack.c.h.b16 %v2900
        %v3044 = vunpack.c.l.b16 %v2901
        %v3045 = vunpack.c.h.b16 %v2901
        %v3046 = vunpack.c.l.b16 %v2902
        %v3047 = vunpack.c.h.b16 %v2902
        %v3048 = vunpack.c.l.b16 %v2903
        %v3049 = vunpack.c.h.b16 %v2903
        %v3050 = vunpack.c.l.b16 %v2904
        %v3051 = vunpack.c.h.b16 %v2904
        %v3052 = vunpack.c.l.b16 %v2905
        %v3053 = vunpack.c.h.b16 %v2905
        %v3054 = vunpack.c.l.b16 %v2906
        %v3055 = vunpack.c.h.b16 %v2906
        %v3056 = vunpack.c.l.b16 %v2907
        %v3057 = vunpack.c.h.b16 %v2907
        %v3058 = vunpack.c.l.b16 %v2908
        %v3059 = vunpack.c.h.b16 %v2908
        %v3060 = vunpack.c.l.b16 %v2909
        %v3061 = vunpack.c.h.b16 %v2909
        %v3062 = vunpack.c.l.b16 %v2910
        %v3063 = vunpack.c.h.b16 %v2910
        %v3064 = vunpack.c.l.b16 %v2911
        %v3065 = vunpack.c.h.b16 %v2911
        %v3066 = vunpack.c.l.b16 %v2912
        %v3067 = vunpack.c.h.b16 %v2912
        %v3068 = vunpack.c.l.b16 %v2913
        %v3069 = vunpack.c.h.b16 %v2913
        %v3070 = vunpack.c.l.b16 %v2914
        %v3071 = vunpack.c.h.b16 %v2914
        %v3072 = vunpack.c.l.b16 %v2915
        %v3073 = vunpack.c.h.b16 %v2915
        %v3074 = vunpack.c.l.b16 %v2916
        %v3075 = vunpack.c.h.b16 %v2916
        %v3076 = vunpack.c.l.b16 %v2917
        %v3077 = vunpack.c.h.b16 %v2917
        %v3078 = vunpack.c.l.b16 %v2918
        %v3079 = vunpack.c.h.b16 %v2918
        %v3080 = vunpack.c.l.b16 %v2919
        %v3081 = vunpack.c.h.b16 %v2919
        %v3082 = vunpack.c.l.b16 %v2920
        %v3083 = vunpack.c.h.b16 %v2920
        %v3084 = vunpack.c.l.b16 %v2921
        %v3085 = vunpack.c.h.b16 %v2921
        %v3086 = vunpack.c.l.b16 %v2922
        %v3087 = vunpack.c.h.b16 %v2922
        %v3088 = vunpack.c.l.b16 %v2923
        %v3089 = vunpack.c.h.b16 %v2923
        %v3090 = vunpack.c.l.b16 %v2924
        %v3091 = vunpack.c.h.b16 %v2924
        %v3092 = vunpack.c.l.b16 %v2925
        %v3093 = vunpack.c.h.b16 %v2925
        %v3094 = vunpack.c.l.b16 %v2926
        %v3095 = vunpack.c.h.b16 %v2926
        %v3096 = vunpack.c.l.b16 %v2927
        %v3097 = vunpack.c.h.b16 %v2927
        %v3098 = vunpack.c.l.b16 %v2928
        %v3099 = vunpack.c.h.b16 %v2928
        %v3100 = vunpack.c.l.b16 %v2929
        %v3101 = vunpack.c.h.b16 %v2929
        %v3102 = vunpack.c.l.b16 %v2930
        %v3103 = vunpack.c.h.b16 %v2930
        %v3104 = vunpack.c.l.b16 %v2931
        %v3105 = vunpack.c.h.b16 %v2931
        %v3106 = vunpack.c.l.b16 %v2932
        %v3107 = vunpack.c.h.b16 %v2932
        %v3108 = vunpack.c.l.b16 %v2933
        %v3109 = vunpack.c.h.b16 %v2933
        %v3110 = vunpack.c.l.b16 %v2934
        %v3111 = vunpack.c.h.b16 %v2934
        %v3112 = vunpack.c.l.b16 %v2935
        %v3113 = vunpack.c.h.b16 %v2935
        %v3114 = vunpack.c.l.b16 %v2936
        %v3115 = vunpack.c.h.b16 %v2936
        %v3116 = vunpack.c.l.b16 %v2937
        %v3117 = vunpack.c.h.b16 %v2937
        %v3118 = vunpack.c.l.b16 %v2938
        %v3119 = vunpack.c.h.b16 %v2938
        %v3120 = vunpack.c.l.b16 %v2939
        %v3121 = vunpack.c.h.b16 %v2939
        %v3122 = vunpack.c.l.b16 %v2940
        %v3123 = vunpack.c.h.b16 %v2940
        %v3124 = vunpack.c.l.b16 %v2941
        %v3125 = vunpack.c.h.b16 %v2941
        %v3126 = vunpack.c.l.b16 %v2942
        %v3127 = vunpack.c.h.b16 %v2942
        %v3128 = vunpack.c.l.b16 %v2943
        %v3129 = vunpack.c.h.b16 %v2943
        %v3130 = vunpack.c.l.b16 %v2944
        %v3131 = vunpack.c.h.b16 %v2944
        %v3132 = vunpack.c.l.b16 %v2945
        %v3133 = vunpack.c.h.b16 %v2945
        %v3134 = vunpack.c.l.b16 %v2946
        %v3135 = vunpack.c.h.b16 %v2946
        %v3136 = vunpack.c.l.b16 %v2947
        %v3137 = vunpack.c.h.b16 %v2947
        %v3138 = vunpack.c.l.b16 %v2948
        %v3139 = vunpack.c.h.b16 %v2948
        %v3140 = vunpack.c.l.b16 %v2949
        %v3141 = vunpack.c.h.b16 %v2949
        %v3142 = vpack.c.b16 %v3016, %v3014
        %v3143 = vpack.c.b16 %v3017, %v3015
        %v3144 = vpack.c.b16 %v3020, %v3018
        %v3145 = vpack.c.b16 %v3021, %v3019
        %v3146 = vpack.c.b16 %v3024, %v3022
        %v3147 = vpack.c.b16 %v3025, %v3023
        %v3148 = vpack.c.b16 %v3028, %v3026
        %v3149 = vpack.c.b16 %v3029, %v3027
        %v3150 = vpack.c.b16 %v3032, %v3030
        %v3151 = vpack.c.b16 %v3033, %v3031
        %v3152 = vpack.c.b16 %v3036, %v3034
        %v3153 = vpack.c.b16 %v3037, %v3035
        %v3154 = vpack.c.b16 %v3040, %v3038
        %v3155 = vpack.c.b16 %v3041, %v3039
        %v3156 = vpack.c.b16 %v3044, %v3042
        %v3157 = vpack.c.b16 %v3045, %v3043
        %v3158 = vpack.c.b16 %v3048, %v3046
        %v3159 = vpack.c.b16 %v3049, %v3047
        %v3160 = vpack.c.b16 %v3052, %v3050
        %v3161 = vpack.c.b16 %v3053, %v3051
        %v3162 = vpack.c.b16 %v3056, %v3054
        %v3163 = vpack.c.b16 %v3057, %v3055
        %v3164 = vpack.c.b16 %v3060, %v3058
        %v3165 = vpack.c.b16 %v3061, %v3059
        %v3166 = vpack.c.b16 %v3064, %v3062
        %v3167 = vpack.c.b16 %v3065, %v3063
        %v3168 = vpack.c.b16 %v3068, %v3066
        %v3169 = vpack.c.b16 %v3069, %v3067
        %v3170 = vpack.c.b16 %v3072, %v3070
        %v3171 = vpack.c.b16 %v3073, %v3071
        %v3172 = vpack.c.b16 %v3076, %v3074
        %v3173 = vpack.c.b16 %v3077, %v3075
        %v3174 = vpack.c.b16 %v3080, %v3078
        %v3175 = vpack.c.b16 %v3081, %v3079
        %v3176 = vpack.c.b16 %v3084, %v3082
        %v3177 = vpack.c.b16 %v3085, %v3083
        %v3178 = vpack.c.b16 %v3088, %v3086
        %v3179 = vpack.c.b16 %v3089, %v3087
        %v3180 = vpack.c.b16 %v3092, %v3090
        %v3181 = vpack.c.b16 %v3093, %v3091
        %v3182 = vpack.c.b16 %v3096, %v3094
        %v3183 = vpack.c.b16 %v3097, %v3095
        %v3184 = vpack.c.b16 %v3100, %v3098
        %v3185 = vpack.c.b16 %v3101, %v3099
        %v3186 = vpack.c.b16 %v3104, %v3102
        %v3187 = vpack.c.b16 %v3105, %v3103
        %v3188 = vpack.c.b16 %v3108, %v3106
        %v3189 = vpack.c.b16 %v3109, %v3107
        %v3190 = vpack.c.b16 %v3112, %v3110
        %v3191 = vpack.c.b16 %v3113, %v3111
        %v3192 = vpack.c.b16 %v3116, %v3114
        %v3193 = vpack.c.b16 %v3117, %v3115
        %v3194 = vpack.c.b16 %v3120, %v3118
        %v3195 = vpack.c.b16 %v3121, %v3119
        %v3196 = vpack.c.b16 %v3124, %v3122
        %v3197 = vpack.c.b16 %v3125, %v3123
        %v3198 = vpack.c.b16 %v3128, %v3126
        %v3199 = vpack.c.b16 %v3129, %v3127
        %v3200 = vpack.c.b16 %v3132, %v3130
        %v3201 = vpack.c.b16 %v3133, %v3131
        %v3202 = vpack.c.b16 %v3136, %v3134
        %v3203 = vpack.c.b16 %v3137, %v3135
        %v3204 = vpack.c.b16 %v3140, %v3138
        %v3205 = vpack.c.b16 %v3141, %v3139
        %3270 = vmatpush.bf16.msra.mxu0 %v3156
        %3271 = vmatpush.bf16.msra.mxu0 %v3154
        %3272 = vmatpush.bf16.msra.mxu0 %v3152
        %3273 = vmatpush.bf16.msra.mxu0 %v3150
        %3274 = vmatpush.bf16.msra.mxu0 %v3148
        %3275 = vmatpush.bf16.msra.mxu0 %v3146
        %3276 = vmatpush.bf16.msra.mxu0 %v3144
        %3277 = vmatpush.bf16.msra.mxu0 %v3142
        %3278 = vmatmul.bf16.gmra.mxu0 %v2882
        %v3279 = vpop.f32.mrf.mxu0
        %v3280 = vadd.f32 0.0, %v3279
        %v3281 = vpop.f32.mrf.mxu0
        %3282 = vdwg.mxu0
        %3283 = vmatpush.bf16.msra.mxu0 %v3172
        %3284 = vmatpush.bf16.msra.mxu0 %v3170
        %3285 = vmatpush.bf16.msra.mxu0 %v3168
        %3286 = vmatpush.bf16.msra.mxu0 %v3166
        %3287 = vmatpush.bf16.msra.mxu0 %v3164
        %3288 = vmatpush.bf16.msra.mxu0 %v3162
        %3289 = vmatpush.bf16.msra.mxu0 %v3160
        %3290 = vmatpush.bf16.msra.mxu0 %v3158
        %3291 = vmatmul.bf16.gmra.mxu0 %v2883
        %v3292 = vpop.f32.mrf.mxu0
        %v3293 = vadd.f32 %v3280, %v3292
        %v3294 = vpop.f32.mrf.mxu0
        %3295 = vdwg.mxu0
        %3296 = vmatpush.bf16.msra.mxu0 %v3188
        %3297 = vmatpush.bf16.msra.mxu0 %v3186
        %3298 = vmatpush.bf16.msra.mxu0 %v3184
        %3299 = vmatpush.bf16.msra.mxu0 %v3182
        %3300 = vmatpush.bf16.msra.mxu0 %v3180
        %3301 = vmatpush.bf16.msra.mxu0 %v3178
        %3302 = vmatpush.bf16.msra.mxu0 %v3176
        %3303 = vmatpush.bf16.msra.mxu0 %v3174
        %3304 = vmatmul.bf16.gmra.mxu0 %v2884
        %v3305 = vpop.f32.mrf.mxu0
        %v3306 = vadd.f32 %v3293, %v3305
        %v3307 = vpop.f32.mrf.mxu0
        %3308 = vdwg.mxu0
        %3309 = vmatpush.bf16.msra.mxu0 %v3204
        %3310 = vmatpush.bf16.msra.mxu0 %v3202
        %3311 = vmatpush.bf16.msra.mxu0 %v3200
        %3312 = vmatpush.bf16.msra.mxu0 %v3198
        %3313 = vmatpush.bf16.msra.mxu0 %v3196
        %3314 = vmatpush.bf16.msra.mxu0 %v3194
        %3315 = vmatpush.bf16.msra.mxu0 %v3192
        %3316 = vmatpush.bf16.msra.mxu0 %v3190
        %3317 = vmatmul.bf16.gmra.mxu0 %v2885
        %v3318 = vpop.f32.mrf.mxu0
        %v3319 = vadd.f32 %v3306, %v3318
        %v3320 = vpop.f32.mrf.mxu0
        %3321 = vdwg.mxu0
        %3322 = vmatpush.bf16.msra.mxu0 %v3157
        %3323 = vmatpush.bf16.msra.mxu0 %v3155
        %3324 = vmatpush.bf16.msra.mxu0 %v3153
        %3325 = vmatpush.bf16.msra.mxu0 %v3151
        %3326 = vmatpush.bf16.msra.mxu0 %v3149
        %3327 = vmatpush.bf16.msra.mxu0 %v3147
        %3328 = vmatpush.bf16.msra.mxu0 %v3145
        %3329 = vmatpush.bf16.msra.mxu0 %v3143
        %3330 = vmatmul.bf16.gmra.mxu0 %v2882
        %v3331 = vpop.f32.mrf.mxu0
        %v3332 = vadd.f32 0.0, %v3331
        %v3333 = vpop.f32.mrf.mxu0
        %3334 = vdwg.mxu0
        %3335 = vmatpush.bf16.msra.mxu0 %v3173
        %3336 = vmatpush.bf16.msra.mxu0 %v3171
        %3337 = vmatpush.bf16.msra.mxu0 %v3169
        %3338 = vmatpush.bf16.msra.mxu0 %v3167
        %3339 = vmatpush.bf16.msra.mxu0 %v3165
        %3340 = vmatpush.bf16.msra.mxu0 %v3163
        %3341 = vmatpush.bf16.msra.mxu0 %v3161
        %3342 = vmatpush.bf16.msra.mxu0 %v3159
        %3343 = vmatmul.bf16.gmra.mxu0 %v2883
        %v3344 = vpop.f32.mrf.mxu0
        %v3345 = vadd.f32 %v3332, %v3344
        %v3346 = vpop.f32.mrf.mxu0
        %3347 = vdwg.mxu0
        %3348 = vmatpush.bf16.msra.mxu0 %v3189
        %3349 = vmatpush.bf16.msra.mxu0 %v3187
        %3350 = vmatpush.bf16.msra.mxu0 %v3185
        %3351 = vmatpush.bf16.msra.mxu0 %v3183
        %3352 = vmatpush.bf16.msra.mxu0 %v3181
        %3353 = vmatpush.bf16.msra.mxu0 %v3179
        %3354 = vmatpush.bf16.msra.mxu0 %v3177
        %3355 = vmatpush.bf16.msra.mxu0 %v3175
        %3356 = vmatmul.bf16.gmra.mxu0 %v2884
        %v3357 = vpop.f32.mrf.mxu0
        %v3358 = vadd.f32 %v3345, %v3357
        %v3359 = vpop.f32.mrf.mxu0
        %3360 = vdwg.mxu0
        %3361 = vmatpush.bf16.msra.mxu0 %v3205
        %3362 = vmatpush.bf16.msra.mxu0 %v3203
        %3363 = vmatpush.bf16.msra.mxu0 %v3201
        %3364 = vmatpush.bf16.msra.mxu0 %v3199
        %3365 = vmatpush.bf16.msra.mxu0 %v3197
        %3366 = vmatpush.bf16.msra.mxu0 %v3195
        %3367 = vmatpush.bf16.msra.mxu0 %v3193
        %3368 = vmatpush.bf16.msra.mxu0 %v3191
        %3369 = vmatmul.bf16.gmra.mxu0 %v2885
        %v3370 = vpop.f32.mrf.mxu0
        %v3371 = vadd.f32 %v3358, %v3370
        %v3372 = vpop.f32.mrf.mxu0
        %3373 = vdwg.mxu0
        %v3374 = vld [vmem:[%s568] sm:$0xf]
        %v3376 = vperm.slane %v3374, 0
        %v3377 = vperm.slane %v3374, 2
        %v3380 = vperm.slane %v3376, 0
        %v3381 = vperm.slane %v3377, 0
        %v3382 = vmul.f32 %v3319, %v3380
        %v3383 = vmul.f32 %v3371, %v3381
        %v3384 = vperm.slane %v3374, 1
        %v3385 = vperm.slane %v3374, 3
        %v3388 = vperm.slane %v3384, 1
        %v3389 = vperm.slane %v3385, 1
        %v3390 = vadd.f32 %v3382, %v3388
        %v3391 = vadd.f32 %v3383, %v3389
        %vm3392 = vcmp.gt.f32.partialorder %v3390, 0.0
        %vm3393 = vcmp.gt.f32.partialorder %v3391, 0.0
        %v3394 = vmul.f32 %v3390, 0.01
        %v3395 = vmul.f32 %v3391, 0.01
        %v3396 = vsel %vm3392, %v3390, %v3394
        %v3397 = vsel %vm3393, %v3391, %v3395
        %v3398 = vpack.c.bf16 %v3396, %v3396
        %v3399 = vpack.c.bf16 %v3397, %v3397
        %v3400 = vld [vmem:[%s573] sm:$0xf]
        %v3401 = vld [vmem:[%s573 + $0x4] sm:$0xf]
        %v3402 = vld [vmem:[%s573 + $0x8] sm:$0xf]
        %v3403 = vld [vmem:[%s573 + $0xc] sm:$0xf]
        %v3404 = vld [vmem:[%s573 + $0x10] sm:$0xf]
        %v3405 = vld [vmem:[%s573 + $0x14] sm:$0xf]
        %v3406 = vld [vmem:[%s573 + $0x18] sm:$0xf]
        %v3407 = vld [vmem:[%s573 + $0x1c] sm:$0xf]
        %v3408 = vld [vmem:[%s573 + $0x20] sm:$0xf]
        %v3409 = vld [vmem:[%s573 + $0x24] sm:$0xf]
        %v3410 = vld [vmem:[%s573 + $0x28] sm:$0xf]
        %v3411 = vld [vmem:[%s573 + $0x2c] sm:$0xf]
        %v3412 = vld [vmem:[%s573 + $0x30] sm:$0xf]
        %v3413 = vld [vmem:[%s573 + $0x34] sm:$0xf]
        %v3414 = vld [vmem:[%s573 + $0x38] sm:$0xf]
        %v3415 = vld [vmem:[%s573 + $0x3c] sm:$0xf]
        %v3416 = vld [vmem:[%s573 + $0x40] sm:$0xf]
        %v3417 = vld [vmem:[%s573 + $0x44] sm:$0xf]
        %v3418 = vld [vmem:[%s573 + $0x48] sm:$0xf]
        %v3419 = vld [vmem:[%s573 + $0x4c] sm:$0xf]
        %v3420 = vld [vmem:[%s573 + $0x50] sm:$0xf]
        %v3421 = vld [vmem:[%s573 + $0x54] sm:$0xf]
        %v3422 = vld [vmem:[%s573 + $0x58] sm:$0xf]
        %v3423 = vld [vmem:[%s573 + $0x5c] sm:$0xf]
        %v3424 = vld [vmem:[%s573 + $0x60] sm:$0xf]
        %v3425 = vld [vmem:[%s573 + $0x64] sm:$0xf]
        %v3426 = vld [vmem:[%s573 + $0x68] sm:$0xf]
        %v3427 = vld [vmem:[%s573 + $0x6c] sm:$0xf]
        %v3428 = vld [vmem:[%s573 + $0x70] sm:$0xf]
        %v3429 = vld [vmem:[%s573 + $0x74] sm:$0xf]
        %v3430 = vld [vmem:[%s573 + $0x78] sm:$0xf]
        %v3431 = vld [vmem:[%s573 + $0x7c] sm:$0xf]
        %v3432 = vld [vmem:[%s576] sm:$0x1]
        %v3434 = vperm.slane %v3432, 0
        %v3468 = vunpack.c.l.b16 %v3400
        %v3469 = vunpack.c.l.b16 %v3401
        %v3470 = vunpack.c.l.b16 %v3402
        %v3471 = vunpack.c.l.b16 %v3403
        %v3472 = vunpack.c.l.b16 %v3404
        %v3473 = vunpack.c.l.b16 %v3405
        %v3474 = vunpack.c.l.b16 %v3406
        %v3475 = vunpack.c.l.b16 %v3407
        %v3476 = vunpack.c.l.b16 %v3408
        %v3477 = vunpack.c.l.b16 %v3409
        %v3478 = vunpack.c.l.b16 %v3410
        %v3479 = vunpack.c.l.b16 %v3411
        %v3480 = vunpack.c.l.b16 %v3412
        %v3481 = vunpack.c.l.b16 %v3413
        %v3482 = vunpack.c.l.b16 %v3414
        %v3483 = vunpack.c.l.b16 %v3415
        %v3484 = vunpack.c.l.b16 %v3416
        %v3485 = vunpack.c.l.b16 %v3417
        %v3486 = vunpack.c.l.b16 %v3418
        %v3487 = vunpack.c.l.b16 %v3419
        %v3488 = vunpack.c.l.b16 %v3420
        %v3489 = vunpack.c.l.b16 %v3421
        %v3490 = vunpack.c.l.b16 %v3422
        %v3491 = vunpack.c.l.b16 %v3423
        %v3492 = vunpack.c.l.b16 %v3424
        %v3493 = vunpack.c.l.b16 %v3425
        %v3494 = vunpack.c.l.b16 %v3426
        %v3495 = vunpack.c.l.b16 %v3427
        %v3496 = vunpack.c.l.b16 %v3428
        %v3497 = vunpack.c.l.b16 %v3429
        %v3498 = vunpack.c.l.b16 %v3430
        %v3499 = vunpack.c.l.b16 %v3431
        %v3500 = vpack.c.b16 %v3469, %v3468
        %v3501 = vpack.c.b16 %v3471, %v3470
        %v3502 = vpack.c.b16 %v3473, %v3472
        %v3503 = vpack.c.b16 %v3475, %v3474
        %v3504 = vpack.c.b16 %v3477, %v3476
        %v3505 = vpack.c.b16 %v3479, %v3478
        %v3506 = vpack.c.b16 %v3481, %v3480
        %v3507 = vpack.c.b16 %v3483, %v3482
        %v3508 = vpack.c.b16 %v3485, %v3484
        %v3509 = vpack.c.b16 %v3487, %v3486
        %v3510 = vpack.c.b16 %v3489, %v3488
        %v3511 = vpack.c.b16 %v3491, %v3490
        %v3512 = vpack.c.b16 %v3493, %v3492
        %v3513 = vpack.c.b16 %v3495, %v3494
        %v3514 = vpack.c.b16 %v3497, %v3496
        %v3515 = vpack.c.b16 %v3499, %v3498
        %3532 = vmatpush.bf16.msra.mxu0 %v3507
        %3533 = vmatpush.bf16.msra.mxu0 %v3506
        %3534 = vmatpush.bf16.msra.mxu0 %v3505
        %3535 = vmatpush.bf16.msra.mxu0 %v3504
        %3536 = vmatpush.bf16.msra.mxu0 %v3503
        %3537 = vmatpush.bf16.msra.mxu0 %v3502
        %3538 = vmatpush.bf16.msra.mxu0 %v3501
        %3539 = vmatpush.bf16.msra.mxu0 %v3500
        %3540 = vmatmul.bf16.gmra.mxu0 %v3398
        %v3541 = vpop.f32.mrf.mxu0
        %v3542 = vadd.f32 %v3434, %v3541
        %v3543 = vpop.f32.mrf.mxu0
        %3544 = vdwg.mxu0
        %3545 = vmatpush.bf16.msra.mxu0 %v3515
        %3546 = vmatpush.bf16.msra.mxu0 %v3514
        %3547 = vmatpush.bf16.msra.mxu0 %v3513
        %3548 = vmatpush.bf16.msra.mxu0 %v3512
        %3549 = vmatpush.bf16.msra.mxu0 %v3511
        %3550 = vmatpush.bf16.msra.mxu0 %v3510
        %3551 = vmatpush.bf16.msra.mxu0 %v3509
        %3552 = vmatpush.bf16.msra.mxu0 %v3508
        %3553 = vmatmul.bf16.gmra.mxu0 %v3399
        %v3554 = vpop.f32.mrf.mxu0
        %v3555 = vadd.f32 %v3542, %v3554
        %v3556 = vpop.f32.mrf.mxu0
        %3557 = vdwg.mxu0
        %v3558 = vxor.u32 %v3555, 2147483648
        %v3559 = vmul.f32 %v3558, 1.442695
        %v3560 = vpow.pop %v3559
        %v3561 = vadd.f32 %v3560, 1.0
        %v3562 = vrcp.pop %v3561
        %v3563 = vmul.f32 %v3561, %v3562
        %v3564 = vsub.f32 1.0, %v3563
        %v3565 = vmul.f32 %v3562, %v3564
        %v3566 = vadd.f32 %v3562, %v3565
        %vm3567 = vweird.f32 %v3561
        %vm3568 = vweird.f32 %v3562
        %vm3569 = vmor %vm3567, %vm3568
        %v3570 = vsel %vm3569, %v3562, %v3566
        %v3571 = vand.u32 2147483647, %v3561
        %vm3572 = vcmp.eq.f32.partialorder %v3571, 8.507059e+37
        %v3573 = vand.u32 %v3561, 2147483648
        %v3574 = vor.u32 1.1754944e-38, %v3573
        %v3575 = vsel %vm3572, %v3574, %v3570
        %v3576 = vmul.f32 1.0, %v3575
        %p3577 = scmp.eq.s32.totalorder %s27, 0
        // Predicated region
        $region69: #{classifier_down_forward.1} parent=67 // pred_check
          %p3578 = pneg %p3577
        $region70: #{classifier_down_forward.1} parent=67 // pred_check_branch
          %3580 = sbr.rel (%p3578) target = $region72
        $region71: #{classifier_down_forward.1} parent=67 // pred_region
          %vm3581 = vcmask 64512
          %3582 = vst.msk [vmem:[#allocation2] sm:$0xff] %vm3581, %v3576
        $region72: #{classifier_down_forward.1} parent=67 // pred_fallthru
          _
        %p3583 = scmp.eq.s32.totalorder %s27, 1
        // Predicated region
        $region73: #{classifier_down_forward.1} parent=67 // pred_check
          %p3584 = pneg %p3583
        $region74: #{classifier_down_forward.1} parent=67 // pred_check_branch
          %3586 = sbr.rel (%p3584) target = $region76
        $region75: #{classifier_down_forward.1} parent=67 // pred_region
          %vm3587 = vcmask 64512
          %3588 = vst.msk [vmem:[#allocation3] sm:$0xff] %vm3587, %v3576
          %v3589 = vld [vmem:[#allocation2] sm:$0xff]
          %v3590 = vld [vmem:[#allocation3] sm:$0xff]
          %v3591 = vld [vmem:[%s9] sm:$0xf]
          %v3592 = vld [vmem:[%s10] sm:$0x1]
          %v3593 = vld [vmem:[%s11] sm:$0x1]
          %v3594 = vpack.c.bf16 %v3589, %v3589
          %v3596 = vperm.slane %v3592, 0
          %v3599 = vsel %vm3587, %v3594, 0
          %vm3601 = vcmask 1043456
          %v3603 = vsel %vm3601, %v3591, 0
          %3605 = vmatpush.bf16.msra.mxu0 0
          %3606 = vmatpush.bf16.msra.mxu0 0
          %3607 = vmatpush.bf16.msra.mxu0 0
          %3608 = vmatpush.bf16.msra.mxu0 0
          %3609 = vmatpush.bf16.msra.mxu0 0
          %3610 = vmatpush.bf16.msra.mxu0 0
          %3611 = vmatpush.bf16.msra.mxu0 0
          %3612 = vmatpush.bf16.msra.mxu0 %v3603
          %3613 = vmatmul.bf16.gmra.mxu0 %v3599
          %v3614 = vpop.f32.mrf.mxu0
          %v3615 = vadd.f32 %v3596, %v3614
          %v3616 = vpop.f32.mrf.mxu0
          %3617 = vdwg.mxu0
          %v3618 = vtanh.pop %v3615
          %v3619 = vpack.c.bf16 %v3590, %v3590
          %v3621 = vsel %vm3587, %v3619, 0
          %3623 = vmatpush.bf16.msra.mxu0 0
          %3624 = vmatpush.bf16.msra.mxu0 0
          %3625 = vmatpush.bf16.msra.mxu0 0
          %3626 = vmatpush.bf16.msra.mxu0 0
          %3627 = vmatpush.bf16.msra.mxu0 0
          %3628 = vmatpush.bf16.msra.mxu0 0
          %3629 = vmatpush.bf16.msra.mxu0 0
          %3630 = vmatpush.bf16.msra.mxu0 %v3603
          %3631 = vmatmul.bf16.gmra.mxu0 %v3621
          %v3632 = vpop.f32.mrf.mxu0
          %v3633 = vadd.f32 %v3596, %v3632
          %v3634 = vpop.f32.mrf.mxu0
          %3635 = vdwg.mxu0
          %v3636 = vtanh.pop %v3633
          %v3638 = vperm.slane %v3593, 0
          %v3640 = vmul.f32 %v3618, %v3638
          %vm3641 = vcmask 523264
          %v3642 = vsel %vm3641, %v3640, 0.0
          %3643 = vadd.xlane.f32.xlu0 %v3642
          %v3644 = vpop.xlane.xlu0 %3643
          %v3645 = vrot.slane %v3644, 4
          %v3646 = vadd.f32 %v3644, %v3645
          %v3647 = vrot.slane %v3646, 2
          %v3648 = vadd.f32 %v3646, %v3647
          %v3649 = vrot.slane %v3648, 1
          %v3650 = vadd.f32 %v3648, %v3649
          %s3651 = vtos %v3650
          %v3652 = vrcp.pop 8.0
          %v3653 = vmul.f32 8.0, %v3652
          %v3654 = vsub.f32 1.0, %v3653
          %v3655 = vmul.f32 %v3652, %v3654
          %v3656 = vadd.f32 %v3652, %v3655
          %vm3657 = vweird.f32 %v3652
          %v3658 = vsel %vm3657, %v3652, %v3656
          %s3659 = vtos %v3658
          %s3660 = smul.f32 %s3651, %s3659
          %v3661 = vmul.f32 %v3636, %v3638
          %v3662 = vsel %vm3641, %v3661, 0.0
          %3663 = vadd.xlane.f32.xlu0 %v3662
          %v3664 = vpop.xlane.xlu0 %3663
          %v3665 = vrot.slane %v3664, 4
          %v3666 = vadd.f32 %v3664, %v3665
          %v3667 = vrot.slane %v3666, 2
          %v3668 = vadd.f32 %v3666, %v3667
          %v3669 = vrot.slane %v3668, 1
          %v3670 = vadd.f32 %v3668, %v3669
          %s3671 = vtos %v3670
          %v3672 = vrcp.pop 8.0
          %v3673 = vmul.f32 8.0, %v3672
          %v3674 = vsub.f32 1.0, %v3673
          %v3675 = vmul.f32 %v3672, %v3674
          %v3676 = vadd.f32 %v3672, %v3675
          %vm3677 = vweird.f32 %v3672
          %v3678 = vsel %vm3677, %v3672, %v3676
          %s3679 = vtos %v3678
          %s3680 = smul.f32 %s3671, %s3679
          %s3681 = smax.f32 %s3660, %s3680
          %s3682 = ssub.f32 %s3660, %s3681
          %v3683 = vstv %s3682
          %v3684 = vmul.f32 %v3683, 1.442695
          %v3685 = vpow.pop %v3684
          %s3686 = vtos %v3685
          %s3687 = ssub.f32 %s3680, %s3681
          %v3688 = vstv %s3687
          %v3689 = vmul.f32 %v3688, 1.442695
          %v3690 = vpow.pop %v3689
          %s3691 = vtos %v3690
          %s3692 = sadd.f32 %s3686, %s3691
          %v3693 = vstv %s3692
          %v3694 = vrcp.pop %v3693
          %v3695 = vmul.f32 %v3693, %v3694
          %v3696 = vsub.f32 1.0, %v3695
          %v3697 = vmul.f32 %v3694, %v3696
          %v3698 = vadd.f32 %v3694, %v3697
          %vm3699 = vweird.f32 %v3693
          %vm3700 = vweird.f32 %v3694
          %vm3701 = vmor %vm3699, %vm3700
          %v3702 = vsel %vm3701, %v3694, %v3698
          %v3703 = vand.u32 2147483647, %v3693
          %vm3704 = vcmp.eq.f32.partialorder %v3703, 8.507059e+37
          %v3705 = vand.u32 %v3693, 2147483648
          %v3706 = vor.u32 1.1754944e-38, %v3705
          %v3707 = vsel %vm3704, %v3706, %v3702
          %s3708 = vtos %v3707
          %s3709 = smul.f32 %s3686, %s3708
          %s3710 = smul.f32 %s3691, %s3708
          %v3711 = vstv %s3709
          %v3712 = vmul.f32 %v3711, %v3589
          %v3713 = vstv %s3710
          %v3714 = vmul.f32 %v3713, %v3590
          %v3715 = vadd.f32 %v3712, %v3714
          %3716 = vst.msk [vmem:[#allocation4] sm:$0xff] %vm3587, %v3715
          %v3717 = vlaneseq
          %v3718 = vand.u32 %v3717, 127
          %vm3719 = vcmp.eq.s32.totalorder %v3718, 0
          %v3720 = vsel %vm3719, %v3711, %v3713
          %vm3721 = vcmask 8192
          %3722 = vst.msk [vmem:[#allocation6] sm:$0x1] %vm3721, %v3720
        $region76: #{classifier_down_forward.1} parent=67 // pred_fallthru
          _
        // Predicated region
        $region77: #{classifier_down_forward.1} parent=67 // pred_check
          %p3723 = pneg %p337
        $region78: #{classifier_down_forward.1} parent=67 // pred_check_branch
          %3725 = sbr.rel (%p3723) target = $region80
        $region79: #{classifier_down_forward.1} parent=67 // pred_region
          %3727 = vsyncadd [#allocation5], 0
          %s3729 = sshll.u32 [#allocation4], 4
          %s3730 = int_to_ptr.vmem [resolvable:$true] %s3729
          %s3731 = sshll.u32 %s12, 4
          %s3732 = int_to_ptr.hbm [resolvable:$true] %s3731
          %3734 = dma.vmem_to_hbm [thread:$0]  %s3730, 128, %s3732, [#allocation5]
        $region80: #{classifier_down_forward.1} parent=67 // pred_fallthru
          _
        // Predicated region
        $region81: #{classifier_down_forward.1} parent=67 // pred_check
          %p3735 = pneg %p358
        $region82: #{classifier_down_forward.1} parent=67 // pred_check_branch
          %3737 = sbr.rel (%p3735) target = $region84
        $region83: #{classifier_down_forward.1} parent=67 // pred_region
          %3739 = vsyncadd [#allocation7], 0
          %s3741 = sshll.u32 [#allocation6], 4
          %s3742 = int_to_ptr.vmem [resolvable:$true] %s3741
          %s3743 = sshll.u32 %s13, 4
          %s3744 = int_to_ptr.hbm [resolvable:$true] %s3743
          %3746 = dma.vmem_to_hbm [thread:$0]  %s3742, 16, %s3744, [#allocation7]
        $region84: #{classifier_down_forward.1} parent=67 // pred_fallthru
          _
        // Predicated region
        $region85: #{classifier_down_forward.1} parent=67 // pred_check
          %p3747 = pneg %p337
        $region86: #{classifier_down_forward.1} parent=67 // pred_check_branch
          %3749 = sbr.rel (%p3747) target = $region88
        $region87: #{classifier_down_forward.1} parent=67 // pred_region
          %3751 = dma.done [#allocation5], 128
        $region88: #{classifier_down_forward.1} parent=67 // pred_fallthru
          _
        // Predicated region
        $region89: #{classifier_down_forward.1} parent=67 // pred_check
          %p3752 = pneg %p358
        $region90: #{classifier_down_forward.1} parent=67 // pred_check_branch
          %3754 = sbr.rel (%p3752) target = $region92
        $region91: #{classifier_down_forward.1} parent=67 // pred_region
          %3756 = dma.done [#allocation7], 16
        $region92: #{classifier_down_forward.1} parent=67 // pred_fallthru
          _
      $region68: #{classifier_down_forward.1} parent=5 // pred_fallthru
        _
      %p3757 = scmp.le.s32.totalorder 2, %s22
      // Predicated region
      $region93: #{classifier_down_forward.1} parent=5 // pred_check
        %p3758 = pneg %p3757
      $region94: #{classifier_down_forward.1} parent=5 // pred_check_branch
        %3760 = sbr.rel (%p3758) target = $region96
      $region95: #{classifier_down_forward.1} parent=5 // pred_region
        %s3761 = ssub.s32 %s22, 2
      $region96: #{classifier_down_forward.1} parent=5 // pred_fallthru
        _
    $region6: #{classifier_down_forward.1} parent=1 // loop_footer
      %s26 = sadd.s32 1, %s22
    $region7: #{classifier_down_forward.1} parent=1 // loop_footer_branch
      %21 = sbr.rel target = $region3
    $region8: #{classifier_down_forward.1} parent=1 // loop_exit
      _
    %3762 = vsyncpa [#allocation5], 1
    %s3763 = scalar_lea.sflag [#allocation5], 1
    %3764 = vsyncpa %s3763, 1
    %3765 = vsyncpa [#allocation7], 1

</llo_original>
